<compile_context>
chip_gen: v7x
topology: tpu7x:2x2x1
jax: 0.10.0
libtpu: 0.0.40
codegen_flags: <defaults>
</compile_context>

<pallas_src>
import functools

import jax
import jax.numpy as jnp
from jax.experimental import pallas as pl
from jax.experimental.pallas import tpu as pltpu

EPS = 1e-5


# ---------------------------------------------------------------------------
# Kernels
# ---------------------------------------------------------------------------
def _conv1x1_stats_kernel(x_ref, w_ref, h_ref, stats_ref):
    """1x1 conv (channel matmul) on one row-tile; packed BN partial sums."""
    h = jnp.dot(x_ref[...], w_ref[...], preferred_element_type=jnp.float32)
    h_ref[...] = h.astype(h_ref.dtype)
    stats_ref[0] = jnp.concatenate(
        [jnp.sum(h, axis=0, keepdims=True),
         jnp.sum(h * h, axis=0, keepdims=True)], axis=-1)


def _bn_relu_conv1x1_stats_kernel(h_ref, scale_ref, shift_ref, w_ref,
                                  o_ref, stats_ref):
    """Fused BN(scale,shift)+ReLU then 1x1 conv; packed BN partial sums."""
    y = jnp.maximum(
        h_ref[...].astype(jnp.float32) * scale_ref[...] + shift_ref[...], 0.0)
    o = jnp.dot(y.astype(w_ref.dtype), w_ref[...],
                preferred_element_type=jnp.float32)
    o_ref[...] = o.astype(o_ref.dtype)
    stats_ref[0] = jnp.concatenate(
        [jnp.sum(o, axis=0, keepdims=True),
         jnp.sum(o * o, axis=0, keepdims=True)], axis=-1)


def _bn_relu_conv3x3_stats_kernel(h1_ref, w2_ref, scale_ref, shift_ref,
                                  mleft_ref, mright_ref,
                                  h2_ref, stats_ref, pad_ref,
                                  *, width, band_rows, n_bands):
    """BN1+ReLU fused at load; 3x3 conv (stride=1, pad=1) on one row band.

    The band's activations (plus a one-image-row halo above/below, or zeros at
    the image edge) are written into a VMEM slab as a lane-concatenated
    triplet [y(r-1) | y(r) | y(r+1)] of width 3*C1, with the horizontal
    conv-padding wrap removed by two 0/1 column-mask multiplies (in f32).
    The conv is then 3 matmuls with K = 3*C1, one per kh, each reading an
    8-aligned row window of the slab.
    """
    W = width
    C3 = pad_ref.shape[1]                       # 3 * C1
    t = pl.program_id(1)
    last = n_bands - 1

    def bn_relu(chunk):
        return jnp.maximum(
            chunk.astype(jnp.float32) * scale_ref[...] + shift_ref[...], 0.0)

    def trip(y, ml, mr):
        # y: (rows, C1) f32; ml/mr: (rows, 1) f32 0/1 masks.  Wrap rows of the
        # rolls coincide with masked (w==0 / w==W-1) positions since every
        # chunk starts/ends on an image-row boundary.
        y_m1 = jnp.roll(y, 1, axis=0) * ml      # source row r-1  (kw = 0 tap)
        y_p1 = jnp.roll(y, -1, axis=0) * mr     # source row r+1  (kw = 2 tap)
        return jnp.concatenate([y_m1, y, y_p1], axis=1).astype(pad_ref.dtype)

    r0 = pl.multiple_of(t * band_rows, 8)       # band start (flat rows, in-image)

    # Interior rows of this band.
    yb = bn_relu(h1_ref[pl.ds(r0, band_rows), :])
    pad_ref[W:W + band_rows, :] = trip(yb, mleft_ref[...], mright_ref[...])

    # Top halo: previous image row, or conv zero-padding at the image top.
    @pl.when(t == 0)
    def _():
        pad_ref[0:W, :] = jnp.zeros((W, C3), pad_ref.dtype)

    @pl.when(t > 0)
    def _():
        yt = bn_relu(h1_ref[pl.ds(pl.multiple_of(r0 - W, 8), W), :])
        pad_ref[0:W, :] = trip(yt, mleft_ref[0:W, :], mright_ref[0:W, :])

    # Bottom halo: next image row, or conv zero-padding at the image bottom.
    @pl.when(t == last)
    def _():
        pad_ref[band_rows + W:band_rows + 2 * W, :] = jnp.zeros(
            (W, C3), pad_ref.dtype)

    @pl.when(t < last)
    def _():
        yn = bn_relu(h1_ref[pl.ds(pl.multiple_of(r0 + band_rows, 8), W), :])
        pad_ref[band_rows + W:band_rows + 2 * W, :] = trip(
            yn, mleft_ref[0:W, :], mright_ref[0:W, :])

    # 3x3 conv as 3 matmuls with K = 3*C1; row windows are 8-aligned.
    acc = None
    for kh in range(3):
        win = pad_ref[kh * W:kh * W + band_rows, :]
        part = jnp.dot(win, w2_ref[kh], preferred_element_type=jnp.float32)
        acc = part if acc is None else acc + part

    h2_ref[...] = acc.astype(h2_ref.dtype)
    stats_ref[0] = jnp.concatenate(
        [jnp.sum(acc, axis=0, keepdims=True),
         jnp.sum(acc * acc, axis=0, keepdims=True)], axis=-1)


def _bn_add_relu_kernel(h_ref, res_ref, scale_ref, shift_ref, o_ref):
    """BN3 + residual add + final ReLU on one row-tile."""
    y = h_ref[...].astype(jnp.float32) * scale_ref[...] + shift_ref[...]
    o_ref[...] = jnp.maximum(y + res_ref[...].astype(jnp.float32), 0.0)


# ---------------------------------------------------------------------------
# Wrapper helpers
# ---------------------------------------------------------------------------
def _bn_fold(stats, count, gamma, beta):
    """Fold packed (sum | sumsq) batch statistics into a per-channel FMA.

    NOTE: single-pass var = E[x^2] - E[x]^2 (biased, matching PyTorch
    training-mode normalization); fine for post-conv activations whose means
    are small relative to the variance.
    """
    C = gamma.shape[0]
    tot = jnp.sum(stats.astype(jnp.float32), axis=(0, 1))    # (2C,)
    mean = tot[:C] / count
    ex2 = tot[C:] / count
    var = jnp.maximum(ex2 - mean * mean, 0.0)
    scale = gamma.astype(jnp.float32) * jax.lax.rsqrt(var + EPS)
    shift = beta.astype(jnp.float32) - mean * scale
    return scale.reshape(1, -1), shift.reshape(1, -1)


def _largest_divisor_tile(M, want):
    t = max(8, min(want, M))
    t -= t % 8
    while M % t:
        t -= 8
    return t


def _pick_band_height(H, W, target_rows=512):
    """Largest divisor th of H with th*W <= target_rows; prefer >= 2 bands."""
    best = 1
    for th in range(1, H + 1):
        if H % th == 0 and th * W <= target_rows:
            best = th
    if best == H and H % 2 == 0:
        best = H // 2          # at least two bands -> megacore + pipelined DMA
    return best


# ---------------------------------------------------------------------------
# Forward
# ---------------------------------------------------------------------------
@functools.partial(jax.jit, static_argnames=("compute_dtype", "tile_m"))
def bottleneck_forward(x_nchw, params, *, compute_dtype=jnp.bfloat16,
                       tile_m=512):
    (w1, w2, w3, g1, b1, g2, b2, g3, b3) = params
    N, Cin, H, W = x_nchw.shape
    C1 = w1.shape[1]
    C4 = w3.shape[1]
    assert Cin == C4, "identity residual requires inp == oup * expansion"
    assert W % 8 == 0, "image width must be 8-aligned"
    M = N * H * W
    tm = _largest_divisor_tile(M, tile_m)
    n_t = M // tm

    th = _pick_band_height(H, W)
    n_bands = H // th
    band_rows = th * W

    cdt = compute_dtype
    f32 = jnp.float32
    isz = jnp.dtype(cdt).itemsize

    # Layout glue: NCHW -> NHWC -> (M, C).  One compute-dtype copy serves both
    # conv1's input and stage-4's residual.
    x2d = jnp.transpose(x_nchw, (0, 2, 3, 1)).reshape(M, Cin).astype(cdt)
    w1c = w1.astype(cdt)                          # (Cin, C1)
    w2c = w2.reshape(3, 3 * C1, C1).astype(cdt)   # per-kh (3*C1, C1); K = (kw, cin)
    w3c = w3.astype(cdt)                          # (C1, C4)

    # 0/1 column masks removing the horizontal conv-padding wrap (f32, applied
    # before the cast to compute dtype).  Period W, so one band's worth is
    # enough; halos use its first W rows.
    col = jnp.arange(band_rows, dtype=jnp.int32) % W
    m_left = (col != 0).astype(f32).reshape(band_rows, 1)
    m_right = (col != (W - 1)).astype(f32).reshape(band_rows, 1)

    par1 = pltpu.CompilerParams(dimension_semantics=("parallel",))
    par2 = pltpu.CompilerParams(dimension_semantics=("parallel", "parallel"))

    # ---- stage 1: conv1 (1x1) + BN1 packed partial stats ------------------
    h1, st1 = pl.pallas_call(
        _conv1x1_stats_kernel,
        grid=(n_t,),
        in_specs=[
            pl.BlockSpec((tm, Cin), lambda i: (i, 0)),
            pl.BlockSpec((Cin, C1), lambda i: (0, 0)),    # VMEM-resident weight
        ],
        out_specs=[
            pl.BlockSpec((tm, C1), lambda i: (i, 0)),
            pl.BlockSpec((1, 1, 2 * C1), lambda i: (i, 0, 0)),
        ],
        out_shape=[
            jax.ShapeDtypeStruct((M, C1), cdt),
            jax.ShapeDtypeStruct((n_t, 1, 2 * C1), f32),
        ],
        compiler_params=par1,
        cost_estimate=pl.CostEstimate(
            flops=2 * M * Cin * C1, transcendentals=0,
            bytes_accessed=isz * (M * Cin + Cin * C1 + M * C1)),
    )(x2d, w1c)
    scale1, shift1 = _bn_fold(st1, M, g1, b1)

    # ---- stage 2: BN1+ReLU fused into conv2 (3x3) + BN2 partial stats -----
    h2, st2 = pl.pallas_call(
        functools.partial(_bn_relu_conv3x3_stats_kernel,
                          width=W, band_rows=band_rows, n_bands=n_bands),
        grid=(N, n_bands),
        in_specs=[
            # Whole image stays VMEM-resident while its bands are processed.
            pl.BlockSpec((H * W, C1), lambda n, t: (n, 0)),
            pl.BlockSpec((3, 3 * C1, C1), lambda n, t: (0, 0, 0)),
            pl.BlockSpec((1, C1), lambda n, t: (0, 0)),
            pl.BlockSpec((1, C1), lambda n, t: (0, 0)),
            pl.BlockSpec((band_rows, 1), lambda n, t: (0, 0)),
            pl.BlockSpec((band_rows, 1), lambda n, t: (0, 0)),
        ],
        out_specs=[
            pl.BlockSpec((band_rows, C1), lambda n, t: (n * n_bands + t, 0)),
            pl.BlockSpec((1, 1, 2 * C1), lambda n, t: (n * n_bands + t, 0, 0)),
        ],
        out_shape=[
            jax.ShapeDtypeStruct((M, C1), cdt),
            jax.ShapeDtypeStruct((N * n_bands, 1, 2 * C1), f32),
        ],
        scratch_shapes=[pltpu.VMEM((band_rows + 2 * W, 3 * C1), cdt)],
        compiler_params=par2,
        cost_estimate=pl.CostEstimate(
            flops=2 * M * 9 * C1 * C1, transcendentals=0,
            bytes_accessed=isz * (2 * M * C1 + 9 * C1 * C1)),
    )(h1, w2c, scale1, shift1, m_left, m_right)
    scale2, shift2 = _bn_fold(st2, M, g2, b2)

    # ---- stage 3: BN2+ReLU fused into conv3 (1x1) + BN3 partial stats -----
    h3, st3 = pl.pallas_call(
        _bn_relu_conv1x1_stats_kernel,
        grid=(n_t,),
        in_specs=[
            pl.BlockSpec((tm, C1), lambda i: (i, 0)),
            pl.BlockSpec((1, C1), lambda i: (0, 0)),
            pl.BlockSpec((1, C1), lambda i: (0, 0)),
            pl.BlockSpec((C1, C4), lambda i: (0, 0)),
        ],
        out_specs=[
            pl.BlockSpec((tm, C4), lambda i: (i, 0)),
            pl.BlockSpec((1, 1, 2 * C4), lambda i: (i, 0, 0)),
        ],
        out_shape=[
            jax.ShapeDtypeStruct((M, C4), cdt),
            jax.ShapeDtypeStruct((n_t, 1, 2 * C4), f32),
        ],
        compiler_params=par1,
        cost_estimate=pl.CostEstimate(
            flops=2 * M * C1 * C4, transcendentals=0,
            bytes_accessed=isz * (M * C1 + C1 * C4 + M * C4)),
    )(h2, scale2, shift2, w3c)
    scale3, shift3 = _bn_fold(st3, M, g3, b3)

    # ---- stage 4: BN3 + residual add + final ReLU --------------------------
    out2d = pl.pallas_call(
        _bn_add_relu_kernel,
        grid=(n_t,),
        in_specs=[
            pl.BlockSpec((tm, C4), lambda i: (i, 0)),
            pl.BlockSpec((tm, C4), lambda i: (i, 0)),   # residual, compute dtype
            pl.BlockSpec((1, C4), lambda i: (0, 0)),
            pl.BlockSpec((1, C4), lambda i: (0, 0)),
        ],
        out_specs=pl.BlockSpec((tm, C4), lambda i: (i, 0)),
        out_shape=jax.ShapeDtypeStruct((M, C4), f32),
        compiler_params=par1,
    )(h3, x2d, scale3, shift3)

    return jnp.transpose(out2d.reshape(N, H, W, C4), (0, 3, 1, 2))


# ---------------------------------------------------------------------------
# Pure-JAX f32 reference (matches the PyTorch module's forward, train-mode BN)
# ---------------------------------------------------------------------------
def reference_forward(x, w1_oihw, g1, b1, w2_oihw, g2, b2, w3_oihw, g3, b3):
    def bn(h, g, b):
        mean = h.mean(axis=(0, 2, 3), keepdims=True)
        var = ((h - mean) ** 2).mean(axis=(0, 2, 3), keepdims=True)
        return ((h - mean) * jax.lax.rsqrt(var + EPS)
                * g.reshape(1, -1, 1, 1) + b.reshape(1, -1, 1, 1))

    def conv(x, w, pad):
        return jax.lax.conv_general_dilated(
            x, w, (1, 1), pad, dimension_numbers=("NCHW", "OIHW", "NCHW"))

    out = jax.nn.relu(bn(conv(x, w1_oihw, "VALID"), g1, b1))
    out = jax.nn.relu(bn(conv(out, w2_oihw, ((1, 1), (1, 1))), g2, b2))
    out = bn(conv(out, w3_oihw, "VALID"), g3, b3)
    return jax.nn.relu(out + x)


if __name__ == "__main__":
    # Bottleneck(inp=256, oup=64): expansion=4 so out channels == inp and the
    # identity residual is valid (lane-dense 256-wide residual/output);
    # spatial kept small for speed.
    N, H, W = 2, 16, 16
    oup = 64
    inp = oup * 4                 # 256
    C1, C4 = oup, oup * 4

    key = jax.random.PRNGKey(0)
    keys = jax.random.split(key, 10)
    x = jax.random.normal(keys[0], (N, inp, H, W), dtype=jnp.float32)

    # Parameters in PyTorch (OIHW) convention, deterministic init.
    w1_oihw = 0.1 * jax.random.normal(keys[1], (C1, inp, 1, 1), jnp.float32)
    w2_oihw = 0.1 * jax.random.normal(keys[2], (C1, C1, 3, 3), jnp.float32)
    w3_oihw = 0.1 * jax.random.normal(keys[3], (C4, C1, 1, 1), jnp.float32)
    g1 = 1.0 + 0.1 * jax.random.normal(keys[4], (C1,), jnp.float32)
    b1 = 0.1 * jax.random.normal(keys[5], (C1,), jnp.float32)
    g2 = 1.0 + 0.1 * jax.random.normal(keys[6], (C1,), jnp.float32)
    b2 = 0.1 * jax.random.normal(keys[7], (C1,), jnp.float32)
    g3 = 1.0 + 0.1 * jax.random.normal(keys[8], (C4,), jnp.float32)
    b3 = 0.1 * jax.random.normal(keys[9], (C4,), jnp.float32)

    # Kernel-side weight layouts.
    w1 = jnp.transpose(w1_oihw[:, :, 0, 0], (1, 0))      # (Cin, C1)
    w2 = jnp.transpose(w2_oihw, (2, 3, 1, 0))            # (3, 3, C1_in, C1_out)
    w3 = jnp.transpose(w3_oihw[:, :, 0, 0], (1, 0))      # (C1, C4)
    params = (w1, w2, w3, g1, b1, g2, b2, g3, b3)

    ref = jax.block_until_ready(reference_forward(
        x, w1_oihw, g1, b1, w2_oihw, g2, b2, w3_oihw, g3, b3))

    # f32 MXU path: tight check against the f32 reference.
    out_f32 = jax.block_until_ready(
        bottleneck_forward(x, params, compute_dtype=jnp.float32, tile_m=512))
    assert out_f32.shape == (N, C4, H, W)
    assert jnp.allclose(out_f32, ref, atol=1e-3, rtol=1e-3), (
        float(jnp.max(jnp.abs(out_f32 - ref))))

    # bf16 MXU path (f32 accumulation, f32 BN math, bf16 residual): looser
    # tolerance since bf16 operands introduce ~1e-2-level deviations.
    out_bf16 = jax.block_until_ready(
        bottleneck_forward(x, params, compute_dtype=jnp.bfloat16, tile_m=512))
    assert out_bf16.shape == (N, C4, H, W)
    assert jnp.allclose(out_bf16, ref, atol=1e-1, rtol=5e-2), (
        float(jnp.max(jnp.abs(out_bf16 - ref))))

    print("KERNEL_OK")
</pallas_src>

<mosaic_0001>
module attributes {stable_mosaic.version = 11 : i64} {
  func.func @_conv1x1_stats_kernel(%arg0: i32, %arg1: memref<512x256xf32, #tpu.memory_space<vmem>>, %arg2: memref<256x64xf32, #tpu.memory_space<vmem>>, %arg3: memref<512x64xf32, #tpu.memory_space<vmem>>, %arg4: memref<1x1x128xf32, #tpu.memory_space<vmem>>) attributes {dimension_semantics = [#tpu.dimension_semantics<parallel>], iteration_bounds = array<i64: 1>, scalar_prefetch = 0 : i64, scratch_operands = 0 : i64, tpu.core_type = #tpu.core_type<tc>, window_params = [{transform_indices = @transform_0, window_bounds = array<i64: 512, 256>}, {pipeline_mode = #tpu.pipeline_mode<synchronous>, transform_indices = @transform_1, window_bounds = array<i64: 256, 64>}, {transform_indices = @transform_2, window_bounds = array<i64: 512, 64>}, {transform_indices = @transform_3, window_bounds = array<i64: 1, 1, 128>}]} {
    %c0 = arith.constant 0 : index
    %c0_0 = arith.constant 0 : index
    %0 = vector.load %arg1[%c0, %c0_0] : memref<512x256xf32, #tpu.memory_space<vmem>>, vector<512x256xf32>
    %c0_1 = arith.constant 0 : index
    %c0_2 = arith.constant 0 : index
    %1 = vector.load %arg2[%c0_1, %c0_2] : memref<256x64xf32, #tpu.memory_space<vmem>>, vector<256x64xf32>
    %cst = arith.constant dense<0.000000e+00> : vector<512x64xf32>
    %2 = tpu.matmul %0, %1, %cst {dimension_numbers = #tpu.dot_dimension_numbers<[1], [0], [0], [1], [0, 0, 1, 1], [], []>} : vector<512x256xf32>, vector<256x64xf32>, vector<512x64xf32> -> vector<512x64xf32>
    %c0_3 = arith.constant 0 : index
    %c0_4 = arith.constant 0 : index
    %3 = vector.load %arg3[%c0_3, %c0_4] : memref<512x64xf32, #tpu.memory_space<vmem>>, vector<512x64xf32>
    tpu.vector_store %arg3[%c0_3, %c0_4], %2 {strides = array<i32>} : memref<512x64xf32, #tpu.memory_space<vmem>>, vector<512x64xf32>,
    %cst_5 = arith.constant dense<0.000000e+00> : vector<64xf32>
    %4 = vector.multi_reduction <add>, %2, %cst_5 [0] : vector<512x64xf32> to vector<64xf32>
    %5 = vector.shape_cast %4 : vector<64xf32> to vector<1x64xf32>
    %6 = arith.mulf %2, %2 : vector<512x64xf32>
    %cst_6 = arith.constant dense<0.000000e+00> : vector<64xf32>
    %7 = vector.multi_reduction <add>, %6, %cst_6 [0] : vector<512x64xf32> to vector<64xf32>
    %8 = vector.shape_cast %7 : vector<64xf32> to vector<1x64xf32>
    %9 = tpu.concatenate %5, %8 in 1 : vector<1x64xf32>, vector<1x64xf32> -> vector<1x128xf32>
    %c0_7 = arith.constant 0 : index
    %c0_8 = arith.constant 0 : index
    %c0_9 = arith.constant 0 : index
    %10 = vector.load %arg4[%c0_7, %c0_8, %c0_9] : memref<1x1x128xf32, #tpu.memory_space<vmem>>, vector<1x1x128xf32>
    %11 = vector.shape_cast %10 : vector<1x1x128xf32> to vector<1x128xf32>
    %12 = vector.shape_cast %9 : vector<1x128xf32> to vector<1x1x128xf32>
    tpu.vector_store %arg4[%c0_7, %c0_8, %c0_9], %12 {strides = array<i32>} : memref<1x1x128xf32, #tpu.memory_space<vmem>>, vector<1x1x128xf32>,
    return
  }
  func.func @transform_0(%arg0: i32) -> (i32, i32) {
    %c0_i32 = arith.constant 0 : i32
    %c0_i32_0 = arith.constant 0 : i32
    return %arg0, %c0_i32 : i32, i32
  }
  func.func @transform_1(%arg0: i32) -> (i32, i32) {
    %c0_i32 = arith.constant 0 : i32
    %c0_i32_0 = arith.constant 0 : i32
    %c0_i32_1 = arith.constant 0 : i32
    return %c0_i32, %c0_i32_0 : i32, i32
  }
  func.func @transform_2(%arg0: i32) -> (i32, i32) {
    %c0_i32 = arith.constant 0 : i32
    %c0_i32_0 = arith.constant 0 : i32
    return %arg0, %c0_i32 : i32, i32
  }
  func.func @transform_3(%arg0: i32) -> (i32, i32, i32) {
    %c0_i32 = arith.constant 0 : i32
    %c0_i32_0 = arith.constant 0 : i32
    %c0_i32_1 = arith.constant 0 : i32
    return %arg0, %c0_i32, %c0_i32_0 : i32, i32, i32
  }
}

module attributes {stable_mosaic.version = 11 : i64} {
  func.func @_bn_add_relu_kernel(%arg0: i32, %arg1: memref<512x256xf32, #tpu.memory_space<vmem>>, %arg2: memref<512x256xf32, #tpu.memory_space<vmem>>, %arg3: memref<1x256xf32, #tpu.memory_space<vmem>>, %arg4: memref<1x256xf32, #tpu.memory_space<vmem>>, %arg5: memref<512x256xf32, #tpu.memory_space<vmem>>) attributes {dimension_semantics = [#tpu.dimension_semantics<parallel>], iteration_bounds = array<i64: 1>, scalar_prefetch = 0 : i64, scratch_operands = 0 : i64, tpu.core_type = #tpu.core_type<tc>, window_params = [{transform_indices = @transform_0, window_bounds = array<i64: 512, 256>}, {transform_indices = @transform_1, window_bounds = array<i64: 512, 256>}, {pipeline_mode = #tpu.pipeline_mode<synchronous>, transform_indices = @transform_2, window_bounds = array<i64: 1, 256>}, {pipeline_mode = #tpu.pipeline_mode<synchronous>, transform_indices = @transform_3, window_bounds = array<i64: 1, 256>}, {transform_indices = @transform_4, window_bounds = array<i64: 512, 256>}]} {
    %c0 = arith.constant 0 : index
    %c0_0 = arith.constant 0 : index
    %0 = vector.load %arg1[%c0, %c0_0] : memref<512x256xf32, #tpu.memory_space<vmem>>, vector<512x256xf32>
    %c0_1 = arith.constant 0 : index
    %c0_2 = arith.constant 0 : index
    %1 = vector.load %arg3[%c0_1, %c0_2] : memref<1x256xf32, #tpu.memory_space<vmem>>, vector<1x256xf32>
    %2 = vector.broadcast %1 : vector<1x256xf32> to vector<512x256xf32>
    %3 = arith.mulf %0, %2 : vector<512x256xf32>
    %c0_3 = arith.constant 0 : index
    %c0_4 = arith.constant 0 : index
    %4 = vector.load %arg4[%c0_3, %c0_4] : memref<1x256xf32, #tpu.memory_space<vmem>>, vector<1x256xf32>
    %5 = vector.broadcast %4 : vector<1x256xf32> to vector<512x256xf32>
    %6 = arith.addf %3, %5 : vector<512x256xf32>
    %c0_5 = arith.constant 0 : index
    %c0_6 = arith.constant 0 : index
    %7 = vector.load %arg2[%c0_5, %c0_6] : memref<512x256xf32, #tpu.memory_space<vmem>>, vector<512x256xf32>
    %8 = arith.addf %6, %7 : vector<512x256xf32>
    %cst = arith.constant 0.000000e+00 : f32
    %9 = vector.broadcast %cst : f32 to vector<512x256xf32>
    %10 = arith.maximumf %8, %9 : vector<512x256xf32>
    %c0_7 = arith.constant 0 : index
    %c0_8 = arith.constant 0 : index
    %11 = vector.load %arg5[%c0_7, %c0_8] : memref<512x256xf32, #tpu.memory_space<vmem>>, vector<512x256xf32>
    tpu.vector_store %arg5[%c0_7, %c0_8], %10 {strides = array<i32>} : memref<512x256xf32, #tpu.memory_space<vmem>>, vector<512x256xf32>,
    return
  }
  func.func @transform_0(%arg0: i32) -> (i32, i32) {
    %c0_i32 = arith.constant 0 : i32
    %c0_i32_0 = arith.constant 0 : i32
    return %arg0, %c0_i32 : i32, i32
  }
  func.func @transform_1(%arg0: i32) -> (i32, i32) {
    %c0_i32 = arith.constant 0 : i32
    %c0_i32_0 = arith.constant 0 : i32
    return %arg0, %c0_i32 : i32, i32
  }
  func.func @transform_2(%arg0: i32) -> (i32, i32) {
    %c0_i32 = arith.constant 0 : i32
    %c0_i32_0 = arith.constant 0 : i32
    %c0_i32_1 = arith.constant 0 : i32
    return %c0_i32, %c0_i32_0 : i32, i32
  }
  func.func @transform_3(%arg0: i32) -> (i32, i32) {
    %c0_i32 = arith.constant 0 : i32
    %c0_i32_0 = arith.constant 0 : i32
    %c0_i32_1 = arith.constant 0 : i32
    return %c0_i32, %c0_i32_0 : i32, i32
  }
  func.func @transform_4(%arg0: i32) -> (i32, i32) {
    %c0_i32 = arith.constant 0 : i32
    %c0_i32_0 = arith.constant 0 : i32
    return %arg0, %c0_i32 : i32, i32
  }
}

module attributes {stable_mosaic.version = 11 : i64} {
  func.func @_bn_relu_conv3x3_stats_kernel(%arg0: i32, %arg1: i32, %arg2: memref<256x64xf32, #tpu.memory_space<vmem>>, %arg3: memref<3x192x64xf32, #tpu.memory_space<vmem>>, %arg4: memref<1x64xf32, #tpu.memory_space<vmem>>, %arg5: memref<1x64xf32, #tpu.memory_space<vmem>>, %arg6: memref<128x1xf32, #tpu.memory_space<vmem>>, %arg7: memref<128x1xf32, #tpu.memory_space<vmem>>, %arg8: memref<128x64xf32, #tpu.memory_space<vmem>>, %arg9: memref<1x1x128xf32, #tpu.memory_space<vmem>>, %arg10: memref<160x192xf32, #tpu.memory_space<vmem>>) attributes {dimension_semantics = [#tpu.dimension_semantics<parallel>, #tpu.dimension_semantics<parallel>], iteration_bounds = array<i64: 2, 2>, scalar_prefetch = 0 : i64, scratch_operands = 1 : i64, tpu.core_type = #tpu.core_type<tc>, window_params = [{transform_indices = @transform_0, window_bounds = array<i64: 256, 64>}, {pipeline_mode = #tpu.pipeline_mode<synchronous>, transform_indices = @transform_1, window_bounds = array<i64: 3, 192, 64>}, {pipeline_mode = #tpu.pipeline_mode<synchronous>, transform_indices = @transform_2, window_bounds = array<i64: 1, 64>}, {pipeline_mode = #tpu.pipeline_mode<synchronous>, transform_indices = @transform_3, window_bounds = array<i64: 1, 64>}, {pipeline_mode = #tpu.pipeline_mode<synchronous>, transform_indices = @transform_4, window_bounds = array<i64: 128, 1>}, {pipeline_mode = #tpu.pipeline_mode<synchronous>, transform_indices = @transform_5, window_bounds = array<i64: 128, 1>}, {transform_indices = @transform_6, window_bounds = array<i64: 128, 64>}, {transform_indices = @transform_7, window_bounds = array<i64: 1, 1, 128>}]} {
    %c128_i32 = arith.constant 128 : i32
    %0 = arith.muli %arg1, %c128_i32 : i32
    %1 = tpu.assume_multiple %0, 8 : i32
    %2 = arith.index_cast %1 : i32 to index
    %c0 = arith.constant 0 : index
    %3 = vector.load %arg2[%2, %c0] : memref<256x64xf32, #tpu.memory_space<vmem>>, vector<128x64xf32>
    %c0_0 = arith.constant 0 : index
    %c0_1 = arith.constant 0 : index
    %4 = vector.load %arg4[%c0_0, %c0_1] : memref<1x64xf32, #tpu.memory_space<vmem>>, vector<1x64xf32>
    %5 = vector.broadcast %4 : vector<1x64xf32> to vector<128x64xf32>
    %6 = arith.mulf %3, %5 : vector<128x64xf32>
    %c0_2 = arith.constant 0 : index
    %c0_3 = arith.constant 0 : index
    %7 = vector.load %arg5[%c0_2, %c0_3] : memref<1x64xf32, #tpu.memory_space<vmem>>, vector<1x64xf32>
    %8 = vector.broadcast %7 : vector<1x64xf32> to vector<128x64xf32>
    %9 = arith.addf %6, %8 : vector<128x64xf32>
    %cst = arith.constant 0.000000e+00 : f32
    %10 = vector.broadcast %cst : f32 to vector<128x64xf32>
    %11 = arith.maximumf %9, %10 : vector<128x64xf32>
    %c0_4 = arith.constant 0 : index
    %c0_5 = arith.constant 0 : index
    %12 = vector.load %arg6[%c0_4, %c0_5] : memref<128x1xf32, #tpu.memory_space<vmem>>, vector<128x1xf32>
    %c0_6 = arith.constant 0 : index
    %c0_7 = arith.constant 0 : index
    %13 = vector.load %arg7[%c0_6, %c0_7] : memref<128x1xf32, #tpu.memory_space<vmem>>, vector<128x1xf32>
    %14 = vector.extract_strided_slice %11 {offsets = [127, 0], sizes = [1, 64], strides = [1, 1]} : vector<128x64xf32> to vector<1x64xf32>
    %15 = vector.extract_strided_slice %11 {offsets = [0, 0], sizes = [127, 64], strides = [1, 1]} : vector<128x64xf32> to vector<127x64xf32>
    %16 = tpu.concatenate %14, %15 in 0 : vector<1x64xf32>, vector<127x64xf32> -> vector<128x64xf32>
    %17 = vector.broadcast %12 : vector<128x1xf32> to vector<128x64xf32>
    %18 = arith.mulf %16, %17 : vector<128x64xf32>
    %19 = vector.extract_strided_slice %11 {offsets = [1, 0], sizes = [127, 64], strides = [1, 1]} : vector<128x64xf32> to vector<127x64xf32>
    %20 = vector.extract_strided_slice %11 {offsets = [0, 0], sizes = [1, 64], strides = [1, 1]} : vector<128x64xf32> to vector<1x64xf32>
    %21 = tpu.concatenate %19, %20 in 0 : vector<127x64xf32>, vector<1x64xf32> -> vector<128x64xf32>
    %22 = vector.broadcast %13 : vector<128x1xf32> to vector<128x64xf32>
    %23 = arith.mulf %21, %22 : vector<128x64xf32>
    %24 = tpu.concatenate %18, %11, %23 in 1 : vector<128x64xf32>, vector<128x64xf32>, vector<128x64xf32> -> vector<128x192xf32>
    %c16 = arith.constant 16 : index
    %c0_8 = arith.constant 0 : index
    %25 = vector.load %arg10[%c16, %c0_8] : memref<160x192xf32, #tpu.memory_space<vmem>>, vector<128x192xf32>
    tpu.vector_store %arg10[%c16, %c0_8], %24 {strides = array<i32>} : memref<160x192xf32, #tpu.memory_space<vmem>>, vector<128x192xf32>,
    %c0_i32 = arith.constant 0 : i32
    %26 = arith.cmpi eq, %arg1, %c0_i32 : i32
    %27 = arith.extui %26 : i1 to i32
    %c0_i32_9 = arith.constant 0 : i32
    %28 = arith.cmpi ne, %27, %c0_i32_9 : i32
    scf.if %28 {
      %cst_37 = arith.constant 0.000000e+00 : f32
      %62 = vector.broadcast %cst_37 : f32 to vector<16x192xf32>
      %c0_38 = arith.constant 0 : index
      %c0_39 = arith.constant 0 : index
      %63 = vector.load %arg10[%c0_38, %c0_39] : memref<160x192xf32, #tpu.memory_space<vmem>>, vector<16x192xf32>
      tpu.vector_store %arg10[%c0_38, %c0_39], %62 {strides = array<i32>} : memref<160x192xf32, #tpu.memory_space<vmem>>, vector<16x192xf32>,
    } else {
    }
    %c0_i32_10 = arith.constant 0 : i32
    %29 = arith.cmpi sgt, %arg1, %c0_i32_10 : i32
    %30 = arith.extui %29 : i1 to i32
    %c0_i32_11 = arith.constant 0 : i32
    %31 = arith.cmpi ne, %30, %c0_i32_11 : i32
    scf.if %31 {
      %c16_i32 = arith.constant 16 : i32
      %62 = arith.subi %1, %c16_i32 : i32
      %63 = tpu.assume_multiple %62, 8 : i32
      %64 = arith.index_cast %63 : i32 to index
      %c0_37 = arith.constant 0 : index
      %65 = vector.load %arg2[%64, %c0_37] : memref<256x64xf32, #tpu.memory_space<vmem>>, vector<16x64xf32>
      %c0_38 = arith.constant 0 : index
      %c0_39 = arith.constant 0 : index
      %66 = vector.load %arg4[%c0_38, %c0_39] : memref<1x64xf32, #tpu.memory_space<vmem>>, vector<1x64xf32>
      %67 = vector.broadcast %66 : vector<1x64xf32> to vector<16x64xf32>
      %68 = arith.mulf %65, %67 : vector<16x64xf32>
      %c0_40 = arith.constant 0 : index
      %c0_41 = arith.constant 0 : index
      %69 = vector.load %arg5[%c0_40, %c0_41] : memref<1x64xf32, #tpu.memory_space<vmem>>, vector<1x64xf32>
      %70 = vector.broadcast %69 : vector<1x64xf32> to vector<16x64xf32>
      %71 = arith.addf %68, %70 : vector<16x64xf32>
      %cst_42 = arith.constant 0.000000e+00 : f32
      %72 = vector.broadcast %cst_42 : f32 to vector<16x64xf32>
      %73 = arith.maximumf %71, %72 : vector<16x64xf32>
      %c0_43 = arith.constant 0 : index
      %c0_44 = arith.constant 0 : index
      %74 = vector.load %arg6[%c0_43, %c0_44] : memref<128x1xf32, #tpu.memory_space<vmem>>, vector<16x1xf32>
      %c0_45 = arith.constant 0 : index
      %c0_46 = arith.constant 0 : index
      %75 = vector.load %arg7[%c0_45, %c0_46] : memref<128x1xf32, #tpu.memory_space<vmem>>, vector<16x1xf32>
      %76 = vector.extract_strided_slice %73 {offsets = [15, 0], sizes = [1, 64], strides = [1, 1]} : vector<16x64xf32> to vector<1x64xf32>
      %77 = vector.extract_strided_slice %73 {offsets = [0, 0], sizes = [15, 64], strides = [1, 1]} : vector<16x64xf32> to vector<15x64xf32>
      %78 = tpu.concatenate %76, %77 in 0 : vector<1x64xf32>, vector<15x64xf32> -> vector<16x64xf32>
      %79 = vector.broadcast %74 : vector<16x1xf32> to vector<16x64xf32>
      %80 = arith.mulf %78, %79 : vector<16x64xf32>
      %81 = vector.extract_strided_slice %73 {offsets = [1, 0], sizes = [15, 64], strides = [1, 1]} : vector<16x64xf32> to vector<15x64xf32>
      %82 = vector.extract_strided_slice %73 {offsets = [0, 0], sizes = [1, 64], strides = [1, 1]} : vector<16x64xf32> to vector<1x64xf32>
      %83 = tpu.concatenate %81, %82 in 0 : vector<15x64xf32>, vector<1x64xf32> -> vector<16x64xf32>
      %84 = vector.broadcast %75 : vector<16x1xf32> to vector<16x64xf32>
      %85 = arith.mulf %83, %84 : vector<16x64xf32>
      %86 = tpu.concatenate %80, %73, %85 in 1 : vector<16x64xf32>, vector<16x64xf32>, vector<16x64xf32> -> vector<16x192xf32>
      %c0_47 = arith.constant 0 : index
      %c0_48 = arith.constant 0 : index
      %87 = vector.load %arg10[%c0_47, %c0_48] : memref<160x192xf32, #tpu.memory_space<vmem>>, vector<16x192xf32>
      tpu.vector_store %arg10[%c0_47, %c0_48], %86 {strides = array<i32>} : memref<160x192xf32, #tpu.memory_space<vmem>>, vector<16x192xf32>,
    } else {
    }
    %c1_i32 = arith.constant 1 : i32
    %32 = arith.cmpi eq, %arg1, %c1_i32 : i32
    %33 = arith.extui %32 : i1 to i32
    %c0_i32_12 = arith.constant 0 : i32
    %34 = arith.cmpi ne, %33, %c0_i32_12 : i32
    scf.if %34 {
      %cst_37 = arith.constant 0.000000e+00 : f32
      %62 = vector.broadcast %cst_37 : f32 to vector<16x192xf32>
      %c144 = arith.constant 144 : index
      %c0_38 = arith.constant 0 : index
      %63 = vector.load %arg10[%c144, %c0_38] : memref<160x192xf32, #tpu.memory_space<vmem>>, vector<16x192xf32>
      tpu.vector_store %arg10[%c144, %c0_38], %62 {strides = array<i32>} : memref<160x192xf32, #tpu.memory_space<vmem>>, vector<16x192xf32>,
    } else {
    }
    %c1_i32_13 = arith.constant 1 : i32
    %35 = arith.cmpi slt, %arg1, %c1_i32_13 : i32
    %36 = arith.extui %35 : i1 to i32
    %c0_i32_14 = arith.constant 0 : i32
    %37 = arith.cmpi ne, %36, %c0_i32_14 : i32
    scf.if %37 {
      %c128_i32_37 = arith.constant 128 : i32
      %62 = arith.addi %1, %c128_i32_37 : i32
      %63 = tpu.assume_multiple %62, 8 : i32
      %64 = arith.index_cast %63 : i32 to index
      %c0_38 = arith.constant 0 : index
      %65 = vector.load %arg2[%64, %c0_38] : memref<256x64xf32, #tpu.memory_space<vmem>>, vector<16x64xf32>
      %c0_39 = arith.constant 0 : index
      %c0_40 = arith.constant 0 : index
      %66 = vector.load %arg4[%c0_39, %c0_40] : memref<1x64xf32, #tpu.memory_space<vmem>>, vector<1x64xf32>
      %67 = vector.broadcast %66 : vector<1x64xf32> to vector<16x64xf32>
      %68 = arith.mulf %65, %67 : vector<16x64xf32>
      %c0_41 = arith.constant 0 : index
      %c0_42 = arith.constant 0 : index
      %69 = vector.load %arg5[%c0_41, %c0_42] : memref<1x64xf32, #tpu.memory_space<vmem>>, vector<1x64xf32>
      %70 = vector.broadcast %69 : vector<1x64xf32> to vector<16x64xf32>
      %71 = arith.addf %68, %70 : vector<16x64xf32>
      %cst_43 = arith.constant 0.000000e+00 : f32
      %72 = vector.broadcast %cst_43 : f32 to vector<16x64xf32>
      %73 = arith.maximumf %71, %72 : vector<16x64xf32>
      %c0_44 = arith.constant 0 : index
      %c0_45 = arith.constant 0 : index
      %74 = vector.load %arg6[%c0_44, %c0_45] : memref<128x1xf32, #tpu.memory_space<vmem>>, vector<16x1xf32>
      %c0_46 = arith.constant 0 : index
      %c0_47 = arith.constant 0 : index
      %75 = vector.load %arg7[%c0_46, %c0_47] : memref<128x1xf32, #tpu.memory_space<vmem>>, vector<16x1xf32>
      %76 = vector.extract_strided_slice %73 {offsets = [15, 0], sizes = [1, 64], strides = [1, 1]} : vector<16x64xf32> to vector<1x64xf32>
      %77 = vector.extract_strided_slice %73 {offsets = [0, 0], sizes = [15, 64], strides = [1, 1]} : vector<16x64xf32> to vector<15x64xf32>
      %78 = tpu.concatenate %76, %77 in 0 : vector<1x64xf32>, vector<15x64xf32> -> vector<16x64xf32>
      %79 = vector.broadcast %74 : vector<16x1xf32> to vector<16x64xf32>
      %80 = arith.mulf %78, %79 : vector<16x64xf32>
      %81 = vector.extract_strided_slice %73 {offsets = [1, 0], sizes = [15, 64], strides = [1, 1]} : vector<16x64xf32> to vector<15x64xf32>
      %82 = vector.extract_strided_slice %73 {offsets = [0, 0], sizes = [1, 64], strides = [1, 1]} : vector<16x64xf32> to vector<1x64xf32>
      %83 = tpu.concatenate %81, %82 in 0 : vector<15x64xf32>, vector<1x64xf32> -> vector<16x64xf32>
      %84 = vector.broadcast %75 : vector<16x1xf32> to vector<16x64xf32>
      %85 = arith.mulf %83, %84 : vector<16x64xf32>
      %86 = tpu.concatenate %80, %73, %85 in 1 : vector<16x64xf32>, vector<16x64xf32>, vector<16x64xf32> -> vector<16x192xf32>
      %c144 = arith.constant 144 : index
      %c0_48 = arith.constant 0 : index
      %87 = vector.load %arg10[%c144, %c0_48] : memref<160x192xf32, #tpu.memory_space<vmem>>, vector<16x192xf32>
      tpu.vector_store %arg10[%c144, %c0_48], %86 {strides = array<i32>} : memref<160x192xf32, #tpu.memory_space<vmem>>, vector<16x192xf32>,
    } else {
    }
    %c0_15 = arith.constant 0 : index
    %c0_16 = arith.constant 0 : index
    %38 = vector.load %arg10[%c0_15, %c0_16] : memref<160x192xf32, #tpu.memory_space<vmem>>, vector<128x192xf32>
    %c0_17 = arith.constant 0 : index
    %c0_18 = arith.constant 0 : index
    %c0_19 = arith.constant 0 : index
    %39 = vector.load %arg3[%c0_17, %c0_18, %c0_19] : memref<3x192x64xf32, #tpu.memory_space<vmem>>, vector<1x192x64xf32>
    %40 = vector.shape_cast %39 : vector<1x192x64xf32> to vector<192x64xf32>
    %cst_20 = arith.constant dense<0.000000e+00> : vector<128x64xf32>
    %41 = tpu.matmul %38, %40, %cst_20 {dimension_numbers = #tpu.dot_dimension_numbers<[1], [0], [0], [1], [0, 0, 1, 1], [], []>} : vector<128x192xf32>, vector<192x64xf32>, vector<128x64xf32> -> vector<128x64xf32>
    %c16_21 = arith.constant 16 : index
    %c0_22 = arith.constant 0 : index
    %42 = vector.load %arg10[%c16_21, %c0_22] : memref<160x192xf32, #tpu.memory_space<vmem>>, vector<128x192xf32>
    %c1 = arith.constant 1 : index
    %c0_23 = arith.constant 0 : index
    %c0_24 = arith.constant 0 : index
    %43 = vector.load %arg3[%c1, %c0_23, %c0_24] : memref<3x192x64xf32, #tpu.memory_space<vmem>>, vector<1x192x64xf32>
    %44 = vector.shape_cast %43 : vector<1x192x64xf32> to vector<192x64xf32>
    %cst_25 = arith.constant dense<0.000000e+00> : vector<128x64xf32>
    %45 = tpu.matmul %42, %44, %cst_25 {dimension_numbers = #tpu.dot_dimension_numbers<[1], [0], [0], [1], [0, 0, 1, 1], [], []>} : vector<128x192xf32>, vector<192x64xf32>, vector<128x64xf32> -> vector<128x64xf32>
    %46 = arith.addf %41, %45 : vector<128x64xf32>
    %c32 = arith.constant 32 : index
    %c0_26 = arith.constant 0 : index
    %47 = vector.load %arg10[%c32, %c0_26] : memref<160x192xf32, #tpu.memory_space<vmem>>, vector<128x192xf32>
    %c2 = arith.constant 2 : index
    %c0_27 = arith.constant 0 : index
    %c0_28 = arith.constant 0 : index
    %48 = vector.load %arg3[%c2, %c0_27, %c0_28] : memref<3x192x64xf32, #tpu.memory_space<vmem>>, vector<1x192x64xf32>
    %49 = vector.shape_cast %48 : vector<1x192x64xf32> to vector<192x64xf32>
    %cst_29 = arith.constant dense<0.000000e+00> : vector<128x64xf32>
    %50 = tpu.matmul %47, %49, %cst_29 {dimension_numbers = #tpu.dot_dimension_numbers<[1], [0], [0], [1], [0, 0, 1, 1], [], []>} : vector<128x192xf32>, vector<192x64xf32>, vector<128x64xf32> -> vector<128x64xf32>
    %51 = arith.addf %46, %50 : vector<128x64xf32>
    %c0_30 = arith.constant 0 : index
    %c0_31 = arith.constant 0 : index
    %52 = vector.load %arg8[%c0_30, %c0_31] : memref<128x64xf32, #tpu.memory_space<vmem>>, vector<128x64xf32>
    tpu.vector_store %arg8[%c0_30, %c0_31], %51 {strides = array<i32>} : memref<128x64xf32, #tpu.memory_space<vmem>>, vector<128x64xf32>,
    %cst_32 = arith.constant dense<0.000000e+00> : vector<64xf32>
    %53 = vector.multi_reduction <add>, %51, %cst_32 [0] : vector<128x64xf32> to vector<64xf32>
    %54 = vector.shape_cast %53 : vector<64xf32> to vector<1x64xf32>
    %55 = arith.mulf %51, %51 : vector<128x64xf32>
    %cst_33 = arith.constant dense<0.000000e+00> : vector<64xf32>
    %56 = vector.multi_reduction <add>, %55, %cst_33 [0] : vector<128x64xf32> to vector<64xf32>
    %57 = vector.shape_cast %56 : vector<64xf32> to vector<1x64xf32>
    %58 = tpu.concatenate %54, %57 in 1 : vector<1x64xf32>, vector<1x64xf32> -> vector<1x128xf32>
    %c0_34 = arith.constant 0 : index
    %c0_35 = arith.constant 0 : index
    %c0_36 = arith.constant 0 : index
    %59 = vector.load %arg9[%c0_34, %c0_35, %c0_36] : memref<1x1x128xf32, #tpu.memory_space<vmem>>, vector<1x1x128xf32>
    %60 = vector.shape_cast %59 : vector<1x1x128xf32> to vector<1x128xf32>
    %61 = vector.shape_cast %58 : vector<1x128xf32> to vector<1x1x128xf32>
    tpu.vector_store %arg9[%c0_34, %c0_35, %c0_36], %61 {strides = array<i32>} : memref<1x1x128xf32, #tpu.memory_space<vmem>>, vector<1x1x128xf32>,
    return
  }
  func.func @transform_0(%arg0: i32, %arg1: i32) -> (i32, i32) {
    %c0_i32 = arith.constant 0 : i32
    %c0_i32_0 = arith.constant 0 : i32
    return %arg0, %c0_i32 : i32, i32
  }
  func.func @transform_1(%arg0: i32, %arg1: i32) -> (i32, i32, i32) {
    %c0_i32 = arith.constant 0 : i32
    %c0_i32_0 = arith.constant 0 : i32
    %c0_i32_1 = arith.constant 0 : i32
    %c0_i32_2 = arith.constant 0 : i32
    return %c0_i32, %c0_i32_0, %c0_i32_1 : i32, i32, i32
  }
  func.func @transform_2(%arg0: i32, %arg1: i32) -> (i32, i32) {
    %c0_i32 = arith.constant 0 : i32
    %c0_i32_0 = arith.constant 0 : i32
    %c0_i32_1 = arith.constant 0 : i32
    return %c0_i32, %c0_i32_0 : i32, i32
  }
  func.func @transform_3(%arg0: i32, %arg1: i32) -> (i32, i32) {
    %c0_i32 = arith.constant 0 : i32
    %c0_i32_0 = arith.constant 0 : i32
    %c0_i32_1 = arith.constant 0 : i32
    return %c0_i32, %c0_i32_0 : i32, i32
  }
  func.func @transform_4(%arg0: i32, %arg1: i32) -> (i32, i32) {
    %c0_i32 = arith.constant 0 : i32
    %c0_i32_0 = arith.constant 0 : i32
    %c0_i32_1 = arith.constant 0 : i32
    return %c0_i32, %c0_i32_0 : i32, i32
  }
  func.func @transform_5(%arg0: i32, %arg1: i32) -> (i32, i32) {
    %c0_i32 = arith.constant 0 : i32
    %c0_i32_0 = arith.constant 0 : i32
    %c0_i32_1 = arith.constant 0 : i32
    return %c0_i32, %c0_i32_0 : i32, i32
  }
  func.func @transform_6(%arg0: i32, %arg1: i32) -> (i32, i32) {
    %c2_i32 = arith.constant 2 : i32
    %0 = arith.muli %arg0, %c2_i32 : i32
    %1 = arith.addi %0, %arg1 : i32
    %c0_i32 = arith.constant 0 : i32
    %c0_i32_0 = arith.constant 0 : i32
    return %1, %c0_i32 : i32, i32
  }
  func.func @transform_7(%arg0: i32, %arg1: i32) -> (i32, i32, i32) {
    %c2_i32 = arith.constant 2 : i32
    %0 = arith.muli %arg0, %c2_i32 : i32
    %1 = arith.addi %0, %arg1 : i32
    %c0_i32 = arith.constant 0 : i32
    %c0_i32_0 = arith.constant 0 : i32
    %c0_i32_1 = arith.constant 0 : i32
    return %1, %c0_i32, %c0_i32_0 : i32, i32, i32
  }
}

module attributes {stable_mosaic.version = 11 : i64} {
  func.func @_bn_relu_conv1x1_stats_kernel(%arg0: i32, %arg1: memref<512x64xf32, #tpu.memory_space<vmem>>, %arg2: memref<1x64xf32, #tpu.memory_space<vmem>>, %arg3: memref<1x64xf32, #tpu.memory_space<vmem>>, %arg4: memref<64x256xf32, #tpu.memory_space<vmem>>, %arg5: memref<512x256xf32, #tpu.memory_space<vmem>>, %arg6: memref<1x1x512xf32, #tpu.memory_space<vmem>>) attributes {dimension_semantics = [#tpu.dimension_semantics<parallel>], iteration_bounds = array<i64: 1>, scalar_prefetch = 0 : i64, scratch_operands = 0 : i64, tpu.core_type = #tpu.core_type<tc>, window_params = [{transform_indices = @transform_0, window_bounds = array<i64: 512, 64>}, {pipeline_mode = #tpu.pipeline_mode<synchronous>, transform_indices = @transform_1, window_bounds = array<i64: 1, 64>}, {pipeline_mode = #tpu.pipeline_mode<synchronous>, transform_indices = @transform_2, window_bounds = array<i64: 1, 64>}, {pipeline_mode = #tpu.pipeline_mode<synchronous>, transform_indices = @transform_3, window_bounds = array<i64: 64, 256>}, {transform_indices = @transform_4, window_bounds = array<i64: 512, 256>}, {transform_indices = @transform_5, window_bounds = array<i64: 1, 1, 512>}]} {
    %c0 = arith.constant 0 : index
    %c0_0 = arith.constant 0 : index
    %0 = vector.load %arg1[%c0, %c0_0] : memref<512x64xf32, #tpu.memory_space<vmem>>, vector<512x64xf32>
    %c0_1 = arith.constant 0 : index
    %c0_2 = arith.constant 0 : index
    %1 = vector.load %arg2[%c0_1, %c0_2] : memref<1x64xf32, #tpu.memory_space<vmem>>, vector<1x64xf32>
    %2 = vector.broadcast %1 : vector<1x64xf32> to vector<512x64xf32>
    %3 = arith.mulf %0, %2 : vector<512x64xf32>
    %c0_3 = arith.constant 0 : index
    %c0_4 = arith.constant 0 : index
    %4 = vector.load %arg3[%c0_3, %c0_4] : memref<1x64xf32, #tpu.memory_space<vmem>>, vector<1x64xf32>
    %5 = vector.broadcast %4 : vector<1x64xf32> to vector<512x64xf32>
    %6 = arith.addf %3, %5 : vector<512x64xf32>
    %cst = arith.constant 0.000000e+00 : f32
    %7 = vector.broadcast %cst : f32 to vector<512x64xf32>
    %8 = arith.maximumf %6, %7 : vector<512x64xf32>
    %c0_5 = arith.constant 0 : index
    %c0_6 = arith.constant 0 : index
    %9 = vector.load %arg4[%c0_5, %c0_6] : memref<64x256xf32, #tpu.memory_space<vmem>>, vector<64x256xf32>
    %cst_7 = arith.constant dense<0.000000e+00> : vector<512x256xf32>
    %10 = tpu.matmul %8, %9, %cst_7 {dimension_numbers = #tpu.dot_dimension_numbers<[1], [0], [0], [1], [0, 0, 1, 1], [], []>} : vector<512x64xf32>, vector<64x256xf32>, vector<512x256xf32> -> vector<512x256xf32>
    %c0_8 = arith.constant 0 : index
    %c0_9 = arith.constant 0 : index
    %11 = vector.load %arg5[%c0_8, %c0_9] : memref<512x256xf32, #tpu.memory_space<vmem>>, vector<512x256xf32>
    tpu.vector_store %arg5[%c0_8, %c0_9], %10 {strides = array<i32>} : memref<512x256xf32, #tpu.memory_space<vmem>>, vector<512x256xf32>,
    %cst_10 = arith.constant dense<0.000000e+00> : vector<256xf32>
    %12 = vector.multi_reduction <add>, %10, %cst_10 [0] : vector<512x256xf32> to vector<256xf32>
    %13 = vector.shape_cast %12 : vector<256xf32> to vector<1x256xf32>
    %14 = arith.mulf %10, %10 : vector<512x256xf32>
    %cst_11 = arith.constant dense<0.000000e+00> : vector<256xf32>
    %15 = vector.multi_reduction <add>, %14, %cst_11 [0] : vector<512x256xf32> to vector<256xf32>
    %16 = vector.shape_cast %15 : vector<256xf32> to vector<1x256xf32>
    %17 = tpu.concatenate %13, %16 in 1 : vector<1x256xf32>, vector<1x256xf32> -> vector<1x512xf32>
    %c0_12 = arith.constant 0 : index
    %c0_13 = arith.constant 0 : index
    %c0_14 = arith.constant 0 : index
    %18 = vector.load %arg6[%c0_12, %c0_13, %c0_14] : memref<1x1x512xf32, #tpu.memory_space<vmem>>, vector<1x1x512xf32>
    %19 = vector.shape_cast %18 : vector<1x1x512xf32> to vector<1x512xf32>
    %20 = vector.shape_cast %17 : vector<1x512xf32> to vector<1x1x512xf32>
    tpu.vector_store %arg6[%c0_12, %c0_13, %c0_14], %20 {strides = array<i32>} : memref<1x1x512xf32, #tpu.memory_space<vmem>>, vector<1x1x512xf32>,
    return
  }
  func.func @transform_0(%arg0: i32) -> (i32, i32) {
    %c0_i32 = arith.constant 0 : i32
    %c0_i32_0 = arith.constant 0 : i32
    return %arg0, %c0_i32 : i32, i32
  }
  func.func @transform_1(%arg0: i32) -> (i32, i32) {
    %c0_i32 = arith.constant 0 : i32
    %c0_i32_0 = arith.constant 0 : i32
    %c0_i32_1 = arith.constant 0 : i32
    return %c0_i32, %c0_i32_0 : i32, i32
  }
  func.func @transform_2(%arg0: i32) -> (i32, i32) {
    %c0_i32 = arith.constant 0 : i32
    %c0_i32_0 = arith.constant 0 : i32
    %c0_i32_1 = arith.constant 0 : i32
    return %c0_i32, %c0_i32_0 : i32, i32
  }
  func.func @transform_3(%arg0: i32) -> (i32, i32) {
    %c0_i32 = arith.constant 0 : i32
    %c0_i32_0 = arith.constant 0 : i32
    %c0_i32_1 = arith.constant 0 : i32
    return %c0_i32, %c0_i32_0 : i32, i32
  }
  func.func @transform_4(%arg0: i32) -> (i32, i32) {
    %c0_i32 = arith.constant 0 : i32
    %c0_i32_0 = arith.constant 0 : i32
    return %arg0, %c0_i32 : i32, i32
  }
  func.func @transform_5(%arg0: i32) -> (i32, i32, i32) {
    %c0_i32 = arith.constant 0 : i32
    %c0_i32_0 = arith.constant 0 : i32
    %c0_i32_1 = arith.constant 0 : i32
    return %arg0, %c0_i32, %c0_i32_0 : i32, i32, i32
  }
}

</mosaic_0001>

<llo_original>
// kernel: bottleneck_forward.4
$region0: #{bottleneck_forward.4}
  #allocation0 [shape = 'u32[]', space=smem, size = 0x4, offset = 0x4, fixed_abs, tag = 'smem constant byte address 0x4 - core index']
  #allocation1 [shape = 'u32[144,128]{1,0:T(1,128)}', space=vmem, size = 0x12000, scoped, tag = 'internal scratch']
  %s0 = inlined_call_operand.hbm [shape: f32[512,256], index: 0, kind: input, shape index: {}]
  %s1 = inlined_call_operand.vmem [shape: f32[256,64], index: 1, kind: input, shape index: {}]
  %s2 = inlined_call_operand.vmem [shape: f32[512,64], index: 2, kind: output, shape index: {0}]
  %s3 = inlined_call_operand.vmem [shape: f32[1,1,128], index: 3, kind: output, shape index: {1}]
  %4 = xla_tuple %s2, %s3
  %s5 = sld [smem:[#allocation0]]
  $region30: #{bottleneck_forward.4} parent=0
    _
  %s7 = ssub.s32 1, %s5
  %s8 = scalar_select 0, %s7, %s5
  $region1: #{bottleneck_forward.4} parent=0
    #allocation2 [shape = 'u8[524288]{0}', space=vmem, size = 0x80000, scoped, tag = 'input window, operand 0, single buffered']
    #allocation3 [shape = 's32[1]{0}', space=sflag, size = 0x4, scoped, tag = 'scoped memory for bottleneck_forward.4']
    %9 = vsyncpa [#allocation3], 0
    // Predicated region
    $region2: #{bottleneck_forward.4} parent=1 // pred_check
      _
    $region3: #{bottleneck_forward.4} parent=1 // pred_check_branch
      %11 = sbr.rel (0) target = $region5
    $region4: #{bottleneck_forward.4} parent=1 // pred_region
      %s13 = ssub.s32 16384, 16384
      %14 = vsyncadd [#allocation3], %s13
      %s15 = sshll.u32 [#allocation2], 4
      %s16 = int_to_ptr.vmem [resolvable:$true] %s15
      %21 = dma.hbm_to_vmem [thread:$0]  %s0, 16384, %s16, [#allocation3], 256, 256, 16
    $region5: #{bottleneck_forward.4} parent=1 // pred_fallthru
      _
    // Predicated region
    $region6: #{bottleneck_forward.4} parent=1 // pred_check
      _
    $region7: #{bottleneck_forward.4} parent=1 // pred_check_branch
      %23 = sbr.rel (0) target = $region9
    $region8: #{bottleneck_forward.4} parent=1 // pred_region
      _
    $region9: #{bottleneck_forward.4} parent=1 // pred_fallthru
      _
    // Predicated region
    $region10: #{bottleneck_forward.4} parent=1 // pred_check
      _
    $region11: #{bottleneck_forward.4} parent=1 // pred_check_branch
      %25 = sbr.rel (0) target = $region13
    $region12: #{bottleneck_forward.4} parent=1 // pred_region
      %26 = dma.done [#allocation3], 16384
    $region13: #{bottleneck_forward.4} parent=1 // pred_fallthru
      _
    %v27 = vld [vmem:[#allocation2] sm:$0xff]
    %v28 = vld [vmem:[#allocation2 + $0x8] sm:$0xff]
    %v29 = vld [vmem:[#allocation2 + $0x10] sm:$0xff]
    %v30 = vld [vmem:[#allocation2 + $0x18] sm:$0xff]
    %v31 = vld [vmem:[#allocation2 + $0x20] sm:$0xff]
    %v32 = vld [vmem:[#allocation2 + $0x28] sm:$0xff]
    %v33 = vld [vmem:[#allocation2 + $0x30] sm:$0xff]
    %v34 = vld [vmem:[#allocation2 + $0x38] sm:$0xff]
    %v35 = vld [vmem:[#allocation2 + $0x40] sm:$0xff]
    %v36 = vld [vmem:[#allocation2 + $0x48] sm:$0xff]
    %v37 = vld [vmem:[#allocation2 + $0x50] sm:$0xff]
    %v38 = vld [vmem:[#allocation2 + $0x58] sm:$0xff]
    %v39 = vld [vmem:[#allocation2 + $0x60] sm:$0xff]
    %v40 = vld [vmem:[#allocation2 + $0x68] sm:$0xff]
    %v41 = vld [vmem:[#allocation2 + $0x70] sm:$0xff]
    %v42 = vld [vmem:[#allocation2 + $0x78] sm:$0xff]
    %v43 = vld [vmem:[#allocation2 + $0x80] sm:$0xff]
    %v44 = vld [vmem:[#allocation2 + $0x88] sm:$0xff]
    %v45 = vld [vmem:[#allocation2 + $0x90] sm:$0xff]
    %v46 = vld [vmem:[#allocation2 + $0x98] sm:$0xff]
    %v47 = vld [vmem:[#allocation2 + $0xa0] sm:$0xff]
    %v48 = vld [vmem:[#allocation2 + $0xa8] sm:$0xff]
    %v49 = vld [vmem:[#allocation2 + $0xb0] sm:$0xff]
    %v50 = vld [vmem:[#allocation2 + $0xb8] sm:$0xff]
    %v51 = vld [vmem:[#allocation2 + $0xc0] sm:$0xff]
    %v52 = vld [vmem:[#allocation2 + $0xc8] sm:$0xff]
    %v53 = vld [vmem:[#allocation2 + $0xd0] sm:$0xff]
    %v54 = vld [vmem:[#allocation2 + $0xd8] sm:$0xff]
    %v55 = vld [vmem:[#allocation2 + $0xe0] sm:$0xff]
    %v56 = vld [vmem:[#allocation2 + $0xe8] sm:$0xff]
    %v57 = vld [vmem:[#allocation2 + $0xf0] sm:$0xff]
    %v58 = vld [vmem:[#allocation2 + $0xf8] sm:$0xff]
    %v59 = vld [vmem:[#allocation2 + $0x100] sm:$0xff]
    %v60 = vld [vmem:[#allocation2 + $0x108] sm:$0xff]
    %v61 = vld [vmem:[#allocation2 + $0x110] sm:$0xff]
    %v62 = vld [vmem:[#allocation2 + $0x118] sm:$0xff]
    %v63 = vld [vmem:[#allocation2 + $0x120] sm:$0xff]
    %v64 = vld [vmem:[#allocation2 + $0x128] sm:$0xff]
    %v65 = vld [vmem:[#allocation2 + $0x130] sm:$0xff]
    %v66 = vld [vmem:[#allocation2 + $0x138] sm:$0xff]
    %v67 = vld [vmem:[#allocation2 + $0x140] sm:$0xff]
    %v68 = vld [vmem:[#allocation2 + $0x148] sm:$0xff]
    %v69 = vld [vmem:[#allocation2 + $0x150] sm:$0xff]
    %v70 = vld [vmem:[#allocation2 + $0x158] sm:$0xff]
    %v71 = vld [vmem:[#allocation2 + $0x160] sm:$0xff]
    %v72 = vld [vmem:[#allocation2 + $0x168] sm:$0xff]
    %v73 = vld [vmem:[#allocation2 + $0x170] sm:$0xff]
    %v74 = vld [vmem:[#allocation2 + $0x178] sm:$0xff]
    %v75 = vld [vmem:[#allocation2 + $0x180] sm:$0xff]
    %v76 = vld [vmem:[#allocation2 + $0x188] sm:$0xff]
    %v77 = vld [vmem:[#allocation2 + $0x190] sm:$0xff]
    %v78 = vld [vmem:[#allocation2 + $0x198] sm:$0xff]
    %v79 = vld [vmem:[#allocation2 + $0x1a0] sm:$0xff]
    %v80 = vld [vmem:[#allocation2 + $0x1a8] sm:$0xff]
    %v81 = vld [vmem:[#allocation2 + $0x1b0] sm:$0xff]
    %v82 = vld [vmem:[#allocation2 + $0x1b8] sm:$0xff]
    %v83 = vld [vmem:[#allocation2 + $0x1c0] sm:$0xff]
    %v84 = vld [vmem:[#allocation2 + $0x1c8] sm:$0xff]
    %v85 = vld [vmem:[#allocation2 + $0x1d0] sm:$0xff]
    %v86 = vld [vmem:[#allocation2 + $0x1d8] sm:$0xff]
    %v87 = vld [vmem:[#allocation2 + $0x1e0] sm:$0xff]
    %v88 = vld [vmem:[#allocation2 + $0x1e8] sm:$0xff]
    %v89 = vld [vmem:[#allocation2 + $0x1f0] sm:$0xff]
    %v90 = vld [vmem:[#allocation2 + $0x1f8] sm:$0xff]
    %v91 = vld [vmem:[#allocation2 + $0x200] sm:$0xff]
    %v92 = vld [vmem:[#allocation2 + $0x208] sm:$0xff]
    %v93 = vld [vmem:[#allocation2 + $0x210] sm:$0xff]
    %v94 = vld [vmem:[#allocation2 + $0x218] sm:$0xff]
    %v95 = vld [vmem:[#allocation2 + $0x220] sm:$0xff]
    %v96 = vld [vmem:[#allocation2 + $0x228] sm:$0xff]
    %v97 = vld [vmem:[#allocation2 + $0x230] sm:$0xff]
    %v98 = vld [vmem:[#allocation2 + $0x238] sm:$0xff]
    %v99 = vld [vmem:[#allocation2 + $0x240] sm:$0xff]
    %v100 = vld [vmem:[#allocation2 + $0x248] sm:$0xff]
    %v101 = vld [vmem:[#allocation2 + $0x250] sm:$0xff]
    %v102 = vld [vmem:[#allocation2 + $0x258] sm:$0xff]
    %v103 = vld [vmem:[#allocation2 + $0x260] sm:$0xff]
    %v104 = vld [vmem:[#allocation2 + $0x268] sm:$0xff]
    %v105 = vld [vmem:[#allocation2 + $0x270] sm:$0xff]
    %v106 = vld [vmem:[#allocation2 + $0x278] sm:$0xff]
    %v107 = vld [vmem:[#allocation2 + $0x280] sm:$0xff]
    %v108 = vld [vmem:[#allocation2 + $0x288] sm:$0xff]
    %v109 = vld [vmem:[#allocation2 + $0x290] sm:$0xff]
    %v110 = vld [vmem:[#allocation2 + $0x298] sm:$0xff]
    %v111 = vld [vmem:[#allocation2 + $0x2a0] sm:$0xff]
    %v112 = vld [vmem:[#allocation2 + $0x2a8] sm:$0xff]
    %v113 = vld [vmem:[#allocation2 + $0x2b0] sm:$0xff]
    %v114 = vld [vmem:[#allocation2 + $0x2b8] sm:$0xff]
    %v115 = vld [vmem:[#allocation2 + $0x2c0] sm:$0xff]
    %v116 = vld [vmem:[#allocation2 + $0x2c8] sm:$0xff]
    %v117 = vld [vmem:[#allocation2 + $0x2d0] sm:$0xff]
    %v118 = vld [vmem:[#allocation2 + $0x2d8] sm:$0xff]
    %v119 = vld [vmem:[#allocation2 + $0x2e0] sm:$0xff]
    %v120 = vld [vmem:[#allocation2 + $0x2e8] sm:$0xff]
    %v121 = vld [vmem:[#allocation2 + $0x2f0] sm:$0xff]
    %v122 = vld [vmem:[#allocation2 + $0x2f8] sm:$0xff]
    %v123 = vld [vmem:[#allocation2 + $0x300] sm:$0xff]
    %v124 = vld [vmem:[#allocation2 + $0x308] sm:$0xff]
    %v125 = vld [vmem:[#allocation2 + $0x310] sm:$0xff]
    %v126 = vld [vmem:[#allocation2 + $0x318] sm:$0xff]
    %v127 = vld [vmem:[#allocation2 + $0x320] sm:$0xff]
    %v128 = vld [vmem:[#allocation2 + $0x328] sm:$0xff]
    %v129 = vld [vmem:[#allocation2 + $0x330] sm:$0xff]
    %v130 = vld [vmem:[#allocation2 + $0x338] sm:$0xff]
    %v131 = vld [vmem:[#allocation2 + $0x340] sm:$0xff]
    %v132 = vld [vmem:[#allocation2 + $0x348] sm:$0xff]
    %v133 = vld [vmem:[#allocation2 + $0x350] sm:$0xff]
    %v134 = vld [vmem:[#allocation2 + $0x358] sm:$0xff]
    %v135 = vld [vmem:[#allocation2 + $0x360] sm:$0xff]
    %v136 = vld [vmem:[#allocation2 + $0x368] sm:$0xff]
    %v137 = vld [vmem:[#allocation2 + $0x370] sm:$0xff]
    %v138 = vld [vmem:[#allocation2 + $0x378] sm:$0xff]
    %v139 = vld [vmem:[#allocation2 + $0x380] sm:$0xff]
    %v140 = vld [vmem:[#allocation2 + $0x388] sm:$0xff]
    %v141 = vld [vmem:[#allocation2 + $0x390] sm:$0xff]
    %v142 = vld [vmem:[#allocation2 + $0x398] sm:$0xff]
    %v143 = vld [vmem:[#allocation2 + $0x3a0] sm:$0xff]
    %v144 = vld [vmem:[#allocation2 + $0x3a8] sm:$0xff]
    %v145 = vld [vmem:[#allocation2 + $0x3b0] sm:$0xff]
    %v146 = vld [vmem:[#allocation2 + $0x3b8] sm:$0xff]
    %v147 = vld [vmem:[#allocation2 + $0x3c0] sm:$0xff]
    %v148 = vld [vmem:[#allocation2 + $0x3c8] sm:$0xff]
    %v149 = vld [vmem:[#allocation2 + $0x3d0] sm:$0xff]
    %v150 = vld [vmem:[#allocation2 + $0x3d8] sm:$0xff]
    %v151 = vld [vmem:[#allocation2 + $0x3e0] sm:$0xff]
    %v152 = vld [vmem:[#allocation2 + $0x3e8] sm:$0xff]
    %v153 = vld [vmem:[#allocation2 + $0x3f0] sm:$0xff]
    %v154 = vld [vmem:[#allocation2 + $0x3f8] sm:$0xff]
    %v155 = vld [vmem:[%s1] sm:$0xff]
    %v156 = vld [vmem:[%s1 + $0x8] sm:$0xff]
    %v157 = vld [vmem:[%s1 + $0x10] sm:$0xff]
    %v158 = vld [vmem:[%s1 + $0x18] sm:$0xff]
    %v159 = vld [vmem:[%s1 + $0x20] sm:$0xff]
    %v160 = vld [vmem:[%s1 + $0x28] sm:$0xff]
    %v161 = vld [vmem:[%s1 + $0x30] sm:$0xff]
    %v162 = vld [vmem:[%s1 + $0x38] sm:$0xff]
    %v163 = vld [vmem:[%s1 + $0x40] sm:$0xff]
    %v164 = vld [vmem:[%s1 + $0x48] sm:$0xff]
    %v165 = vld [vmem:[%s1 + $0x50] sm:$0xff]
    %v166 = vld [vmem:[%s1 + $0x58] sm:$0xff]
    %v167 = vld [vmem:[%s1 + $0x60] sm:$0xff]
    %v168 = vld [vmem:[%s1 + $0x68] sm:$0xff]
    %v169 = vld [vmem:[%s1 + $0x70] sm:$0xff]
    %v170 = vld [vmem:[%s1 + $0x78] sm:$0xff]
    %v171 = vld [vmem:[%s1 + $0x80] sm:$0xff]
    %v172 = vld [vmem:[%s1 + $0x88] sm:$0xff]
    %v173 = vld [vmem:[%s1 + $0x90] sm:$0xff]
    %v174 = vld [vmem:[%s1 + $0x98] sm:$0xff]
    %v175 = vld [vmem:[%s1 + $0xa0] sm:$0xff]
    %v176 = vld [vmem:[%s1 + $0xa8] sm:$0xff]
    %v177 = vld [vmem:[%s1 + $0xb0] sm:$0xff]
    %v178 = vld [vmem:[%s1 + $0xb8] sm:$0xff]
    %v179 = vld [vmem:[%s1 + $0xc0] sm:$0xff]
    %v180 = vld [vmem:[%s1 + $0xc8] sm:$0xff]
    %v181 = vld [vmem:[%s1 + $0xd0] sm:$0xff]
    %v182 = vld [vmem:[%s1 + $0xd8] sm:$0xff]
    %v183 = vld [vmem:[%s1 + $0xe0] sm:$0xff]
    %v184 = vld [vmem:[%s1 + $0xe8] sm:$0xff]
    %v185 = vld [vmem:[%s1 + $0xf0] sm:$0xff]
    %v186 = vld [vmem:[%s1 + $0xf8] sm:$0xff]
    %187 = vmatprep.subr.mxu0 0.0
    %188 = vmatpush1.msra.mxu0 %v155
    %189 = vmatprep.subr.mxu0 0.0
    %190 = vmatpush1.msra.mxu0 %v156
    %191 = vmatprep.subr.mxu0 0.0
    %192 = vmatpush1.msra.mxu0 %v157
    %193 = vmatprep.subr.mxu0 0.0
    %194 = vmatpush1.msra.mxu0 %v158
    %195 = vmatprep.subr.mxu0 0.0
    %196 = vmatpush1.msra.mxu0 %v159
    %197 = vmatprep.subr.mxu0 0.0
    %198 = vmatpush1.msra.mxu0 %v160
    %199 = vmatprep.subr.mxu0 0.0
    %200 = vmatpush1.msra.mxu0 %v161
    %201 = vmatprep.subr.mxu0 0.0
    %202 = vmatpush1.msra.mxu0 %v162
    %203 = vmatprep.subr.mxu0 0.0
    %204 = vmatpush1.msra.mxu0 %v163
    %205 = vmatprep.subr.mxu0 0.0
    %206 = vmatpush1.msra.mxu0 %v164
    %207 = vmatprep.subr.mxu0 0.0
    %208 = vmatpush1.msra.mxu0 %v165
    %209 = vmatprep.subr.mxu0 0.0
    %210 = vmatpush1.msra.mxu0 %v166
    %211 = vmatprep.subr.mxu0 0.0
    %212 = vmatpush1.msra.mxu0 %v167
    %213 = vmatprep.subr.mxu0 0.0
    %214 = vmatpush1.msra.mxu0 %v168
    %215 = vmatprep.subr.mxu0 0.0
    %216 = vmatpush1.msra.mxu0 %v169
    %217 = vmatprep.subr.mxu0 0.0
    %218 = vmatpush1.msra.mxu0 %v170
    %219 = vmatprep.subr.mxu0 0.0
    %220 = vmatpush1.msra.mxu0 %v171
    %221 = vmatprep.subr.mxu0 0.0
    %222 = vmatpush1.msra.mxu0 %v172
    %223 = vmatprep.subr.mxu0 0.0
    %224 = vmatpush1.msra.mxu0 %v173
    %225 = vmatprep.subr.mxu0 0.0
    %226 = vmatpush1.msra.mxu0 %v174
    %227 = vmatprep.subr.mxu0 0.0
    %228 = vmatpush1.msra.mxu0 %v175
    %229 = vmatprep.subr.mxu0 0.0
    %230 = vmatpush1.msra.mxu0 %v176
    %231 = vmatprep.subr.mxu0 0.0
    %232 = vmatpush1.msra.mxu0 %v177
    %233 = vmatprep.subr.mxu0 0.0
    %234 = vmatpush1.msra.mxu0 %v178
    %235 = vmatprep.subr.mxu0 0.0
    %236 = vmatpush1.msra.mxu0 %v179
    %237 = vmatprep.subr.mxu0 0.0
    %238 = vmatpush1.msra.mxu0 %v180
    %239 = vmatprep.subr.mxu0 0.0
    %240 = vmatpush1.msra.mxu0 %v181
    %241 = vmatprep.subr.mxu0 0.0
    %242 = vmatpush1.msra.mxu0 %v182
    %243 = vmatprep.subr.mxu0 0.0
    %244 = vmatpush1.msra.mxu0 %v183
    %245 = vmatprep.subr.mxu0 0.0
    %246 = vmatpush1.msra.mxu0 %v184
    %247 = vmatprep.subr.mxu0 0.0
    %248 = vmatpush1.msra.mxu0 %v185
    %249 = vmatprep.subr.mxu0 0.0
    %250 = vmatpush1.msra.mxu0 %v186
    %251 = vmatprep.mubr.f32.mxu0 %v28
    %252 = vmatmul.mubr.f32.gmra.mrb[0].mxu0 %v27
    %v253 = vpop.f32.mrb[0].mxu0
    %v254 = vadd.f32 0.0, %v253
    %v255 = vpop.f32.mrb[0].mxu0
    %256 = vmatprep.mubr.f32.mxu0 %v30
    %257 = vmatmul.mubr.f32.gmra.mrb[0].mxu0 %v29
    %v258 = vpop.f32.mrb[0].mxu0
    %v259 = vadd.f32 0.0, %v258
    %v260 = vpop.f32.mrb[0].mxu0
    %261 = vmatprep.mubr.f32.mxu0 %v32
    %262 = vmatmul.mubr.f32.gmra.mrb[0].mxu0 %v31
    %v263 = vpop.f32.mrb[0].mxu0
    %v264 = vadd.f32 0.0, %v263
    %v265 = vpop.f32.mrb[0].mxu0
    %266 = vmatprep.mubr.f32.mxu0 %v34
    %267 = vmatmul.mubr.f32.gmra.mrb[0].mxu0 %v33
    %v268 = vpop.f32.mrb[0].mxu0
    %v269 = vadd.f32 0.0, %v268
    %v270 = vpop.f32.mrb[0].mxu0
    %271 = vmatprep.mubr.f32.mxu0 %v36
    %272 = vmatmul.mubr.f32.gmra.mrb[0].mxu0 %v35
    %v273 = vpop.f32.mrb[0].mxu0
    %v274 = vadd.f32 0.0, %v273
    %v275 = vpop.f32.mrb[0].mxu0
    %276 = vmatprep.mubr.f32.mxu0 %v38
    %277 = vmatmul.mubr.f32.gmra.mrb[0].mxu0 %v37
    %v278 = vpop.f32.mrb[0].mxu0
    %v279 = vadd.f32 0.0, %v278
    %v280 = vpop.f32.mrb[0].mxu0
    %281 = vmatprep.mubr.f32.mxu0 %v40
    %282 = vmatmul.mubr.f32.gmra.mrb[0].mxu0 %v39
    %v283 = vpop.f32.mrb[0].mxu0
    %v284 = vadd.f32 0.0, %v283
    %v285 = vpop.f32.mrb[0].mxu0
    %286 = vmatprep.mubr.f32.mxu0 %v42
    %287 = vmatmul.mubr.f32.gmra.mrb[0].mxu0 %v41
    %v288 = vpop.f32.mrb[0].mxu0
    %v289 = vadd.f32 0.0, %v288
    %v290 = vpop.f32.mrb[0].mxu0
    %291 = vmatprep.mubr.f32.mxu0 %v44
    %292 = vmatmul.mubr.f32.gmra.mrb[0].mxu0 %v43
    %v293 = vpop.f32.mrb[0].mxu0
    %v294 = vadd.f32 0.0, %v293
    %v295 = vpop.f32.mrb[0].mxu0
    %296 = vmatprep.mubr.f32.mxu0 %v46
    %297 = vmatmul.mubr.f32.gmra.mrb[0].mxu0 %v45
    %v298 = vpop.f32.mrb[0].mxu0
    %v299 = vadd.f32 0.0, %v298
    %v300 = vpop.f32.mrb[0].mxu0
    %301 = vmatprep.mubr.f32.mxu0 %v48
    %302 = vmatmul.mubr.f32.gmra.mrb[0].mxu0 %v47
    %v303 = vpop.f32.mrb[0].mxu0
    %v304 = vadd.f32 0.0, %v303
    %v305 = vpop.f32.mrb[0].mxu0
    %306 = vmatprep.mubr.f32.mxu0 %v50
    %307 = vmatmul.mubr.f32.gmra.mrb[0].mxu0 %v49
    %v308 = vpop.f32.mrb[0].mxu0
    %v309 = vadd.f32 0.0, %v308
    %v310 = vpop.f32.mrb[0].mxu0
    %311 = vmatprep.mubr.f32.mxu0 %v52
    %312 = vmatmul.mubr.f32.gmra.mrb[0].mxu0 %v51
    %v313 = vpop.f32.mrb[0].mxu0
    %v314 = vadd.f32 0.0, %v313
    %v315 = vpop.f32.mrb[0].mxu0
    %316 = vmatprep.mubr.f32.mxu0 %v54
    %317 = vmatmul.mubr.f32.gmra.mrb[0].mxu0 %v53
    %v318 = vpop.f32.mrb[0].mxu0
    %v319 = vadd.f32 0.0, %v318
    %v320 = vpop.f32.mrb[0].mxu0
    %321 = vmatprep.mubr.f32.mxu0 %v56
    %322 = vmatmul.mubr.f32.gmra.mrb[0].mxu0 %v55
    %v323 = vpop.f32.mrb[0].mxu0
    %v324 = vadd.f32 0.0, %v323
    %v325 = vpop.f32.mrb[0].mxu0
    %326 = vmatprep.mubr.f32.mxu0 %v58
    %327 = vmatmul.mubr.f32.gmra.mrb[0].mxu0 %v57
    %v328 = vpop.f32.mrb[0].mxu0
    %v329 = vadd.f32 0.0, %v328
    %v330 = vpop.f32.mrb[0].mxu0
    %331 = vmatprep.mubr.f32.mxu0 %v60
    %332 = vmatmul.mubr.f32.gmra.mrb[0].mxu0 %v59
    %v333 = vpop.f32.mrb[0].mxu0
    %v334 = vadd.f32 0.0, %v333
    %v335 = vpop.f32.mrb[0].mxu0
    %336 = vmatprep.mubr.f32.mxu0 %v62
    %337 = vmatmul.mubr.f32.gmra.mrb[0].mxu0 %v61
    %v338 = vpop.f32.mrb[0].mxu0
    %v339 = vadd.f32 0.0, %v338
    %v340 = vpop.f32.mrb[0].mxu0
    %341 = vmatprep.mubr.f32.mxu0 %v64
    %342 = vmatmul.mubr.f32.gmra.mrb[0].mxu0 %v63
    %v343 = vpop.f32.mrb[0].mxu0
    %v344 = vadd.f32 0.0, %v343
    %v345 = vpop.f32.mrb[0].mxu0
    %346 = vmatprep.mubr.f32.mxu0 %v66
    %347 = vmatmul.mubr.f32.gmra.mrb[0].mxu0 %v65
    %v348 = vpop.f32.mrb[0].mxu0
    %v349 = vadd.f32 0.0, %v348
    %v350 = vpop.f32.mrb[0].mxu0
    %351 = vmatprep.mubr.f32.mxu0 %v68
    %352 = vmatmul.mubr.f32.gmra.mrb[0].mxu0 %v67
    %v353 = vpop.f32.mrb[0].mxu0
    %v354 = vadd.f32 0.0, %v353
    %v355 = vpop.f32.mrb[0].mxu0
    %356 = vmatprep.mubr.f32.mxu0 %v70
    %357 = vmatmul.mubr.f32.gmra.mrb[0].mxu0 %v69
    %v358 = vpop.f32.mrb[0].mxu0
    %v359 = vadd.f32 0.0, %v358
    %v360 = vpop.f32.mrb[0].mxu0
    %361 = vmatprep.mubr.f32.mxu0 %v72
    %362 = vmatmul.mubr.f32.gmra.mrb[0].mxu0 %v71
    %v363 = vpop.f32.mrb[0].mxu0
    %v364 = vadd.f32 0.0, %v363
    %v365 = vpop.f32.mrb[0].mxu0
    %366 = vmatprep.mubr.f32.mxu0 %v74
    %367 = vmatmul.mubr.f32.gmra.mrb[0].mxu0 %v73
    %v368 = vpop.f32.mrb[0].mxu0
    %v369 = vadd.f32 0.0, %v368
    %v370 = vpop.f32.mrb[0].mxu0
    %371 = vmatprep.mubr.f32.mxu0 %v76
    %372 = vmatmul.mubr.f32.gmra.mrb[0].mxu0 %v75
    %v373 = vpop.f32.mrb[0].mxu0
    %v374 = vadd.f32 0.0, %v373
    %v375 = vpop.f32.mrb[0].mxu0
    %376 = vmatprep.mubr.f32.mxu0 %v78
    %377 = vmatmul.mubr.f32.gmra.mrb[0].mxu0 %v77
    %v378 = vpop.f32.mrb[0].mxu0
    %v379 = vadd.f32 0.0, %v378
    %v380 = vpop.f32.mrb[0].mxu0
    %381 = vmatprep.mubr.f32.mxu0 %v80
    %382 = vmatmul.mubr.f32.gmra.mrb[0].mxu0 %v79
    %v383 = vpop.f32.mrb[0].mxu0
    %v384 = vadd.f32 0.0, %v383
    %v385 = vpop.f32.mrb[0].mxu0
    %386 = vmatprep.mubr.f32.mxu0 %v82
    %387 = vmatmul.mubr.f32.gmra.mrb[0].mxu0 %v81
    %v388 = vpop.f32.mrb[0].mxu0
    %v389 = vadd.f32 0.0, %v388
    %v390 = vpop.f32.mrb[0].mxu0
    %391 = vmatprep.mubr.f32.mxu0 %v84
    %392 = vmatmul.mubr.f32.gmra.mrb[0].mxu0 %v83
    %v393 = vpop.f32.mrb[0].mxu0
    %v394 = vadd.f32 0.0, %v393
    %v395 = vpop.f32.mrb[0].mxu0
    %396 = vmatprep.mubr.f32.mxu0 %v86
    %397 = vmatmul.mubr.f32.gmra.mrb[0].mxu0 %v85
    %v398 = vpop.f32.mrb[0].mxu0
    %v399 = vadd.f32 0.0, %v398
    %v400 = vpop.f32.mrb[0].mxu0
    %401 = vmatprep.mubr.f32.mxu0 %v88
    %402 = vmatmul.mubr.f32.gmra.mrb[0].mxu0 %v87
    %v403 = vpop.f32.mrb[0].mxu0
    %v404 = vadd.f32 0.0, %v403
    %v405 = vpop.f32.mrb[0].mxu0
    %406 = vmatprep.mubr.f32.mxu0 %v90
    %407 = vmatmul.mubr.f32.gmra.mrb[0].mxu0 %v89
    %v408 = vpop.f32.mrb[0].mxu0
    %v409 = vadd.f32 0.0, %v408
    %v410 = vpop.f32.mrb[0].mxu0
    %411 = vmatprep.mubr.f32.mxu0 %v92
    %412 = vmatmul.mubr.f32.gmra.mrb[0].mxu0 %v91
    %v413 = vpop.f32.mrb[0].mxu0
    %v414 = vadd.f32 0.0, %v413
    %v415 = vpop.f32.mrb[0].mxu0
    %416 = vmatprep.mubr.f32.mxu0 %v94
    %417 = vmatmul.mubr.f32.gmra.mrb[0].mxu0 %v93
    %v418 = vpop.f32.mrb[0].mxu0
    %v419 = vadd.f32 0.0, %v418
    %v420 = vpop.f32.mrb[0].mxu0
    %421 = vmatprep.mubr.f32.mxu0 %v96
    %422 = vmatmul.mubr.f32.gmra.mrb[0].mxu0 %v95
    %v423 = vpop.f32.mrb[0].mxu0
    %v424 = vadd.f32 0.0, %v423
    %v425 = vpop.f32.mrb[0].mxu0
    %426 = vmatprep.mubr.f32.mxu0 %v98
    %427 = vmatmul.mubr.f32.gmra.mrb[0].mxu0 %v97
    %v428 = vpop.f32.mrb[0].mxu0
    %v429 = vadd.f32 0.0, %v428
    %v430 = vpop.f32.mrb[0].mxu0
    %431 = vmatprep.mubr.f32.mxu0 %v100
    %432 = vmatmul.mubr.f32.gmra.mrb[0].mxu0 %v99
    %v433 = vpop.f32.mrb[0].mxu0
    %v434 = vadd.f32 0.0, %v433
    %v435 = vpop.f32.mrb[0].mxu0
    %436 = vmatprep.mubr.f32.mxu0 %v102
    %437 = vmatmul.mubr.f32.gmra.mrb[0].mxu0 %v101
    %v438 = vpop.f32.mrb[0].mxu0
    %v439 = vadd.f32 0.0, %v438
    %v440 = vpop.f32.mrb[0].mxu0
    %441 = vmatprep.mubr.f32.mxu0 %v104
    %442 = vmatmul.mubr.f32.gmra.mrb[0].mxu0 %v103
    %v443 = vpop.f32.mrb[0].mxu0
    %v444 = vadd.f32 0.0, %v443
    %v445 = vpop.f32.mrb[0].mxu0
    %446 = vmatprep.mubr.f32.mxu0 %v106
    %447 = vmatmul.mubr.f32.gmra.mrb[0].mxu0 %v105
    %v448 = vpop.f32.mrb[0].mxu0
    %v449 = vadd.f32 0.0, %v448
    %v450 = vpop.f32.mrb[0].mxu0
    %451 = vmatprep.mubr.f32.mxu0 %v108
    %452 = vmatmul.mubr.f32.gmra.mrb[0].mxu0 %v107
    %v453 = vpop.f32.mrb[0].mxu0
    %v454 = vadd.f32 0.0, %v453
    %v455 = vpop.f32.mrb[0].mxu0
    %456 = vmatprep.mubr.f32.mxu0 %v110
    %457 = vmatmul.mubr.f32.gmra.mrb[0].mxu0 %v109
    %v458 = vpop.f32.mrb[0].mxu0
    %v459 = vadd.f32 0.0, %v458
    %v460 = vpop.f32.mrb[0].mxu0
    %461 = vmatprep.mubr.f32.mxu0 %v112
    %462 = vmatmul.mubr.f32.gmra.mrb[0].mxu0 %v111
    %v463 = vpop.f32.mrb[0].mxu0
    %v464 = vadd.f32 0.0, %v463
    %v465 = vpop.f32.mrb[0].mxu0
    %466 = vmatprep.mubr.f32.mxu0 %v114
    %467 = vmatmul.mubr.f32.gmra.mrb[0].mxu0 %v113
    %v468 = vpop.f32.mrb[0].mxu0
    %v469 = vadd.f32 0.0, %v468
    %v470 = vpop.f32.mrb[0].mxu0
    %471 = vmatprep.mubr.f32.mxu0 %v116
    %472 = vmatmul.mubr.f32.gmra.mrb[0].mxu0 %v115
    %v473 = vpop.f32.mrb[0].mxu0
    %v474 = vadd.f32 0.0, %v473
    %v475 = vpop.f32.mrb[0].mxu0
    %476 = vmatprep.mubr.f32.mxu0 %v118
    %477 = vmatmul.mubr.f32.gmra.mrb[0].mxu0 %v117
    %v478 = vpop.f32.mrb[0].mxu0
    %v479 = vadd.f32 0.0, %v478
    %v480 = vpop.f32.mrb[0].mxu0
    %481 = vmatprep.mubr.f32.mxu0 %v120
    %482 = vmatmul.mubr.f32.gmra.mrb[0].mxu0 %v119
    %v483 = vpop.f32.mrb[0].mxu0
    %v484 = vadd.f32 0.0, %v483
    %v485 = vpop.f32.mrb[0].mxu0
    %486 = vmatprep.mubr.f32.mxu0 %v122
    %487 = vmatmul.mubr.f32.gmra.mrb[0].mxu0 %v121
    %v488 = vpop.f32.mrb[0].mxu0
    %v489 = vadd.f32 0.0, %v488
    %v490 = vpop.f32.mrb[0].mxu0
    %491 = vmatprep.mubr.f32.mxu0 %v124
    %492 = vmatmul.mubr.f32.gmra.mrb[0].mxu0 %v123
    %v493 = vpop.f32.mrb[0].mxu0
    %v494 = vadd.f32 0.0, %v493
    %v495 = vpop.f32.mrb[0].mxu0
    %496 = vmatprep.mubr.f32.mxu0 %v126
    %497 = vmatmul.mubr.f32.gmra.mrb[0].mxu0 %v125
    %v498 = vpop.f32.mrb[0].mxu0
    %v499 = vadd.f32 0.0, %v498
    %v500 = vpop.f32.mrb[0].mxu0
    %501 = vmatprep.mubr.f32.mxu0 %v128
    %502 = vmatmul.mubr.f32.gmra.mrb[0].mxu0 %v127
    %v503 = vpop.f32.mrb[0].mxu0
    %v504 = vadd.f32 0.0, %v503
    %v505 = vpop.f32.mrb[0].mxu0
    %506 = vmatprep.mubr.f32.mxu0 %v130
    %507 = vmatmul.mubr.f32.gmra.mrb[0].mxu0 %v129
    %v508 = vpop.f32.mrb[0].mxu0
    %v509 = vadd.f32 0.0, %v508
    %v510 = vpop.f32.mrb[0].mxu0
    %511 = vmatprep.mubr.f32.mxu0 %v132
    %512 = vmatmul.mubr.f32.gmra.mrb[0].mxu0 %v131
    %v513 = vpop.f32.mrb[0].mxu0
    %v514 = vadd.f32 0.0, %v513
    %v515 = vpop.f32.mrb[0].mxu0
    %516 = vmatprep.mubr.f32.mxu0 %v134
    %517 = vmatmul.mubr.f32.gmra.mrb[0].mxu0 %v133
    %v518 = vpop.f32.mrb[0].mxu0
    %v519 = vadd.f32 0.0, %v518
    %v520 = vpop.f32.mrb[0].mxu0
    %521 = vmatprep.mubr.f32.mxu0 %v136
    %522 = vmatmul.mubr.f32.gmra.mrb[0].mxu0 %v135
    %v523 = vpop.f32.mrb[0].mxu0
    %v524 = vadd.f32 0.0, %v523
    %v525 = vpop.f32.mrb[0].mxu0
    %526 = vmatprep.mubr.f32.mxu0 %v138
    %527 = vmatmul.mubr.f32.gmra.mrb[0].mxu0 %v137
    %v528 = vpop.f32.mrb[0].mxu0
    %v529 = vadd.f32 0.0, %v528
    %v530 = vpop.f32.mrb[0].mxu0
    %531 = vmatprep.mubr.f32.mxu0 %v140
    %532 = vmatmul.mubr.f32.gmra.mrb[0].mxu0 %v139
    %v533 = vpop.f32.mrb[0].mxu0
    %v534 = vadd.f32 0.0, %v533
    %v535 = vpop.f32.mrb[0].mxu0
    %536 = vmatprep.mubr.f32.mxu0 %v142
    %537 = vmatmul.mubr.f32.gmra.mrb[0].mxu0 %v141
    %v538 = vpop.f32.mrb[0].mxu0
    %v539 = vadd.f32 0.0, %v538
    %v540 = vpop.f32.mrb[0].mxu0
    %541 = vmatprep.mubr.f32.mxu0 %v144
    %542 = vmatmul.mubr.f32.gmra.mrb[0].mxu0 %v143
    %v543 = vpop.f32.mrb[0].mxu0
    %v544 = vadd.f32 0.0, %v543
    %v545 = vpop.f32.mrb[0].mxu0
    %546 = vmatprep.mubr.f32.mxu0 %v146
    %547 = vmatmul.mubr.f32.gmra.mrb[0].mxu0 %v145
    %v548 = vpop.f32.mrb[0].mxu0
    %v549 = vadd.f32 0.0, %v548
    %v550 = vpop.f32.mrb[0].mxu0
    %551 = vmatprep.mubr.f32.mxu0 %v148
    %552 = vmatmul.mubr.f32.gmra.mrb[0].mxu0 %v147
    %v553 = vpop.f32.mrb[0].mxu0
    %v554 = vadd.f32 0.0, %v553
    %v555 = vpop.f32.mrb[0].mxu0
    %556 = vmatprep.mubr.f32.mxu0 %v150
    %557 = vmatmul.mubr.f32.gmra.mrb[0].mxu0 %v149
    %v558 = vpop.f32.mrb[0].mxu0
    %v559 = vadd.f32 0.0, %v558
    %v560 = vpop.f32.mrb[0].mxu0
    %561 = vmatprep.mubr.f32.mxu0 %v152
    %562 = vmatmul.mubr.f32.gmra.mrb[0].mxu0 %v151
    %v563 = vpop.f32.mrb[0].mxu0
    %v564 = vadd.f32 0.0, %v563
    %v565 = vpop.f32.mrb[0].mxu0
    %566 = vmatprep.mubr.f32.mxu0 %v154
    %567 = vmatmul.mubr.f32.gmra.mrb[0].mxu0 %v153
    %v568 = vpop.f32.mrb[0].mxu0
    %v569 = vadd.f32 0.0, %v568
    %v570 = vpop.f32.mrb[0].mxu0
    %571 = vdwg.mxu0
    %vm572 = vcmask 523264
    %573 = vst.msk [vmem:[%s2] sm:$0xff] %vm572, %v254
    %574 = vst.msk [vmem:[%s2 + $0x8] sm:$0xff] %vm572, %v259
    %575 = vst.msk [vmem:[%s2 + $0x10] sm:$0xff] %vm572, %v264
    %576 = vst.msk [vmem:[%s2 + $0x18] sm:$0xff] %vm572, %v269
    %577 = vst.msk [vmem:[%s2 + $0x20] sm:$0xff] %vm572, %v274
    %578 = vst.msk [vmem:[%s2 + $0x28] sm:$0xff] %vm572, %v279
    %579 = vst.msk [vmem:[%s2 + $0x30] sm:$0xff] %vm572, %v284
    %580 = vst.msk [vmem:[%s2 + $0x38] sm:$0xff] %vm572, %v289
    %581 = vst.msk [vmem:[%s2 + $0x40] sm:$0xff] %vm572, %v294
    %582 = vst.msk [vmem:[%s2 + $0x48] sm:$0xff] %vm572, %v299
    %583 = vst.msk [vmem:[%s2 + $0x50] sm:$0xff] %vm572, %v304
    %584 = vst.msk [vmem:[%s2 + $0x58] sm:$0xff] %vm572, %v309
    %585 = vst.msk [vmem:[%s2 + $0x60] sm:$0xff] %vm572, %v314
    %586 = vst.msk [vmem:[%s2 + $0x68] sm:$0xff] %vm572, %v319
    %587 = vst.msk [vmem:[%s2 + $0x70] sm:$0xff] %vm572, %v324
    %588 = vst.msk [vmem:[%s2 + $0x78] sm:$0xff] %vm572, %v329
    %589 = vst.msk [vmem:[%s2 + $0x80] sm:$0xff] %vm572, %v334
    %590 = vst.msk [vmem:[%s2 + $0x88] sm:$0xff] %vm572, %v339
    %591 = vst.msk [vmem:[%s2 + $0x90] sm:$0xff] %vm572, %v344
    %592 = vst.msk [vmem:[%s2 + $0x98] sm:$0xff] %vm572, %v349
    %593 = vst.msk [vmem:[%s2 + $0xa0] sm:$0xff] %vm572, %v354
    %594 = vst.msk [vmem:[%s2 + $0xa8] sm:$0xff] %vm572, %v359
    %595 = vst.msk [vmem:[%s2 + $0xb0] sm:$0xff] %vm572, %v364
    %596 = vst.msk [vmem:[%s2 + $0xb8] sm:$0xff] %vm572, %v369
    %597 = vst.msk [vmem:[%s2 + $0xc0] sm:$0xff] %vm572, %v374
    %598 = vst.msk [vmem:[%s2 + $0xc8] sm:$0xff] %vm572, %v379
    %599 = vst.msk [vmem:[%s2 + $0xd0] sm:$0xff] %vm572, %v384
    %600 = vst.msk [vmem:[%s2 + $0xd8] sm:$0xff] %vm572, %v389
    %601 = vst.msk [vmem:[%s2 + $0xe0] sm:$0xff] %vm572, %v394
    %602 = vst.msk [vmem:[%s2 + $0xe8] sm:$0xff] %vm572, %v399
    %603 = vst.msk [vmem:[%s2 + $0xf0] sm:$0xff] %vm572, %v404
    %604 = vst.msk [vmem:[%s2 + $0xf8] sm:$0xff] %vm572, %v409
    %605 = vst.msk [vmem:[%s2 + $0x100] sm:$0xff] %vm572, %v414
    %606 = vst.msk [vmem:[%s2 + $0x108] sm:$0xff] %vm572, %v419
    %607 = vst.msk [vmem:[%s2 + $0x110] sm:$0xff] %vm572, %v424
    %608 = vst.msk [vmem:[%s2 + $0x118] sm:$0xff] %vm572, %v429
    %609 = vst.msk [vmem:[%s2 + $0x120] sm:$0xff] %vm572, %v434
    %610 = vst.msk [vmem:[%s2 + $0x128] sm:$0xff] %vm572, %v439
    %611 = vst.msk [vmem:[%s2 + $0x130] sm:$0xff] %vm572, %v444
    %612 = vst.msk [vmem:[%s2 + $0x138] sm:$0xff] %vm572, %v449
    %613 = vst.msk [vmem:[%s2 + $0x140] sm:$0xff] %vm572, %v454
    %614 = vst.msk [vmem:[%s2 + $0x148] sm:$0xff] %vm572, %v459
    %615 = vst.msk [vmem:[%s2 + $0x150] sm:$0xff] %vm572, %v464
    %616 = vst.msk [vmem:[%s2 + $0x158] sm:$0xff] %vm572, %v469
    %617 = vst.msk [vmem:[%s2 + $0x160] sm:$0xff] %vm572, %v474
    %618 = vst.msk [vmem:[%s2 + $0x168] sm:$0xff] %vm572, %v479
    %619 = vst.msk [vmem:[%s2 + $0x170] sm:$0xff] %vm572, %v484
    %620 = vst.msk [vmem:[%s2 + $0x178] sm:$0xff] %vm572, %v489
    %621 = vst.msk [vmem:[%s2 + $0x180] sm:$0xff] %vm572, %v494
    %622 = vst.msk [vmem:[%s2 + $0x188] sm:$0xff] %vm572, %v499
    %623 = vst.msk [vmem:[%s2 + $0x190] sm:$0xff] %vm572, %v504
    %624 = vst.msk [vmem:[%s2 + $0x198] sm:$0xff] %vm572, %v509
    %625 = vst.msk [vmem:[%s2 + $0x1a0] sm:$0xff] %vm572, %v514
    %626 = vst.msk [vmem:[%s2 + $0x1a8] sm:$0xff] %vm572, %v519
    %627 = vst.msk [vmem:[%s2 + $0x1b0] sm:$0xff] %vm572, %v524
    %628 = vst.msk [vmem:[%s2 + $0x1b8] sm:$0xff] %vm572, %v529
    %629 = vst.msk [vmem:[%s2 + $0x1c0] sm:$0xff] %vm572, %v534
    %630 = vst.msk [vmem:[%s2 + $0x1c8] sm:$0xff] %vm572, %v539
    %631 = vst.msk [vmem:[%s2 + $0x1d0] sm:$0xff] %vm572, %v544
    %632 = vst.msk [vmem:[%s2 + $0x1d8] sm:$0xff] %vm572, %v549
    %633 = vst.msk [vmem:[%s2 + $0x1e0] sm:$0xff] %vm572, %v554
    %634 = vst.msk [vmem:[%s2 + $0x1e8] sm:$0xff] %vm572, %v559
    %635 = vst.msk [vmem:[%s2 + $0x1f0] sm:$0xff] %vm572, %v564
    %636 = vst.msk [vmem:[%s2 + $0x1f8] sm:$0xff] %vm572, %v569
    %v637 = vsel %vm572, %v254, 0.0
    %v638 = vsel %vm572, %v259, 0.0
    %v639 = vadd.f32 %v637, %v638
    %v640 = vsel %vm572, %v264, 0.0
    %v641 = vadd.f32 %v639, %v640
    %v642 = vsel %vm572, %v269, 0.0
    %v643 = vadd.f32 %v641, %v642
    %v644 = vsel %vm572, %v274, 0.0
    %v645 = vadd.f32 %v643, %v644
    %v646 = vsel %vm572, %v279, 0.0
    %v647 = vadd.f32 %v645, %v646
    %v648 = vsel %vm572, %v284, 0.0
    %v649 = vadd.f32 %v647, %v648
    %v650 = vsel %vm572, %v289, 0.0
    %v651 = vadd.f32 %v649, %v650
    %v652 = vsel %vm572, %v294, 0.0
    %v653 = vadd.f32 %v651, %v652
    %v654 = vsel %vm572, %v299, 0.0
    %v655 = vadd.f32 %v653, %v654
    %v656 = vsel %vm572, %v304, 0.0
    %v657 = vadd.f32 %v655, %v656
    %v658 = vsel %vm572, %v309, 0.0
    %v659 = vadd.f32 %v657, %v658
    %v660 = vsel %vm572, %v314, 0.0
    %v661 = vadd.f32 %v659, %v660
    %v662 = vsel %vm572, %v319, 0.0
    %v663 = vadd.f32 %v661, %v662
    %v664 = vsel %vm572, %v324, 0.0
    %v665 = vadd.f32 %v663, %v664
    %v666 = vsel %vm572, %v329, 0.0
    %v667 = vadd.f32 %v665, %v666
    %v668 = vsel %vm572, %v334, 0.0
    %v669 = vadd.f32 %v667, %v668
    %v670 = vsel %vm572, %v339, 0.0
    %v671 = vadd.f32 %v669, %v670
    %v672 = vsel %vm572, %v344, 0.0
    %v673 = vadd.f32 %v671, %v672
    %v674 = vsel %vm572, %v349, 0.0
    %v675 = vadd.f32 %v673, %v674
    %v676 = vsel %vm572, %v354, 0.0
    %v677 = vadd.f32 %v675, %v676
    %v678 = vsel %vm572, %v359, 0.0
    %v679 = vadd.f32 %v677, %v678
    %v680 = vsel %vm572, %v364, 0.0
    %v681 = vadd.f32 %v679, %v680
    %v682 = vsel %vm572, %v369, 0.0
    %v683 = vadd.f32 %v681, %v682
    %v684 = vsel %vm572, %v374, 0.0
    %v685 = vadd.f32 %v683, %v684
    %v686 = vsel %vm572, %v379, 0.0
    %v687 = vadd.f32 %v685, %v686
    %v688 = vsel %vm572, %v384, 0.0
    %v689 = vadd.f32 %v687, %v688
    %v690 = vsel %vm572, %v389, 0.0
    %v691 = vadd.f32 %v689, %v690
    %v692 = vsel %vm572, %v394, 0.0
    %v693 = vadd.f32 %v691, %v692
    %v694 = vsel %vm572, %v399, 0.0
    %v695 = vadd.f32 %v693, %v694
    %v696 = vsel %vm572, %v404, 0.0
    %v697 = vadd.f32 %v695, %v696
    %v698 = vsel %vm572, %v409, 0.0
    %v699 = vadd.f32 %v697, %v698
    %v700 = vsel %vm572, %v414, 0.0
    %v701 = vadd.f32 %v699, %v700
    %v702 = vsel %vm572, %v419, 0.0
    %v703 = vadd.f32 %v701, %v702
    %v704 = vsel %vm572, %v424, 0.0
    %v705 = vadd.f32 %v703, %v704
    %v706 = vsel %vm572, %v429, 0.0
    %v707 = vadd.f32 %v705, %v706
    %v708 = vsel %vm572, %v434, 0.0
    %v709 = vadd.f32 %v707, %v708
    %v710 = vsel %vm572, %v439, 0.0
    %v711 = vadd.f32 %v709, %v710
    %v712 = vsel %vm572, %v444, 0.0
    %v713 = vadd.f32 %v711, %v712
    %v714 = vsel %vm572, %v449, 0.0
    %v715 = vadd.f32 %v713, %v714
    %v716 = vsel %vm572, %v454, 0.0
    %v717 = vadd.f32 %v715, %v716
    %v718 = vsel %vm572, %v459, 0.0
    %v719 = vadd.f32 %v717, %v718
    %v720 = vsel %vm572, %v464, 0.0
    %v721 = vadd.f32 %v719, %v720
    %v722 = vsel %vm572, %v469, 0.0
    %v723 = vadd.f32 %v721, %v722
    %v724 = vsel %vm572, %v474, 0.0
    %v725 = vadd.f32 %v723, %v724
    %v726 = vsel %vm572, %v479, 0.0
    %v727 = vadd.f32 %v725, %v726
    %v728 = vsel %vm572, %v484, 0.0
    %v729 = vadd.f32 %v727, %v728
    %v730 = vsel %vm572, %v489, 0.0
    %v731 = vadd.f32 %v729, %v730
    %v732 = vsel %vm572, %v494, 0.0
    %v733 = vadd.f32 %v731, %v732
    %v734 = vsel %vm572, %v499, 0.0
    %v735 = vadd.f32 %v733, %v734
    %v736 = vsel %vm572, %v504, 0.0
    %v737 = vadd.f32 %v735, %v736
    %v738 = vsel %vm572, %v509, 0.0
    %v739 = vadd.f32 %v737, %v738
    %v740 = vsel %vm572, %v514, 0.0
    %v741 = vadd.f32 %v739, %v740
    %v742 = vsel %vm572, %v519, 0.0
    %v743 = vadd.f32 %v741, %v742
    %v744 = vsel %vm572, %v524, 0.0
    %v745 = vadd.f32 %v743, %v744
    %v746 = vsel %vm572, %v529, 0.0
    %v747 = vadd.f32 %v745, %v746
    %v748 = vsel %vm572, %v534, 0.0
    %v749 = vadd.f32 %v747, %v748
    %v750 = vsel %vm572, %v539, 0.0
    %v751 = vadd.f32 %v749, %v750
    %v752 = vsel %vm572, %v544, 0.0
    %v753 = vadd.f32 %v751, %v752
    %v754 = vsel %vm572, %v549, 0.0
    %v755 = vadd.f32 %v753, %v754
    %v756 = vsel %vm572, %v554, 0.0
    %v757 = vadd.f32 %v755, %v756
    %v758 = vsel %vm572, %v559, 0.0
    %v759 = vadd.f32 %v757, %v758
    %v760 = vsel %vm572, %v564, 0.0
    %v761 = vadd.f32 %v759, %v760
    %v762 = vsel %vm572, %v569, 0.0
    %v763 = vadd.f32 %v761, %v762
    %v764 = vrot.slane %v763, 4
    %v765 = vadd.f32 %v763, %v764
    %v766 = vrot.slane %v765, 2
    %v767 = vadd.f32 %v765, %v766
    %v768 = vrot.slane %v767, 1
    %v769 = vadd.f32 %v767, %v768
    %v770 = vmul.f32 %v254, %v254
    %v771 = vmul.f32 %v259, %v259
    %v772 = vmul.f32 %v264, %v264
    %v773 = vmul.f32 %v269, %v269
    %v774 = vmul.f32 %v274, %v274
    %v775 = vmul.f32 %v279, %v279
    %v776 = vmul.f32 %v284, %v284
    %v777 = vmul.f32 %v289, %v289
    %v778 = vmul.f32 %v294, %v294
    %v779 = vmul.f32 %v299, %v299
    %v780 = vmul.f32 %v304, %v304
    %v781 = vmul.f32 %v309, %v309
    %v782 = vmul.f32 %v314, %v314
    %v783 = vmul.f32 %v319, %v319
    %v784 = vmul.f32 %v324, %v324
    %v785 = vmul.f32 %v329, %v329
    %v786 = vmul.f32 %v334, %v334
    %v787 = vmul.f32 %v339, %v339
    %v788 = vmul.f32 %v344, %v344
    %v789 = vmul.f32 %v349, %v349
    %v790 = vmul.f32 %v354, %v354
    %v791 = vmul.f32 %v359, %v359
    %v792 = vmul.f32 %v364, %v364
    %v793 = vmul.f32 %v369, %v369
    %v794 = vmul.f32 %v374, %v374
    %v795 = vmul.f32 %v379, %v379
    %v796 = vmul.f32 %v384, %v384
    %v797 = vmul.f32 %v389, %v389
    %v798 = vmul.f32 %v394, %v394
    %v799 = vmul.f32 %v399, %v399
    %v800 = vmul.f32 %v404, %v404
    %v801 = vmul.f32 %v409, %v409
    %v802 = vmul.f32 %v414, %v414
    %v803 = vmul.f32 %v419, %v419
    %v804 = vmul.f32 %v424, %v424
    %v805 = vmul.f32 %v429, %v429
    %v806 = vmul.f32 %v434, %v434
    %v807 = vmul.f32 %v439, %v439
    %v808 = vmul.f32 %v444, %v444
    %v809 = vmul.f32 %v449, %v449
    %v810 = vmul.f32 %v454, %v454
    %v811 = vmul.f32 %v459, %v459
    %v812 = vmul.f32 %v464, %v464
    %v813 = vmul.f32 %v469, %v469
    %v814 = vmul.f32 %v474, %v474
    %v815 = vmul.f32 %v479, %v479
    %v816 = vmul.f32 %v484, %v484
    %v817 = vmul.f32 %v489, %v489
    %v818 = vmul.f32 %v494, %v494
    %v819 = vmul.f32 %v499, %v499
    %v820 = vmul.f32 %v504, %v504
    %v821 = vmul.f32 %v509, %v509
    %v822 = vmul.f32 %v514, %v514
    %v823 = vmul.f32 %v519, %v519
    %v824 = vmul.f32 %v524, %v524
    %v825 = vmul.f32 %v529, %v529
    %v826 = vmul.f32 %v534, %v534
    %v827 = vmul.f32 %v539, %v539
    %v828 = vmul.f32 %v544, %v544
    %v829 = vmul.f32 %v549, %v549
    %v830 = vmul.f32 %v554, %v554
    %v831 = vmul.f32 %v559, %v559
    %v832 = vmul.f32 %v564, %v564
    %v833 = vmul.f32 %v569, %v569
    %v834 = vsel %vm572, %v770, 0.0
    %v835 = vsel %vm572, %v771, 0.0
    %v836 = vadd.f32 %v834, %v835
    %v837 = vsel %vm572, %v772, 0.0
    %v838 = vadd.f32 %v836, %v837
    %v839 = vsel %vm572, %v773, 0.0
    %v840 = vadd.f32 %v838, %v839
    %v841 = vsel %vm572, %v774, 0.0
    %v842 = vadd.f32 %v840, %v841
    %v843 = vsel %vm572, %v775, 0.0
    %v844 = vadd.f32 %v842, %v843
    %v845 = vsel %vm572, %v776, 0.0
    %v846 = vadd.f32 %v844, %v845
    %v847 = vsel %vm572, %v777, 0.0
    %v848 = vadd.f32 %v846, %v847
    %v849 = vsel %vm572, %v778, 0.0
    %v850 = vadd.f32 %v848, %v849
    %v851 = vsel %vm572, %v779, 0.0
    %v852 = vadd.f32 %v850, %v851
    %v853 = vsel %vm572, %v780, 0.0
    %v854 = vadd.f32 %v852, %v853
    %v855 = vsel %vm572, %v781, 0.0
    %v856 = vadd.f32 %v854, %v855
    %v857 = vsel %vm572, %v782, 0.0
    %v858 = vadd.f32 %v856, %v857
    %v859 = vsel %vm572, %v783, 0.0
    %v860 = vadd.f32 %v858, %v859
    %v861 = vsel %vm572, %v784, 0.0
    %v862 = vadd.f32 %v860, %v861
    %v863 = vsel %vm572, %v785, 0.0
    %v864 = vadd.f32 %v862, %v863
    %v865 = vsel %vm572, %v786, 0.0
    %v866 = vadd.f32 %v864, %v865
    %v867 = vsel %vm572, %v787, 0.0
    %v868 = vadd.f32 %v866, %v867
    %v869 = vsel %vm572, %v788, 0.0
    %v870 = vadd.f32 %v868, %v869
    %v871 = vsel %vm572, %v789, 0.0
    %v872 = vadd.f32 %v870, %v871
    %v873 = vsel %vm572, %v790, 0.0
    %v874 = vadd.f32 %v872, %v873
    %v875 = vsel %vm572, %v791, 0.0
    %v876 = vadd.f32 %v874, %v875
    %v877 = vsel %vm572, %v792, 0.0
    %v878 = vadd.f32 %v876, %v877
    %v879 = vsel %vm572, %v793, 0.0
    %v880 = vadd.f32 %v878, %v879
    %v881 = vsel %vm572, %v794, 0.0
    %v882 = vadd.f32 %v880, %v881
    %v883 = vsel %vm572, %v795, 0.0
    %v884 = vadd.f32 %v882, %v883
    %v885 = vsel %vm572, %v796, 0.0
    %v886 = vadd.f32 %v884, %v885
    %v887 = vsel %vm572, %v797, 0.0
    %v888 = vadd.f32 %v886, %v887
    %v889 = vsel %vm572, %v798, 0.0
    %v890 = vadd.f32 %v888, %v889
    %v891 = vsel %vm572, %v799, 0.0
    %v892 = vadd.f32 %v890, %v891
    %v893 = vsel %vm572, %v800, 0.0
    %v894 = vadd.f32 %v892, %v893
    %v895 = vsel %vm572, %v801, 0.0
    %v896 = vadd.f32 %v894, %v895
    %v897 = vsel %vm572, %v802, 0.0
    %v898 = vadd.f32 %v896, %v897
    %v899 = vsel %vm572, %v803, 0.0
    %v900 = vadd.f32 %v898, %v899
    %v901 = vsel %vm572, %v804, 0.0
    %v902 = vadd.f32 %v900, %v901
    %v903 = vsel %vm572, %v805, 0.0
    %v904 = vadd.f32 %v902, %v903
    %v905 = vsel %vm572, %v806, 0.0
    %v906 = vadd.f32 %v904, %v905
    %v907 = vsel %vm572, %v807, 0.0
    %v908 = vadd.f32 %v906, %v907
    %v909 = vsel %vm572, %v808, 0.0
    %v910 = vadd.f32 %v908, %v909
    %v911 = vsel %vm572, %v809, 0.0
    %v912 = vadd.f32 %v910, %v911
    %v913 = vsel %vm572, %v810, 0.0
    %v914 = vadd.f32 %v912, %v913
    %v915 = vsel %vm572, %v811, 0.0
    %v916 = vadd.f32 %v914, %v915
    %v917 = vsel %vm572, %v812, 0.0
    %v918 = vadd.f32 %v916, %v917
    %v919 = vsel %vm572, %v813, 0.0
    %v920 = vadd.f32 %v918, %v919
    %v921 = vsel %vm572, %v814, 0.0
    %v922 = vadd.f32 %v920, %v921
    %v923 = vsel %vm572, %v815, 0.0
    %v924 = vadd.f32 %v922, %v923
    %v925 = vsel %vm572, %v816, 0.0
    %v926 = vadd.f32 %v924, %v925
    %v927 = vsel %vm572, %v817, 0.0
    %v928 = vadd.f32 %v926, %v927
    %v929 = vsel %vm572, %v818, 0.0
    %v930 = vadd.f32 %v928, %v929
    %v931 = vsel %vm572, %v819, 0.0
    %v932 = vadd.f32 %v930, %v931
    %v933 = vsel %vm572, %v820, 0.0
    %v934 = vadd.f32 %v932, %v933
    %v935 = vsel %vm572, %v821, 0.0
    %v936 = vadd.f32 %v934, %v935
    %v937 = vsel %vm572, %v822, 0.0
    %v938 = vadd.f32 %v936, %v937
    %v939 = vsel %vm572, %v823, 0.0
    %v940 = vadd.f32 %v938, %v939
    %v941 = vsel %vm572, %v824, 0.0
    %v942 = vadd.f32 %v940, %v941
    %v943 = vsel %vm572, %v825, 0.0
    %v944 = vadd.f32 %v942, %v943
    %v945 = vsel %vm572, %v826, 0.0
    %v946 = vadd.f32 %v944, %v945
    %v947 = vsel %vm572, %v827, 0.0
    %v948 = vadd.f32 %v946, %v947
    %v949 = vsel %vm572, %v828, 0.0
    %v950 = vadd.f32 %v948, %v949
    %v951 = vsel %vm572, %v829, 0.0
    %v952 = vadd.f32 %v950, %v951
    %v953 = vsel %vm572, %v830, 0.0
    %v954 = vadd.f32 %v952, %v953
    %v955 = vsel %vm572, %v831, 0.0
    %v956 = vadd.f32 %v954, %v955
    %v957 = vsel %vm572, %v832, 0.0
    %v958 = vadd.f32 %v956, %v957
    %v959 = vsel %vm572, %v833, 0.0
    %v960 = vadd.f32 %v958, %v959
    %v961 = vrot.slane %v960, 4
    %v962 = vadd.f32 %v960, %v961
    %v963 = vrot.slane %v962, 2
    %v964 = vadd.f32 %v962, %v963
    %v965 = vrot.slane %v964, 1
    %v966 = vadd.f32 %v964, %v965
    %968 = vrot.lane.b32.xlu0 %v966, 64
    %v969 = vpop.permute.xlu0 %968
    %v971 = vsel %vm572, %v769, %v969
    %972 = vst [vmem:[%s3] sm:$0x1] %v971
    // Predicated region
    $region14: #{bottleneck_forward.4} parent=1 // pred_check
      _
    $region15: #{bottleneck_forward.4} parent=1 // pred_check_branch
      %974 = sbr.rel (0) target = $region17
    $region16: #{bottleneck_forward.4} parent=1 // pred_region
      _
    $region17: #{bottleneck_forward.4} parent=1 // pred_fallthru
      _
    // Predicated region
    $region18: #{bottleneck_forward.4} parent=1 // pred_check
      _
    $region19: #{bottleneck_forward.4} parent=1 // pred_check_branch
      %976 = sbr.rel (0) target = $region21
    $region20: #{bottleneck_forward.4} parent=1 // pred_region
      _
    $region21: #{bottleneck_forward.4} parent=1 // pred_fallthru
      _
    // Predicated region
    $region22: #{bottleneck_forward.4} parent=1 // pred_check
      _
    $region23: #{bottleneck_forward.4} parent=1 // pred_check_branch
      %978 = sbr.rel (0) target = $region25
    $region24: #{bottleneck_forward.4} parent=1 // pred_region
      _
    $region25: #{bottleneck_forward.4} parent=1 // pred_fallthru
      _
    // Predicated region
    $region26: #{bottleneck_forward.4} parent=1 // pred_check
      _
    $region27: #{bottleneck_forward.4} parent=1 // pred_check_branch
      %980 = sbr.rel (0) target = $region29
    $region28: #{bottleneck_forward.4} parent=1 // pred_region
      _
    $region29: #{bottleneck_forward.4} parent=1 // pred_fallthru
      _
    %981 = vsyncpa [#allocation3], 1

// kernel: bottleneck_forward.6
$region0: #{bottleneck_forward.6}
  #allocation0 [shape = 'u32[]', space=smem, size = 0x4, offset = 0x4, fixed_abs, tag = 'smem constant byte address 0x4 - core index']
  #allocation1 [shape = 'u32[144,128]{1,0:T(1,128)}', space=vmem, size = 0x12000, scoped, tag = 'internal scratch']
  %s0 = inlined_call_operand.vmem [shape: f32[512,64], index: 0, kind: input, shape index: {}]
  %s1 = inlined_call_operand.vmem [shape: f32[1,64], index: 1, kind: input, shape index: {}]
  %s2 = inlined_call_operand.vmem [shape: f32[1,64], index: 2, kind: input, shape index: {}]
  %s3 = inlined_call_operand.vmem [shape: f32[64,256], index: 3, kind: input, shape index: {}]
  %s4 = inlined_call_operand.vmem [shape: f32[512,256], index: 4, kind: output, shape index: {0}]
  %s5 = inlined_call_operand.vmem [shape: f32[1,1,512], index: 5, kind: output, shape index: {1}]
  %6 = xla_tuple %s4, %s5
  %s7 = sld [smem:[#allocation0]]
  $region34: #{bottleneck_forward.6} parent=0
    _
  %s9 = ssub.s32 1, %s7
  %s10 = scalar_select 0, %s9, %s7
  // Predicated region
  $region2: #{bottleneck_forward.6} parent=0 // pred_check
    _
  $region3: #{bottleneck_forward.6} parent=0 // pred_check_branch
    %12 = sbr.rel (0) target = $region5
  $region4: #{bottleneck_forward.6} parent=0 // pred_region
    _
  $region5: #{bottleneck_forward.6} parent=0 // pred_fallthru
    _
  // Predicated region
  $region6: #{bottleneck_forward.6} parent=0 // pred_check
    _
  $region7: #{bottleneck_forward.6} parent=0 // pred_check_branch
    %14 = sbr.rel (0) target = $region9
  $region8: #{bottleneck_forward.6} parent=0 // pred_region
    _
  $region9: #{bottleneck_forward.6} parent=0 // pred_fallthru
    _
  // Predicated region
  $region10: #{bottleneck_forward.6} parent=0 // pred_check
    _
  $region11: #{bottleneck_forward.6} parent=0 // pred_check_branch
    %16 = sbr.rel (0) target = $region13
  $region12: #{bottleneck_forward.6} parent=0 // pred_region
    _
  $region13: #{bottleneck_forward.6} parent=0 // pred_fallthru
    _
  // Predicated region
  $region14: #{bottleneck_forward.6} parent=0 // pred_check
    _
  $region15: #{bottleneck_forward.6} parent=0 // pred_check_branch
    %18 = sbr.rel (0) target = $region17
  $region16: #{bottleneck_forward.6} parent=0 // pred_region
    _
  $region17: #{bottleneck_forward.6} parent=0 // pred_fallthru
    _
  %v19 = vld [vmem:[%s0] sm:$0xff]
  %v20 = vld [vmem:[%s0 + $0x8] sm:$0xff]
  %v21 = vld [vmem:[%s0 + $0x10] sm:$0xff]
  %v22 = vld [vmem:[%s0 + $0x18] sm:$0xff]
  %v23 = vld [vmem:[%s0 + $0x20] sm:$0xff]
  %v24 = vld [vmem:[%s0 + $0x28] sm:$0xff]
  %v25 = vld [vmem:[%s0 + $0x30] sm:$0xff]
  %v26 = vld [vmem:[%s0 + $0x38] sm:$0xff]
  %v27 = vld [vmem:[%s0 + $0x40] sm:$0xff]
  %v28 = vld [vmem:[%s0 + $0x48] sm:$0xff]
  %v29 = vld [vmem:[%s0 + $0x50] sm:$0xff]
  %v30 = vld [vmem:[%s0 + $0x58] sm:$0xff]
  %v31 = vld [vmem:[%s0 + $0x60] sm:$0xff]
  %v32 = vld [vmem:[%s0 + $0x68] sm:$0xff]
  %v33 = vld [vmem:[%s0 + $0x70] sm:$0xff]
  %v34 = vld [vmem:[%s0 + $0x78] sm:$0xff]
  %v35 = vld [vmem:[%s0 + $0x80] sm:$0xff]
  %v36 = vld [vmem:[%s0 + $0x88] sm:$0xff]
  %v37 = vld [vmem:[%s0 + $0x90] sm:$0xff]
  %v38 = vld [vmem:[%s0 + $0x98] sm:$0xff]
  %v39 = vld [vmem:[%s0 + $0xa0] sm:$0xff]
  %v40 = vld [vmem:[%s0 + $0xa8] sm:$0xff]
  %v41 = vld [vmem:[%s0 + $0xb0] sm:$0xff]
  %v42 = vld [vmem:[%s0 + $0xb8] sm:$0xff]
  %v43 = vld [vmem:[%s0 + $0xc0] sm:$0xff]
  %v44 = vld [vmem:[%s0 + $0xc8] sm:$0xff]
  %v45 = vld [vmem:[%s0 + $0xd0] sm:$0xff]
  %v46 = vld [vmem:[%s0 + $0xd8] sm:$0xff]
  %v47 = vld [vmem:[%s0 + $0xe0] sm:$0xff]
  %v48 = vld [vmem:[%s0 + $0xe8] sm:$0xff]
  %v49 = vld [vmem:[%s0 + $0xf0] sm:$0xff]
  %v50 = vld [vmem:[%s0 + $0xf8] sm:$0xff]
  %v51 = vld [vmem:[%s0 + $0x100] sm:$0xff]
  %v52 = vld [vmem:[%s0 + $0x108] sm:$0xff]
  %v53 = vld [vmem:[%s0 + $0x110] sm:$0xff]
  %v54 = vld [vmem:[%s0 + $0x118] sm:$0xff]
  %v55 = vld [vmem:[%s0 + $0x120] sm:$0xff]
  %v56 = vld [vmem:[%s0 + $0x128] sm:$0xff]
  %v57 = vld [vmem:[%s0 + $0x130] sm:$0xff]
  %v58 = vld [vmem:[%s0 + $0x138] sm:$0xff]
  %v59 = vld [vmem:[%s0 + $0x140] sm:$0xff]
  %v60 = vld [vmem:[%s0 + $0x148] sm:$0xff]
  %v61 = vld [vmem:[%s0 + $0x150] sm:$0xff]
  %v62 = vld [vmem:[%s0 + $0x158] sm:$0xff]
  %v63 = vld [vmem:[%s0 + $0x160] sm:$0xff]
  %v64 = vld [vmem:[%s0 + $0x168] sm:$0xff]
  %v65 = vld [vmem:[%s0 + $0x170] sm:$0xff]
  %v66 = vld [vmem:[%s0 + $0x178] sm:$0xff]
  %v67 = vld [vmem:[%s0 + $0x180] sm:$0xff]
  %v68 = vld [vmem:[%s0 + $0x188] sm:$0xff]
  %v69 = vld [vmem:[%s0 + $0x190] sm:$0xff]
  %v70 = vld [vmem:[%s0 + $0x198] sm:$0xff]
  %v71 = vld [vmem:[%s0 + $0x1a0] sm:$0xff]
  %v72 = vld [vmem:[%s0 + $0x1a8] sm:$0xff]
  %v73 = vld [vmem:[%s0 + $0x1b0] sm:$0xff]
  %v74 = vld [vmem:[%s0 + $0x1b8] sm:$0xff]
  %v75 = vld [vmem:[%s0 + $0x1c0] sm:$0xff]
  %v76 = vld [vmem:[%s0 + $0x1c8] sm:$0xff]
  %v77 = vld [vmem:[%s0 + $0x1d0] sm:$0xff]
  %v78 = vld [vmem:[%s0 + $0x1d8] sm:$0xff]
  %v79 = vld [vmem:[%s0 + $0x1e0] sm:$0xff]
  %v80 = vld [vmem:[%s0 + $0x1e8] sm:$0xff]
  %v81 = vld [vmem:[%s0 + $0x1f0] sm:$0xff]
  %v82 = vld [vmem:[%s0 + $0x1f8] sm:$0xff]
  %v83 = vld [vmem:[%s1] sm:$0x1]
  %v85 = vlaneseq
  %v86 = vshrl.u32 %v85, 7
  %v87 = vsub.s32 0, %v86
  %v88 = vrot.slane %v83, %v87
  %v90 = vmul.f32 %v19, %v88
  %v91 = vmul.f32 %v20, %v88
  %v92 = vmul.f32 %v21, %v88
  %v93 = vmul.f32 %v22, %v88
  %v94 = vmul.f32 %v23, %v88
  %v95 = vmul.f32 %v24, %v88
  %v96 = vmul.f32 %v25, %v88
  %v97 = vmul.f32 %v26, %v88
  %v98 = vmul.f32 %v27, %v88
  %v99 = vmul.f32 %v28, %v88
  %v100 = vmul.f32 %v29, %v88
  %v101 = vmul.f32 %v30, %v88
  %v102 = vmul.f32 %v31, %v88
  %v103 = vmul.f32 %v32, %v88
  %v104 = vmul.f32 %v33, %v88
  %v105 = vmul.f32 %v34, %v88
  %v106 = vmul.f32 %v35, %v88
  %v107 = vmul.f32 %v36, %v88
  %v108 = vmul.f32 %v37, %v88
  %v109 = vmul.f32 %v38, %v88
  %v110 = vmul.f32 %v39, %v88
  %v111 = vmul.f32 %v40, %v88
  %v112 = vmul.f32 %v41, %v88
  %v113 = vmul.f32 %v42, %v88
  %v114 = vmul.f32 %v43, %v88
  %v115 = vmul.f32 %v44, %v88
  %v116 = vmul.f32 %v45, %v88
  %v117 = vmul.f32 %v46, %v88
  %v118 = vmul.f32 %v47, %v88
  %v119 = vmul.f32 %v48, %v88
  %v120 = vmul.f32 %v49, %v88
  %v121 = vmul.f32 %v50, %v88
  %v122 = vmul.f32 %v51, %v88
  %v123 = vmul.f32 %v52, %v88
  %v124 = vmul.f32 %v53, %v88
  %v125 = vmul.f32 %v54, %v88
  %v126 = vmul.f32 %v55, %v88
  %v127 = vmul.f32 %v56, %v88
  %v128 = vmul.f32 %v57, %v88
  %v129 = vmul.f32 %v58, %v88
  %v130 = vmul.f32 %v59, %v88
  %v131 = vmul.f32 %v60, %v88
  %v132 = vmul.f32 %v61, %v88
  %v133 = vmul.f32 %v62, %v88
  %v134 = vmul.f32 %v63, %v88
  %v135 = vmul.f32 %v64, %v88
  %v136 = vmul.f32 %v65, %v88
  %v137 = vmul.f32 %v66, %v88
  %v138 = vmul.f32 %v67, %v88
  %v139 = vmul.f32 %v68, %v88
  %v140 = vmul.f32 %v69, %v88
  %v141 = vmul.f32 %v70, %v88
  %v142 = vmul.f32 %v71, %v88
  %v143 = vmul.f32 %v72, %v88
  %v144 = vmul.f32 %v73, %v88
  %v145 = vmul.f32 %v74, %v88
  %v146 = vmul.f32 %v75, %v88
  %v147 = vmul.f32 %v76, %v88
  %v148 = vmul.f32 %v77, %v88
  %v149 = vmul.f32 %v78, %v88
  %v150 = vmul.f32 %v79, %v88
  %v151 = vmul.f32 %v80, %v88
  %v152 = vmul.f32 %v81, %v88
  %v153 = vmul.f32 %v82, %v88
  %v154 = vld [vmem:[%s2] sm:$0x1]
  %v156 = vlaneseq
  %v157 = vshrl.u32 %v156, 7
  %v158 = vsub.s32 0, %v157
  %v159 = vrot.slane %v154, %v158
  %v161 = vadd.f32 %v90, %v159
  %v162 = vadd.f32 %v91, %v159
  %v163 = vadd.f32 %v92, %v159
  %v164 = vadd.f32 %v93, %v159
  %v165 = vadd.f32 %v94, %v159
  %v166 = vadd.f32 %v95, %v159
  %v167 = vadd.f32 %v96, %v159
  %v168 = vadd.f32 %v97, %v159
  %v169 = vadd.f32 %v98, %v159
  %v170 = vadd.f32 %v99, %v159
  %v171 = vadd.f32 %v100, %v159
  %v172 = vadd.f32 %v101, %v159
  %v173 = vadd.f32 %v102, %v159
  %v174 = vadd.f32 %v103, %v159
  %v175 = vadd.f32 %v104, %v159
  %v176 = vadd.f32 %v105, %v159
  %v177 = vadd.f32 %v106, %v159
  %v178 = vadd.f32 %v107, %v159
  %v179 = vadd.f32 %v108, %v159
  %v180 = vadd.f32 %v109, %v159
  %v181 = vadd.f32 %v110, %v159
  %v182 = vadd.f32 %v111, %v159
  %v183 = vadd.f32 %v112, %v159
  %v184 = vadd.f32 %v113, %v159
  %v185 = vadd.f32 %v114, %v159
  %v186 = vadd.f32 %v115, %v159
  %v187 = vadd.f32 %v116, %v159
  %v188 = vadd.f32 %v117, %v159
  %v189 = vadd.f32 %v118, %v159
  %v190 = vadd.f32 %v119, %v159
  %v191 = vadd.f32 %v120, %v159
  %v192 = vadd.f32 %v121, %v159
  %v193 = vadd.f32 %v122, %v159
  %v194 = vadd.f32 %v123, %v159
  %v195 = vadd.f32 %v124, %v159
  %v196 = vadd.f32 %v125, %v159
  %v197 = vadd.f32 %v126, %v159
  %v198 = vadd.f32 %v127, %v159
  %v199 = vadd.f32 %v128, %v159
  %v200 = vadd.f32 %v129, %v159
  %v201 = vadd.f32 %v130, %v159
  %v202 = vadd.f32 %v131, %v159
  %v203 = vadd.f32 %v132, %v159
  %v204 = vadd.f32 %v133, %v159
  %v205 = vadd.f32 %v134, %v159
  %v206 = vadd.f32 %v135, %v159
  %v207 = vadd.f32 %v136, %v159
  %v208 = vadd.f32 %v137, %v159
  %v209 = vadd.f32 %v138, %v159
  %v210 = vadd.f32 %v139, %v159
  %v211 = vadd.f32 %v140, %v159
  %v212 = vadd.f32 %v141, %v159
  %v213 = vadd.f32 %v142, %v159
  %v214 = vadd.f32 %v143, %v159
  %v215 = vadd.f32 %v144, %v159
  %v216 = vadd.f32 %v145, %v159
  %v217 = vadd.f32 %v146, %v159
  %v218 = vadd.f32 %v147, %v159
  %v219 = vadd.f32 %v148, %v159
  %v220 = vadd.f32 %v149, %v159
  %v221 = vadd.f32 %v150, %v159
  %v222 = vadd.f32 %v151, %v159
  %v223 = vadd.f32 %v152, %v159
  %v224 = vadd.f32 %v153, %v159
  %v225 = vmax.f32 %v161, 0.0
  %v226 = vmax.f32 %v162, 0.0
  %v227 = vmax.f32 %v163, 0.0
  %v228 = vmax.f32 %v164, 0.0
  %v229 = vmax.f32 %v165, 0.0
  %v230 = vmax.f32 %v166, 0.0
  %v231 = vmax.f32 %v167, 0.0
  %v232 = vmax.f32 %v168, 0.0
  %v233 = vmax.f32 %v169, 0.0
  %v234 = vmax.f32 %v170, 0.0
  %v235 = vmax.f32 %v171, 0.0
  %v236 = vmax.f32 %v172, 0.0
  %v237 = vmax.f32 %v173, 0.0
  %v238 = vmax.f32 %v174, 0.0
  %v239 = vmax.f32 %v175, 0.0
  %v240 = vmax.f32 %v176, 0.0
  %v241 = vmax.f32 %v177, 0.0
  %v242 = vmax.f32 %v178, 0.0
  %v243 = vmax.f32 %v179, 0.0
  %v244 = vmax.f32 %v180, 0.0
  %v245 = vmax.f32 %v181, 0.0
  %v246 = vmax.f32 %v182, 0.0
  %v247 = vmax.f32 %v183, 0.0
  %v248 = vmax.f32 %v184, 0.0
  %v249 = vmax.f32 %v185, 0.0
  %v250 = vmax.f32 %v186, 0.0
  %v251 = vmax.f32 %v187, 0.0
  %v252 = vmax.f32 %v188, 0.0
  %v253 = vmax.f32 %v189, 0.0
  %v254 = vmax.f32 %v190, 0.0
  %v255 = vmax.f32 %v191, 0.0
  %v256 = vmax.f32 %v192, 0.0
  %v257 = vmax.f32 %v193, 0.0
  %v258 = vmax.f32 %v194, 0.0
  %v259 = vmax.f32 %v195, 0.0
  %v260 = vmax.f32 %v196, 0.0
  %v261 = vmax.f32 %v197, 0.0
  %v262 = vmax.f32 %v198, 0.0
  %v263 = vmax.f32 %v199, 0.0
  %v264 = vmax.f32 %v200, 0.0
  %v265 = vmax.f32 %v201, 0.0
  %v266 = vmax.f32 %v202, 0.0
  %v267 = vmax.f32 %v203, 0.0
  %v268 = vmax.f32 %v204, 0.0
  %v269 = vmax.f32 %v205, 0.0
  %v270 = vmax.f32 %v206, 0.0
  %v271 = vmax.f32 %v207, 0.0
  %v272 = vmax.f32 %v208, 0.0
  %v273 = vmax.f32 %v209, 0.0
  %v274 = vmax.f32 %v210, 0.0
  %v275 = vmax.f32 %v211, 0.0
  %v276 = vmax.f32 %v212, 0.0
  %v277 = vmax.f32 %v213, 0.0
  %v278 = vmax.f32 %v214, 0.0
  %v279 = vmax.f32 %v215, 0.0
  %v280 = vmax.f32 %v216, 0.0
  %v281 = vmax.f32 %v217, 0.0
  %v282 = vmax.f32 %v218, 0.0
  %v283 = vmax.f32 %v219, 0.0
  %v284 = vmax.f32 %v220, 0.0
  %v285 = vmax.f32 %v221, 0.0
  %v286 = vmax.f32 %v222, 0.0
  %v287 = vmax.f32 %v223, 0.0
  %v288 = vmax.f32 %v224, 0.0
  %v289 = vld [vmem:[%s3] sm:$0xff]
  %v290 = vld [vmem:[%s3 + $0x8] sm:$0xff]
  %v291 = vld [vmem:[%s3 + $0x10] sm:$0xff]
  %v292 = vld [vmem:[%s3 + $0x18] sm:$0xff]
  %v293 = vld [vmem:[%s3 + $0x20] sm:$0xff]
  %v294 = vld [vmem:[%s3 + $0x28] sm:$0xff]
  %v295 = vld [vmem:[%s3 + $0x30] sm:$0xff]
  %v296 = vld [vmem:[%s3 + $0x38] sm:$0xff]
  %v297 = vld [vmem:[%s3 + $0x40] sm:$0xff]
  %v298 = vld [vmem:[%s3 + $0x48] sm:$0xff]
  %v299 = vld [vmem:[%s3 + $0x50] sm:$0xff]
  %v300 = vld [vmem:[%s3 + $0x58] sm:$0xff]
  %v301 = vld [vmem:[%s3 + $0x60] sm:$0xff]
  %v302 = vld [vmem:[%s3 + $0x68] sm:$0xff]
  %v303 = vld [vmem:[%s3 + $0x70] sm:$0xff]
  %v304 = vld [vmem:[%s3 + $0x78] sm:$0xff]
  %vm305 = vcmask 523264
  %v307 = vsel %vm305, %v225, 0
  %v310 = vsel %vm305, %v226, 0
  %v313 = vsel %vm305, %v227, 0
  %v316 = vsel %vm305, %v228, 0
  %v319 = vsel %vm305, %v229, 0
  %v322 = vsel %vm305, %v230, 0
  %v325 = vsel %vm305, %v231, 0
  %v328 = vsel %vm305, %v232, 0
  %v331 = vsel %vm305, %v233, 0
  %v334 = vsel %vm305, %v234, 0
  %v337 = vsel %vm305, %v235, 0
  %v340 = vsel %vm305, %v236, 0
  %v343 = vsel %vm305, %v237, 0
  %v346 = vsel %vm305, %v238, 0
  %v349 = vsel %vm305, %v239, 0
  %v352 = vsel %vm305, %v240, 0
  %v355 = vsel %vm305, %v241, 0
  %v358 = vsel %vm305, %v242, 0
  %v361 = vsel %vm305, %v243, 0
  %v364 = vsel %vm305, %v244, 0
  %v367 = vsel %vm305, %v245, 0
  %v370 = vsel %vm305, %v246, 0
  %v373 = vsel %vm305, %v247, 0
  %v376 = vsel %vm305, %v248, 0
  %v379 = vsel %vm305, %v249, 0
  %v382 = vsel %vm305, %v250, 0
  %v385 = vsel %vm305, %v251, 0
  %v388 = vsel %vm305, %v252, 0
  %v391 = vsel %vm305, %v253, 0
  %v394 = vsel %vm305, %v254, 0
  %v397 = vsel %vm305, %v255, 0
  %v400 = vsel %vm305, %v256, 0
  %v403 = vsel %vm305, %v257, 0
  %v406 = vsel %vm305, %v258, 0
  %v409 = vsel %vm305, %v259, 0
  %v412 = vsel %vm305, %v260, 0
  %v415 = vsel %vm305, %v261, 0
  %v418 = vsel %vm305, %v262, 0
  %v421 = vsel %vm305, %v263, 0
  %v424 = vsel %vm305, %v264, 0
  %v427 = vsel %vm305, %v265, 0
  %v430 = vsel %vm305, %v266, 0
  %v433 = vsel %vm305, %v267, 0
  %v436 = vsel %vm305, %v268, 0
  %v439 = vsel %vm305, %v269, 0
  %v442 = vsel %vm305, %v270, 0
  %v445 = vsel %vm305, %v271, 0
  %v448 = vsel %vm305, %v272, 0
  %v451 = vsel %vm305, %v273, 0
  %v454 = vsel %vm305, %v274, 0
  %v457 = vsel %vm305, %v275, 0
  %v460 = vsel %vm305, %v276, 0
  %v463 = vsel %vm305, %v277, 0
  %v466 = vsel %vm305, %v278, 0
  %v469 = vsel %vm305, %v279, 0
  %v472 = vsel %vm305, %v280, 0
  %v475 = vsel %vm305, %v281, 0
  %v478 = vsel %vm305, %v282, 0
  %v481 = vsel %vm305, %v283, 0
  %v484 = vsel %vm305, %v284, 0
  %v487 = vsel %vm305, %v285, 0
  %v490 = vsel %vm305, %v286, 0
  %v493 = vsel %vm305, %v287, 0
  %v496 = vsel %vm305, %v288, 0
  %498 = vmatprep.subr.mxu0 %v290
  %499 = vmatpush1.msra.mxu0 %v289
  %500 = vmatprep.subr.mxu0 %v292
  %501 = vmatpush1.msra.mxu0 %v291
  %502 = vmatprep.subr.mxu0 %v294
  %503 = vmatpush1.msra.mxu0 %v293
  %504 = vmatprep.subr.mxu0 %v296
  %505 = vmatpush1.msra.mxu0 %v295
  %506 = vmatprep.subr.mxu0 %v298
  %507 = vmatpush1.msra.mxu0 %v297
  %508 = vmatprep.subr.mxu0 %v300
  %509 = vmatpush1.msra.mxu0 %v299
  %510 = vmatprep.subr.mxu0 %v302
  %511 = vmatpush1.msra.mxu0 %v301
  %512 = vmatprep.subr.mxu0 %v304
  %513 = vmatpush1.msra.mxu0 %v303
  %514 = vmatprep.subr.mxu0 0.0
  %515 = vmatpush1.msra.mxu0 0.0
  %516 = vmatprep.subr.mxu0 0.0
  %517 = vmatpush1.msra.mxu0 0.0
  %518 = vmatprep.subr.mxu0 0.0
  %519 = vmatpush1.msra.mxu0 0.0
  %520 = vmatprep.subr.mxu0 0.0
  %521 = vmatpush1.msra.mxu0 0.0
  %522 = vmatprep.subr.mxu0 0.0
  %523 = vmatpush1.msra.mxu0 0.0
  %524 = vmatprep.subr.mxu0 0.0
  %525 = vmatpush1.msra.mxu0 0.0
  %526 = vmatprep.subr.mxu0 0.0
  %527 = vmatpush1.msra.mxu0 0.0
  %528 = vmatprep.subr.mxu0 0.0
  %529 = vmatpush1.msra.mxu0 0.0
  %530 = vmatprep.subr.mxu0 0.0
  %531 = vmatpush1.msra.mxu0 0.0
  %532 = vmatprep.subr.mxu0 0.0
  %533 = vmatpush1.msra.mxu0 0.0
  %534 = vmatprep.subr.mxu0 0.0
  %535 = vmatpush1.msra.mxu0 0.0
  %536 = vmatprep.subr.mxu0 0.0
  %537 = vmatpush1.msra.mxu0 0.0
  %538 = vmatprep.subr.mxu0 0.0
  %539 = vmatpush1.msra.mxu0 0.0
  %540 = vmatprep.subr.mxu0 0.0
  %541 = vmatpush1.msra.mxu0 0.0
  %542 = vmatprep.subr.mxu0 0.0
  %543 = vmatpush1.msra.mxu0 0.0
  %544 = vmatprep.subr.mxu0 0.0
  %545 = vmatpush1.msra.mxu0 0.0
  %546 = vmatprep.subr.mxu0 0.0
  %547 = vmatpush1.msra.mxu0 0.0
  %548 = vmatprep.subr.mxu0 0.0
  %549 = vmatpush1.msra.mxu0 0.0
  %550 = vmatprep.subr.mxu0 0.0
  %551 = vmatpush1.msra.mxu0 0.0
  %552 = vmatprep.subr.mxu0 0.0
  %553 = vmatpush1.msra.mxu0 0.0
  %554 = vmatprep.subr.mxu0 0.0
  %555 = vmatpush1.msra.mxu0 0.0
  %556 = vmatprep.subr.mxu0 0.0
  %557 = vmatpush1.msra.mxu0 0.0
  %558 = vmatprep.subr.mxu0 0.0
  %559 = vmatpush1.msra.mxu0 0.0
  %560 = vmatprep.subr.mxu0 0.0
  %561 = vmatpush1.msra.mxu0 0.0
  %562 = vmatprep.mubr.f32.mxu0 0.0
  %563 = vmatmul.mubr.f32.gmra.mrb[0].mxu0 %v307
  %v564 = vpop.f32.mrb[0].mxu0
  %v565 = vadd.f32 0.0, %v564
  %v566 = vpop.f32.mrb[0].mxu0
  %v567 = vadd.f32 0.0, %v566
  %568 = vmatprep.mubr.f32.mxu0 0.0
  %569 = vmatmul.mubr.f32.gmra.mrb[0].mxu0 %v310
  %v570 = vpop.f32.mrb[0].mxu0
  %v571 = vadd.f32 0.0, %v570
  %v572 = vpop.f32.mrb[0].mxu0
  %v573 = vadd.f32 0.0, %v572
  %574 = vmatprep.mubr.f32.mxu0 0.0
  %575 = vmatmul.mubr.f32.gmra.mrb[0].mxu0 %v313
  %v576 = vpop.f32.mrb[0].mxu0
  %v577 = vadd.f32 0.0, %v576
  %v578 = vpop.f32.mrb[0].mxu0
  %v579 = vadd.f32 0.0, %v578
  %580 = vmatprep.mubr.f32.mxu0 0.0
  %581 = vmatmul.mubr.f32.gmra.mrb[0].mxu0 %v316
  %v582 = vpop.f32.mrb[0].mxu0
  %v583 = vadd.f32 0.0, %v582
  %v584 = vpop.f32.mrb[0].mxu0
  %v585 = vadd.f32 0.0, %v584
  %586 = vmatprep.mubr.f32.mxu0 0.0
  %587 = vmatmul.mubr.f32.gmra.mrb[0].mxu0 %v319
  %v588 = vpop.f32.mrb[0].mxu0
  %v589 = vadd.f32 0.0, %v588
  %v590 = vpop.f32.mrb[0].mxu0
  %v591 = vadd.f32 0.0, %v590
  %592 = vmatprep.mubr.f32.mxu0 0.0
  %593 = vmatmul.mubr.f32.gmra.mrb[0].mxu0 %v322
  %v594 = vpop.f32.mrb[0].mxu0
  %v595 = vadd.f32 0.0, %v594
  %v596 = vpop.f32.mrb[0].mxu0
  %v597 = vadd.f32 0.0, %v596
  %598 = vmatprep.mubr.f32.mxu0 0.0
  %599 = vmatmul.mubr.f32.gmra.mrb[0].mxu0 %v325
  %v600 = vpop.f32.mrb[0].mxu0
  %v601 = vadd.f32 0.0, %v600
  %v602 = vpop.f32.mrb[0].mxu0
  %v603 = vadd.f32 0.0, %v602
  %604 = vmatprep.mubr.f32.mxu0 0.0
  %605 = vmatmul.mubr.f32.gmra.mrb[0].mxu0 %v328
  %v606 = vpop.f32.mrb[0].mxu0
  %v607 = vadd.f32 0.0, %v606
  %v608 = vpop.f32.mrb[0].mxu0
  %v609 = vadd.f32 0.0, %v608
  %610 = vmatprep.mubr.f32.mxu0 0.0
  %611 = vmatmul.mubr.f32.gmra.mrb[0].mxu0 %v331
  %v612 = vpop.f32.mrb[0].mxu0
  %v613 = vadd.f32 0.0, %v612
  %v614 = vpop.f32.mrb[0].mxu0
  %v615 = vadd.f32 0.0, %v614
  %616 = vmatprep.mubr.f32.mxu0 0.0
  %617 = vmatmul.mubr.f32.gmra.mrb[0].mxu0 %v334
  %v618 = vpop.f32.mrb[0].mxu0
  %v619 = vadd.f32 0.0, %v618
  %v620 = vpop.f32.mrb[0].mxu0
  %v621 = vadd.f32 0.0, %v620
  %622 = vmatprep.mubr.f32.mxu0 0.0
  %623 = vmatmul.mubr.f32.gmra.mrb[0].mxu0 %v337
  %v624 = vpop.f32.mrb[0].mxu0
  %v625 = vadd.f32 0.0, %v624
  %v626 = vpop.f32.mrb[0].mxu0
  %v627 = vadd.f32 0.0, %v626
  %628 = vmatprep.mubr.f32.mxu0 0.0
  %629 = vmatmul.mubr.f32.gmra.mrb[0].mxu0 %v340
  %v630 = vpop.f32.mrb[0].mxu0
  %v631 = vadd.f32 0.0, %v630
  %v632 = vpop.f32.mrb[0].mxu0
  %v633 = vadd.f32 0.0, %v632
  %634 = vmatprep.mubr.f32.mxu0 0.0
  %635 = vmatmul.mubr.f32.gmra.mrb[0].mxu0 %v343
  %v636 = vpop.f32.mrb[0].mxu0
  %v637 = vadd.f32 0.0, %v636
  %v638 = vpop.f32.mrb[0].mxu0
  %v639 = vadd.f32 0.0, %v638
  %640 = vmatprep.mubr.f32.mxu0 0.0
  %641 = vmatmul.mubr.f32.gmra.mrb[0].mxu0 %v346
  %v642 = vpop.f32.mrb[0].mxu0
  %v643 = vadd.f32 0.0, %v642
  %v644 = vpop.f32.mrb[0].mxu0
  %v645 = vadd.f32 0.0, %v644
  %646 = vmatprep.mubr.f32.mxu0 0.0
  %647 = vmatmul.mubr.f32.gmra.mrb[0].mxu0 %v349
  %v648 = vpop.f32.mrb[0].mxu0
  %v649 = vadd.f32 0.0, %v648
  %v650 = vpop.f32.mrb[0].mxu0
  %v651 = vadd.f32 0.0, %v650
  %652 = vmatprep.mubr.f32.mxu0 0.0
  %653 = vmatmul.mubr.f32.gmra.mrb[0].mxu0 %v352
  %v654 = vpop.f32.mrb[0].mxu0
  %v655 = vadd.f32 0.0, %v654
  %v656 = vpop.f32.mrb[0].mxu0
  %v657 = vadd.f32 0.0, %v656
  %658 = vmatprep.mubr.f32.mxu0 0.0
  %659 = vmatmul.mubr.f32.gmra.mrb[0].mxu0 %v355
  %v660 = vpop.f32.mrb[0].mxu0
  %v661 = vadd.f32 0.0, %v660
  %v662 = vpop.f32.mrb[0].mxu0
  %v663 = vadd.f32 0.0, %v662
  %664 = vmatprep.mubr.f32.mxu0 0.0
  %665 = vmatmul.mubr.f32.gmra.mrb[0].mxu0 %v358
  %v666 = vpop.f32.mrb[0].mxu0
  %v667 = vadd.f32 0.0, %v666
  %v668 = vpop.f32.mrb[0].mxu0
  %v669 = vadd.f32 0.0, %v668
  %670 = vmatprep.mubr.f32.mxu0 0.0
  %671 = vmatmul.mubr.f32.gmra.mrb[0].mxu0 %v361
  %v672 = vpop.f32.mrb[0].mxu0
  %v673 = vadd.f32 0.0, %v672
  %v674 = vpop.f32.mrb[0].mxu0
  %v675 = vadd.f32 0.0, %v674
  %676 = vmatprep.mubr.f32.mxu0 0.0
  %677 = vmatmul.mubr.f32.gmra.mrb[0].mxu0 %v364
  %v678 = vpop.f32.mrb[0].mxu0
  %v679 = vadd.f32 0.0, %v678
  %v680 = vpop.f32.mrb[0].mxu0
  %v681 = vadd.f32 0.0, %v680
  %682 = vmatprep.mubr.f32.mxu0 0.0
  %683 = vmatmul.mubr.f32.gmra.mrb[0].mxu0 %v367
  %v684 = vpop.f32.mrb[0].mxu0
  %v685 = vadd.f32 0.0, %v684
  %v686 = vpop.f32.mrb[0].mxu0
  %v687 = vadd.f32 0.0, %v686
  %688 = vmatprep.mubr.f32.mxu0 0.0
  %689 = vmatmul.mubr.f32.gmra.mrb[0].mxu0 %v370
  %v690 = vpop.f32.mrb[0].mxu0
  %v691 = vadd.f32 0.0, %v690
  %v692 = vpop.f32.mrb[0].mxu0
  %v693 = vadd.f32 0.0, %v692
  %694 = vmatprep.mubr.f32.mxu0 0.0
  %695 = vmatmul.mubr.f32.gmra.mrb[0].mxu0 %v373
  %v696 = vpop.f32.mrb[0].mxu0
  %v697 = vadd.f32 0.0, %v696
  %v698 = vpop.f32.mrb[0].mxu0
  %v699 = vadd.f32 0.0, %v698
  %700 = vmatprep.mubr.f32.mxu0 0.0
  %701 = vmatmul.mubr.f32.gmra.mrb[0].mxu0 %v376
  %v702 = vpop.f32.mrb[0].mxu0
  %v703 = vadd.f32 0.0, %v702
  %v704 = vpop.f32.mrb[0].mxu0
  %v705 = vadd.f32 0.0, %v704
  %706 = vmatprep.mubr.f32.mxu0 0.0
  %707 = vmatmul.mubr.f32.gmra.mrb[0].mxu0 %v379
  %v708 = vpop.f32.mrb[0].mxu0
  %v709 = vadd.f32 0.0, %v708
  %v710 = vpop.f32.mrb[0].mxu0
  %v711 = vadd.f32 0.0, %v710
  %712 = vmatprep.mubr.f32.mxu0 0.0
  %713 = vmatmul.mubr.f32.gmra.mrb[0].mxu0 %v382
  %v714 = vpop.f32.mrb[0].mxu0
  %v715 = vadd.f32 0.0, %v714
  %v716 = vpop.f32.mrb[0].mxu0
  %v717 = vadd.f32 0.0, %v716
  %718 = vmatprep.mubr.f32.mxu0 0.0
  %719 = vmatmul.mubr.f32.gmra.mrb[0].mxu0 %v385
  %v720 = vpop.f32.mrb[0].mxu0
  %v721 = vadd.f32 0.0, %v720
  %v722 = vpop.f32.mrb[0].mxu0
  %v723 = vadd.f32 0.0, %v722
  %724 = vmatprep.mubr.f32.mxu0 0.0
  %725 = vmatmul.mubr.f32.gmra.mrb[0].mxu0 %v388
  %v726 = vpop.f32.mrb[0].mxu0
  %v727 = vadd.f32 0.0, %v726
  %v728 = vpop.f32.mrb[0].mxu0
  %v729 = vadd.f32 0.0, %v728
  %730 = vmatprep.mubr.f32.mxu0 0.0
  %731 = vmatmul.mubr.f32.gmra.mrb[0].mxu0 %v391
  %v732 = vpop.f32.mrb[0].mxu0
  %v733 = vadd.f32 0.0, %v732
  %v734 = vpop.f32.mrb[0].mxu0
  %v735 = vadd.f32 0.0, %v734
  %736 = vmatprep.mubr.f32.mxu0 0.0
  %737 = vmatmul.mubr.f32.gmra.mrb[0].mxu0 %v394
  %v738 = vpop.f32.mrb[0].mxu0
  %v739 = vadd.f32 0.0, %v738
  %v740 = vpop.f32.mrb[0].mxu0
  %v741 = vadd.f32 0.0, %v740
  %742 = vmatprep.mubr.f32.mxu0 0.0
  %743 = vmatmul.mubr.f32.gmra.mrb[0].mxu0 %v397
  %v744 = vpop.f32.mrb[0].mxu0
  %v745 = vadd.f32 0.0, %v744
  %v746 = vpop.f32.mrb[0].mxu0
  %v747 = vadd.f32 0.0, %v746
  %748 = vmatprep.mubr.f32.mxu0 0.0
  %749 = vmatmul.mubr.f32.gmra.mrb[0].mxu0 %v400
  %v750 = vpop.f32.mrb[0].mxu0
  %v751 = vadd.f32 0.0, %v750
  %v752 = vpop.f32.mrb[0].mxu0
  %v753 = vadd.f32 0.0, %v752
  %754 = vmatprep.mubr.f32.mxu0 0.0
  %755 = vmatmul.mubr.f32.gmra.mrb[0].mxu0 %v403
  %v756 = vpop.f32.mrb[0].mxu0
  %v757 = vadd.f32 0.0, %v756
  %v758 = vpop.f32.mrb[0].mxu0
  %v759 = vadd.f32 0.0, %v758
  %760 = vmatprep.mubr.f32.mxu0 0.0
  %761 = vmatmul.mubr.f32.gmra.mrb[0].mxu0 %v406
  %v762 = vpop.f32.mrb[0].mxu0
  %v763 = vadd.f32 0.0, %v762
  %v764 = vpop.f32.mrb[0].mxu0
  %v765 = vadd.f32 0.0, %v764
  %766 = vmatprep.mubr.f32.mxu0 0.0
  %767 = vmatmul.mubr.f32.gmra.mrb[0].mxu0 %v409
  %v768 = vpop.f32.mrb[0].mxu0
  %v769 = vadd.f32 0.0, %v768
  %v770 = vpop.f32.mrb[0].mxu0
  %v771 = vadd.f32 0.0, %v770
  %772 = vmatprep.mubr.f32.mxu0 0.0
  %773 = vmatmul.mubr.f32.gmra.mrb[0].mxu0 %v412
  %v774 = vpop.f32.mrb[0].mxu0
  %v775 = vadd.f32 0.0, %v774
  %v776 = vpop.f32.mrb[0].mxu0
  %v777 = vadd.f32 0.0, %v776
  %778 = vmatprep.mubr.f32.mxu0 0.0
  %779 = vmatmul.mubr.f32.gmra.mrb[0].mxu0 %v415
  %v780 = vpop.f32.mrb[0].mxu0
  %v781 = vadd.f32 0.0, %v780
  %v782 = vpop.f32.mrb[0].mxu0
  %v783 = vadd.f32 0.0, %v782
  %784 = vmatprep.mubr.f32.mxu0 0.0
  %785 = vmatmul.mubr.f32.gmra.mrb[0].mxu0 %v418
  %v786 = vpop.f32.mrb[0].mxu0
  %v787 = vadd.f32 0.0, %v786
  %v788 = vpop.f32.mrb[0].mxu0
  %v789 = vadd.f32 0.0, %v788
  %790 = vmatprep.mubr.f32.mxu0 0.0
  %791 = vmatmul.mubr.f32.gmra.mrb[0].mxu0 %v421
  %v792 = vpop.f32.mrb[0].mxu0
  %v793 = vadd.f32 0.0, %v792
  %v794 = vpop.f32.mrb[0].mxu0
  %v795 = vadd.f32 0.0, %v794
  %796 = vmatprep.mubr.f32.mxu0 0.0
  %797 = vmatmul.mubr.f32.gmra.mrb[0].mxu0 %v424
  %v798 = vpop.f32.mrb[0].mxu0
  %v799 = vadd.f32 0.0, %v798
  %v800 = vpop.f32.mrb[0].mxu0
  %v801 = vadd.f32 0.0, %v800
  %802 = vmatprep.mubr.f32.mxu0 0.0
  %803 = vmatmul.mubr.f32.gmra.mrb[0].mxu0 %v427
  %v804 = vpop.f32.mrb[0].mxu0
  %v805 = vadd.f32 0.0, %v804
  %v806 = vpop.f32.mrb[0].mxu0
  %v807 = vadd.f32 0.0, %v806
  %808 = vmatprep.mubr.f32.mxu0 0.0
  %809 = vmatmul.mubr.f32.gmra.mrb[0].mxu0 %v430
  %v810 = vpop.f32.mrb[0].mxu0
  %v811 = vadd.f32 0.0, %v810
  %v812 = vpop.f32.mrb[0].mxu0
  %v813 = vadd.f32 0.0, %v812
  %814 = vmatprep.mubr.f32.mxu0 0.0
  %815 = vmatmul.mubr.f32.gmra.mrb[0].mxu0 %v433
  %v816 = vpop.f32.mrb[0].mxu0
  %v817 = vadd.f32 0.0, %v816
  %v818 = vpop.f32.mrb[0].mxu0
  %v819 = vadd.f32 0.0, %v818
  %820 = vmatprep.mubr.f32.mxu0 0.0
  %821 = vmatmul.mubr.f32.gmra.mrb[0].mxu0 %v436
  %v822 = vpop.f32.mrb[0].mxu0
  %v823 = vadd.f32 0.0, %v822
  %v824 = vpop.f32.mrb[0].mxu0
  %v825 = vadd.f32 0.0, %v824
  %826 = vmatprep.mubr.f32.mxu0 0.0
  %827 = vmatmul.mubr.f32.gmra.mrb[0].mxu0 %v439
  %v828 = vpop.f32.mrb[0].mxu0
  %v829 = vadd.f32 0.0, %v828
  %v830 = vpop.f32.mrb[0].mxu0
  %v831 = vadd.f32 0.0, %v830
  %832 = vmatprep.mubr.f32.mxu0 0.0
  %833 = vmatmul.mubr.f32.gmra.mrb[0].mxu0 %v442
  %v834 = vpop.f32.mrb[0].mxu0
  %v835 = vadd.f32 0.0, %v834
  %v836 = vpop.f32.mrb[0].mxu0
  %v837 = vadd.f32 0.0, %v836
  %838 = vmatprep.mubr.f32.mxu0 0.0
  %839 = vmatmul.mubr.f32.gmra.mrb[0].mxu0 %v445
  %v840 = vpop.f32.mrb[0].mxu0
  %v841 = vadd.f32 0.0, %v840
  %v842 = vpop.f32.mrb[0].mxu0
  %v843 = vadd.f32 0.0, %v842
  %844 = vmatprep.mubr.f32.mxu0 0.0
  %845 = vmatmul.mubr.f32.gmra.mrb[0].mxu0 %v448
  %v846 = vpop.f32.mrb[0].mxu0
  %v847 = vadd.f32 0.0, %v846
  %v848 = vpop.f32.mrb[0].mxu0
  %v849 = vadd.f32 0.0, %v848
  %850 = vmatprep.mubr.f32.mxu0 0.0
  %851 = vmatmul.mubr.f32.gmra.mrb[0].mxu0 %v451
  %v852 = vpop.f32.mrb[0].mxu0
  %v853 = vadd.f32 0.0, %v852
  %v854 = vpop.f32.mrb[0].mxu0
  %v855 = vadd.f32 0.0, %v854
  %856 = vmatprep.mubr.f32.mxu0 0.0
  %857 = vmatmul.mubr.f32.gmra.mrb[0].mxu0 %v454
  %v858 = vpop.f32.mrb[0].mxu0
  %v859 = vadd.f32 0.0, %v858
  %v860 = vpop.f32.mrb[0].mxu0
  %v861 = vadd.f32 0.0, %v860
  %862 = vmatprep.mubr.f32.mxu0 0.0
  %863 = vmatmul.mubr.f32.gmra.mrb[0].mxu0 %v457
  %v864 = vpop.f32.mrb[0].mxu0
  %v865 = vadd.f32 0.0, %v864
  %v866 = vpop.f32.mrb[0].mxu0
  %v867 = vadd.f32 0.0, %v866
  %868 = vmatprep.mubr.f32.mxu0 0.0
  %869 = vmatmul.mubr.f32.gmra.mrb[0].mxu0 %v460
  %v870 = vpop.f32.mrb[0].mxu0
  %v871 = vadd.f32 0.0, %v870
  %v872 = vpop.f32.mrb[0].mxu0
  %v873 = vadd.f32 0.0, %v872
  %874 = vmatprep.mubr.f32.mxu0 0.0
  %875 = vmatmul.mubr.f32.gmra.mrb[0].mxu0 %v463
  %v876 = vpop.f32.mrb[0].mxu0
  %v877 = vadd.f32 0.0, %v876
  %v878 = vpop.f32.mrb[0].mxu0
  %v879 = vadd.f32 0.0, %v878
  %880 = vmatprep.mubr.f32.mxu0 0.0
  %881 = vmatmul.mubr.f32.gmra.mrb[0].mxu0 %v466
  %v882 = vpop.f32.mrb[0].mxu0
  %v883 = vadd.f32 0.0, %v882
  %v884 = vpop.f32.mrb[0].mxu0
  %v885 = vadd.f32 0.0, %v884
  %886 = vmatprep.mubr.f32.mxu0 0.0
  %887 = vmatmul.mubr.f32.gmra.mrb[0].mxu0 %v469
  %v888 = vpop.f32.mrb[0].mxu0
  %v889 = vadd.f32 0.0, %v888
  %v890 = vpop.f32.mrb[0].mxu0
  %v891 = vadd.f32 0.0, %v890
  %892 = vmatprep.mubr.f32.mxu0 0.0
  %893 = vmatmul.mubr.f32.gmra.mrb[0].mxu0 %v472
  %v894 = vpop.f32.mrb[0].mxu0
  %v895 = vadd.f32 0.0, %v894
  %v896 = vpop.f32.mrb[0].mxu0
  %v897 = vadd.f32 0.0, %v896
  %898 = vmatprep.mubr.f32.mxu0 0.0
  %899 = vmatmul.mubr.f32.gmra.mrb[0].mxu0 %v475
  %v900 = vpop.f32.mrb[0].mxu0
  %v901 = vadd.f32 0.0, %v900
  %v902 = vpop.f32.mrb[0].mxu0
  %v903 = vadd.f32 0.0, %v902
  %904 = vmatprep.mubr.f32.mxu0 0.0
  %905 = vmatmul.mubr.f32.gmra.mrb[0].mxu0 %v478
  %v906 = vpop.f32.mrb[0].mxu0
  %v907 = vadd.f32 0.0, %v906
  %v908 = vpop.f32.mrb[0].mxu0
  %v909 = vadd.f32 0.0, %v908
  %910 = vmatprep.mubr.f32.mxu0 0.0
  %911 = vmatmul.mubr.f32.gmra.mrb[0].mxu0 %v481
  %v912 = vpop.f32.mrb[0].mxu0
  %v913 = vadd.f32 0.0, %v912
  %v914 = vpop.f32.mrb[0].mxu0
  %v915 = vadd.f32 0.0, %v914
  %916 = vmatprep.mubr.f32.mxu0 0.0
  %917 = vmatmul.mubr.f32.gmra.mrb[0].mxu0 %v484
  %v918 = vpop.f32.mrb[0].mxu0
  %v919 = vadd.f32 0.0, %v918
  %v920 = vpop.f32.mrb[0].mxu0
  %v921 = vadd.f32 0.0, %v920
  %922 = vmatprep.mubr.f32.mxu0 0.0
  %923 = vmatmul.mubr.f32.gmra.mrb[0].mxu0 %v487
  %v924 = vpop.f32.mrb[0].mxu0
  %v925 = vadd.f32 0.0, %v924
  %v926 = vpop.f32.mrb[0].mxu0
  %v927 = vadd.f32 0.0, %v926
  %928 = vmatprep.mubr.f32.mxu0 0.0
  %929 = vmatmul.mubr.f32.gmra.mrb[0].mxu0 %v490
  %v930 = vpop.f32.mrb[0].mxu0
  %v931 = vadd.f32 0.0, %v930
  %v932 = vpop.f32.mrb[0].mxu0
  %v933 = vadd.f32 0.0, %v932
  %934 = vmatprep.mubr.f32.mxu0 0.0
  %935 = vmatmul.mubr.f32.gmra.mrb[0].mxu0 %v493
  %v936 = vpop.f32.mrb[0].mxu0
  %v937 = vadd.f32 0.0, %v936
  %v938 = vpop.f32.mrb[0].mxu0
  %v939 = vadd.f32 0.0, %v938
  %940 = vmatprep.mubr.f32.mxu0 0.0
  %941 = vmatmul.mubr.f32.gmra.mrb[0].mxu0 %v496
  %v942 = vpop.f32.mrb[0].mxu0
  %v943 = vadd.f32 0.0, %v942
  %v944 = vpop.f32.mrb[0].mxu0
  %v945 = vadd.f32 0.0, %v944
  %946 = vdwg.mxu0
  %947 = vst [vmem:[%s4] sm:$0xff] %v565
  %948 = vst [vmem:[%s4 + $0x8] sm:$0xff] %v567
  %949 = vst [vmem:[%s4 + $0x10] sm:$0xff] %v571
  %950 = vst [vmem:[%s4 + $0x18] sm:$0xff] %v573
  %951 = vst [vmem:[%s4 + $0x20] sm:$0xff] %v577
  %952 = vst [vmem:[%s4 + $0x28] sm:$0xff] %v579
  %953 = vst [vmem:[%s4 + $0x30] sm:$0xff] %v583
  %954 = vst [vmem:[%s4 + $0x38] sm:$0xff] %v585
  %955 = vst [vmem:[%s4 + $0x40] sm:$0xff] %v589
  %956 = vst [vmem:[%s4 + $0x48] sm:$0xff] %v591
  %957 = vst [vmem:[%s4 + $0x50] sm:$0xff] %v595
  %958 = vst [vmem:[%s4 + $0x58] sm:$0xff] %v597
  %959 = vst [vmem:[%s4 + $0x60] sm:$0xff] %v601
  %960 = vst [vmem:[%s4 + $0x68] sm:$0xff] %v603
  %961 = vst [vmem:[%s4 + $0x70] sm:$0xff] %v607
  %962 = vst [vmem:[%s4 + $0x78] sm:$0xff] %v609
  %963 = vst [vmem:[%s4 + $0x80] sm:$0xff] %v613
  %964 = vst [vmem:[%s4 + $0x88] sm:$0xff] %v615
  %965 = vst [vmem:[%s4 + $0x90] sm:$0xff] %v619
  %966 = vst [vmem:[%s4 + $0x98] sm:$0xff] %v621
  %967 = vst [vmem:[%s4 + $0xa0] sm:$0xff] %v625
  %968 = vst [vmem:[%s4 + $0xa8] sm:$0xff] %v627
  %969 = vst [vmem:[%s4 + $0xb0] sm:$0xff] %v631
  %970 = vst [vmem:[%s4 + $0xb8] sm:$0xff] %v633
  %971 = vst [vmem:[%s4 + $0xc0] sm:$0xff] %v637
  %972 = vst [vmem:[%s4 + $0xc8] sm:$0xff] %v639
  %973 = vst [vmem:[%s4 + $0xd0] sm:$0xff] %v643
  %974 = vst [vmem:[%s4 + $0xd8] sm:$0xff] %v645
  %975 = vst [vmem:[%s4 + $0xe0] sm:$0xff] %v649
  %976 = vst [vmem:[%s4 + $0xe8] sm:$0xff] %v651
  %977 = vst [vmem:[%s4 + $0xf0] sm:$0xff] %v655
  %978 = vst [vmem:[%s4 + $0xf8] sm:$0xff] %v657
  %979 = vst [vmem:[%s4 + $0x100] sm:$0xff] %v661
  %980 = vst [vmem:[%s4 + $0x108] sm:$0xff] %v663
  %981 = vst [vmem:[%s4 + $0x110] sm:$0xff] %v667
  %982 = vst [vmem:[%s4 + $0x118] sm:$0xff] %v669
  %983 = vst [vmem:[%s4 + $0x120] sm:$0xff] %v673
  %984 = vst [vmem:[%s4 + $0x128] sm:$0xff] %v675
  %985 = vst [vmem:[%s4 + $0x130] sm:$0xff] %v679
  %986 = vst [vmem:[%s4 + $0x138] sm:$0xff] %v681
  %987 = vst [vmem:[%s4 + $0x140] sm:$0xff] %v685
  %988 = vst [vmem:[%s4 + $0x148] sm:$0xff] %v687
  %989 = vst [vmem:[%s4 + $0x150] sm:$0xff] %v691
  %990 = vst [vmem:[%s4 + $0x158] sm:$0xff] %v693
  %991 = vst [vmem:[%s4 + $0x160] sm:$0xff] %v697
  %992 = vst [vmem:[%s4 + $0x168] sm:$0xff] %v699
  %993 = vst [vmem:[%s4 + $0x170] sm:$0xff] %v703
  %994 = vst [vmem:[%s4 + $0x178] sm:$0xff] %v705
  %995 = vst [vmem:[%s4 + $0x180] sm:$0xff] %v709
  %996 = vst [vmem:[%s4 + $0x188] sm:$0xff] %v711
  %997 = vst [vmem:[%s4 + $0x190] sm:$0xff] %v715
  %998 = vst [vmem:[%s4 + $0x198] sm:$0xff] %v717
  %999 = vst [vmem:[%s4 + $0x1a0] sm:$0xff] %v721
  %1000 = vst [vmem:[%s4 + $0x1a8] sm:$0xff] %v723
  %1001 = vst [vmem:[%s4 + $0x1b0] sm:$0xff] %v727
  %1002 = vst [vmem:[%s4 + $0x1b8] sm:$0xff] %v729
  %1003 = vst [vmem:[%s4 + $0x1c0] sm:$0xff] %v733
  %1004 = vst [vmem:[%s4 + $0x1c8] sm:$0xff] %v735
  %1005 = vst [vmem:[%s4 + $0x1d0] sm:$0xff] %v739
  %1006 = vst [vmem:[%s4 + $0x1d8] sm:$0xff] %v741
  %1007 = vst [vmem:[%s4 + $0x1e0] sm:$0xff] %v745
  %1008 = vst [vmem:[%s4 + $0x1e8] sm:$0xff] %v747
  %1009 = vst [vmem:[%s4 + $0x1f0] sm:$0xff] %v751
  %1010 = vst [vmem:[%s4 + $0x1f8] sm:$0xff] %v753
  %1011 = vst [vmem:[%s4 + $0x200] sm:$0xff] %v757
  %1012 = vst [vmem:[%s4 + $0x208] sm:$0xff] %v759
  %1013 = vst [vmem:[%s4 + $0x210] sm:$0xff] %v763
  %1014 = vst [vmem:[%s4 + $0x218] sm:$0xff] %v765
  %1015 = vst [vmem:[%s4 + $0x220] sm:$0xff] %v769
  %1016 = vst [vmem:[%s4 + $0x228] sm:$0xff] %v771
  %1017 = vst [vmem:[%s4 + $0x230] sm:$0xff] %v775
  %1018 = vst [vmem:[%s4 + $0x238] sm:$0xff] %v777
  %1019 = vst [vmem:[%s4 + $0x240] sm:$0xff] %v781
  %1020 = vst [vmem:[%s4 + $0x248] sm:$0xff] %v783
  %1021 = vst [vmem:[%s4 + $0x250] sm:$0xff] %v787
  %1022 = vst [vmem:[%s4 + $0x258] sm:$0xff] %v789
  %1023 = vst [vmem:[%s4 + $0x260] sm:$0xff] %v793
  %1024 = vst [vmem:[%s4 + $0x268] sm:$0xff] %v795
  %1025 = vst [vmem:[%s4 + $0x270] sm:$0xff] %v799
  %1026 = vst [vmem:[%s4 + $0x278] sm:$0xff] %v801
  %1027 = vst [vmem:[%s4 + $0x280] sm:$0xff] %v805
  %1028 = vst [vmem:[%s4 + $0x288] sm:$0xff] %v807
  %1029 = vst [vmem:[%s4 + $0x290] sm:$0xff] %v811
  %1030 = vst [vmem:[%s4 + $0x298] sm:$0xff] %v813
  %1031 = vst [vmem:[%s4 + $0x2a0] sm:$0xff] %v817
  %1032 = vst [vmem:[%s4 + $0x2a8] sm:$0xff] %v819
  %1033 = vst [vmem:[%s4 + $0x2b0] sm:$0xff] %v823
  %1034 = vst [vmem:[%s4 + $0x2b8] sm:$0xff] %v825
  %1035 = vst [vmem:[%s4 + $0x2c0] sm:$0xff] %v829
  %1036 = vst [vmem:[%s4 + $0x2c8] sm:$0xff] %v831
  %1037 = vst [vmem:[%s4 + $0x2d0] sm:$0xff] %v835
  %1038 = vst [vmem:[%s4 + $0x2d8] sm:$0xff] %v837
  %1039 = vst [vmem:[%s4 + $0x2e0] sm:$0xff] %v841
  %1040 = vst [vmem:[%s4 + $0x2e8] sm:$0xff] %v843
  %1041 = vst [vmem:[%s4 + $0x2f0] sm:$0xff] %v847
  %1042 = vst [vmem:[%s4 + $0x2f8] sm:$0xff] %v849
  %1043 = vst [vmem:[%s4 + $0x300] sm:$0xff] %v853
  %1044 = vst [vmem:[%s4 + $0x308] sm:$0xff] %v855
  %1045 = vst [vmem:[%s4 + $0x310] sm:$0xff] %v859
  %1046 = vst [vmem:[%s4 + $0x318] sm:$0xff] %v861
  %1047 = vst [vmem:[%s4 + $0x320] sm:$0xff] %v865
  %1048 = vst [vmem:[%s4 + $0x328] sm:$0xff] %v867
  %1049 = vst [vmem:[%s4 + $0x330] sm:$0xff] %v871
  %1050 = vst [vmem:[%s4 + $0x338] sm:$0xff] %v873
  %1051 = vst [vmem:[%s4 + $0x340] sm:$0xff] %v877
  %1052 = vst [vmem:[%s4 + $0x348] sm:$0xff] %v879
  %1053 = vst [vmem:[%s4 + $0x350] sm:$0xff] %v883
  %1054 = vst [vmem:[%s4 + $0x358] sm:$0xff] %v885
  %1055 = vst [vmem:[%s4 + $0x360] sm:$0xff] %v889
  %1056 = vst [vmem:[%s4 + $0x368] sm:$0xff] %v891
  %1057 = vst [vmem:[%s4 + $0x370] sm:$0xff] %v895
  %1058 = vst [vmem:[%s4 + $0x378] sm:$0xff] %v897
  %1059 = vst [vmem:[%s4 + $0x380] sm:$0xff] %v901
  %1060 = vst [vmem:[%s4 + $0x388] sm:$0xff] %v903
  %1061 = vst [vmem:[%s4 + $0x390] sm:$0xff] %v907
  %1062 = vst [vmem:[%s4 + $0x398] sm:$0xff] %v909
  %1063 = vst [vmem:[%s4 + $0x3a0] sm:$0xff] %v913
  %1064 = vst [vmem:[%s4 + $0x3a8] sm:$0xff] %v915
  %1065 = vst [vmem:[%s4 + $0x3b0] sm:$0xff] %v919
  %1066 = vst [vmem:[%s4 + $0x3b8] sm:$0xff] %v921
  %1067 = vst [vmem:[%s4 + $0x3c0] sm:$0xff] %v925
  %1068 = vst [vmem:[%s4 + $0x3c8] sm:$0xff] %v927
  %1069 = vst [vmem:[%s4 + $0x3d0] sm:$0xff] %v931
  %1070 = vst [vmem:[%s4 + $0x3d8] sm:$0xff] %v933
  %1071 = vst [vmem:[%s4 + $0x3e0] sm:$0xff] %v937
  %1072 = vst [vmem:[%s4 + $0x3e8] sm:$0xff] %v939
  %1073 = vst [vmem:[%s4 + $0x3f0] sm:$0xff] %v943
  %1074 = vst [vmem:[%s4 + $0x3f8] sm:$0xff] %v945
  %v1075 = vadd.f32 %v565, %v571
  %v1076 = vadd.f32 %v1075, %v577
  %v1077 = vadd.f32 %v1076, %v583
  %v1078 = vadd.f32 %v1077, %v589
  %v1079 = vadd.f32 %v1078, %v595
  %v1080 = vadd.f32 %v1079, %v601
  %v1081 = vadd.f32 %v1080, %v607
  %v1082 = vadd.f32 %v1081, %v613
  %v1083 = vadd.f32 %v1082, %v619
  %v1084 = vadd.f32 %v1083, %v625
  %v1085 = vadd.f32 %v1084, %v631
  %v1086 = vadd.f32 %v1085, %v637
  %v1087 = vadd.f32 %v1086, %v643
  %v1088 = vadd.f32 %v1087, %v649
  %v1089 = vadd.f32 %v1088, %v655
  %v1090 = vadd.f32 %v1089, %v661
  %v1091 = vadd.f32 %v1090, %v667
  %v1092 = vadd.f32 %v1091, %v673
  %v1093 = vadd.f32 %v1092, %v679
  %v1094 = vadd.f32 %v1093, %v685
  %v1095 = vadd.f32 %v1094, %v691
  %v1096 = vadd.f32 %v1095, %v697
  %v1097 = vadd.f32 %v1096, %v703
  %v1098 = vadd.f32 %v1097, %v709
  %v1099 = vadd.f32 %v1098, %v715
  %v1100 = vadd.f32 %v1099, %v721
  %v1101 = vadd.f32 %v1100, %v727
  %v1102 = vadd.f32 %v1101, %v733
  %v1103 = vadd.f32 %v1102, %v739
  %v1104 = vadd.f32 %v1103, %v745
  %v1105 = vadd.f32 %v1104, %v751
  %v1106 = vadd.f32 %v1105, %v757
  %v1107 = vadd.f32 %v1106, %v763
  %v1108 = vadd.f32 %v1107, %v769
  %v1109 = vadd.f32 %v1108, %v775
  %v1110 = vadd.f32 %v1109, %v781
  %v1111 = vadd.f32 %v1110, %v787
  %v1112 = vadd.f32 %v1111, %v793
  %v1113 = vadd.f32 %v1112, %v799
  %v1114 = vadd.f32 %v1113, %v805
  %v1115 = vadd.f32 %v1114, %v811
  %v1116 = vadd.f32 %v1115, %v817
  %v1117 = vadd.f32 %v1116, %v823
  %v1118 = vadd.f32 %v1117, %v829
  %v1119 = vadd.f32 %v1118, %v835
  %v1120 = vadd.f32 %v1119, %v841
  %v1121 = vadd.f32 %v1120, %v847
  %v1122 = vadd.f32 %v1121, %v853
  %v1123 = vadd.f32 %v1122, %v859
  %v1124 = vadd.f32 %v1123, %v865
  %v1125 = vadd.f32 %v1124, %v871
  %v1126 = vadd.f32 %v1125, %v877
  %v1127 = vadd.f32 %v1126, %v883
  %v1128 = vadd.f32 %v1127, %v889
  %v1129 = vadd.f32 %v1128, %v895
  %v1130 = vadd.f32 %v1129, %v901
  %v1131 = vadd.f32 %v1130, %v907
  %v1132 = vadd.f32 %v1131, %v913
  %v1133 = vadd.f32 %v1132, %v919
  %v1134 = vadd.f32 %v1133, %v925
  %v1135 = vadd.f32 %v1134, %v931
  %v1136 = vadd.f32 %v1135, %v937
  %v1137 = vadd.f32 %v1136, %v943
  %v1138 = vrot.slane %v1137, 4
  %v1139 = vadd.f32 %v1137, %v1138
  %v1140 = vrot.slane %v1139, 2
  %v1141 = vadd.f32 %v1139, %v1140
  %v1142 = vrot.slane %v1141, 1
  %v1143 = vadd.f32 %v1141, %v1142
  %v1144 = vadd.f32 %v567, %v573
  %v1145 = vadd.f32 %v1144, %v579
  %v1146 = vadd.f32 %v1145, %v585
  %v1147 = vadd.f32 %v1146, %v591
  %v1148 = vadd.f32 %v1147, %v597
  %v1149 = vadd.f32 %v1148, %v603
  %v1150 = vadd.f32 %v1149, %v609
  %v1151 = vadd.f32 %v1150, %v615
  %v1152 = vadd.f32 %v1151, %v621
  %v1153 = vadd.f32 %v1152, %v627
  %v1154 = vadd.f32 %v1153, %v633
  %v1155 = vadd.f32 %v1154, %v639
  %v1156 = vadd.f32 %v1155, %v645
  %v1157 = vadd.f32 %v1156, %v651
  %v1158 = vadd.f32 %v1157, %v657
  %v1159 = vadd.f32 %v1158, %v663
  %v1160 = vadd.f32 %v1159, %v669
  %v1161 = vadd.f32 %v1160, %v675
  %v1162 = vadd.f32 %v1161, %v681
  %v1163 = vadd.f32 %v1162, %v687
  %v1164 = vadd.f32 %v1163, %v693
  %v1165 = vadd.f32 %v1164, %v699
  %v1166 = vadd.f32 %v1165, %v705
  %v1167 = vadd.f32 %v1166, %v711
  %v1168 = vadd.f32 %v1167, %v717
  %v1169 = vadd.f32 %v1168, %v723
  %v1170 = vadd.f32 %v1169, %v729
  %v1171 = vadd.f32 %v1170, %v735
  %v1172 = vadd.f32 %v1171, %v741
  %v1173 = vadd.f32 %v1172, %v747
  %v1174 = vadd.f32 %v1173, %v753
  %v1175 = vadd.f32 %v1174, %v759
  %v1176 = vadd.f32 %v1175, %v765
  %v1177 = vadd.f32 %v1176, %v771
  %v1178 = vadd.f32 %v1177, %v777
  %v1179 = vadd.f32 %v1178, %v783
  %v1180 = vadd.f32 %v1179, %v789
  %v1181 = vadd.f32 %v1180, %v795
  %v1182 = vadd.f32 %v1181, %v801
  %v1183 = vadd.f32 %v1182, %v807
  %v1184 = vadd.f32 %v1183, %v813
  %v1185 = vadd.f32 %v1184, %v819
  %v1186 = vadd.f32 %v1185, %v825
  %v1187 = vadd.f32 %v1186, %v831
  %v1188 = vadd.f32 %v1187, %v837
  %v1189 = vadd.f32 %v1188, %v843
  %v1190 = vadd.f32 %v1189, %v849
  %v1191 = vadd.f32 %v1190, %v855
  %v1192 = vadd.f32 %v1191, %v861
  %v1193 = vadd.f32 %v1192, %v867
  %v1194 = vadd.f32 %v1193, %v873
  %v1195 = vadd.f32 %v1194, %v879
  %v1196 = vadd.f32 %v1195, %v885
  %v1197 = vadd.f32 %v1196, %v891
  %v1198 = vadd.f32 %v1197, %v897
  %v1199 = vadd.f32 %v1198, %v903
  %v1200 = vadd.f32 %v1199, %v909
  %v1201 = vadd.f32 %v1200, %v915
  %v1202 = vadd.f32 %v1201, %v921
  %v1203 = vadd.f32 %v1202, %v927
  %v1204 = vadd.f32 %v1203, %v933
  %v1205 = vadd.f32 %v1204, %v939
  %v1206 = vadd.f32 %v1205, %v945
  %v1207 = vrot.slane %v1206, 4
  %v1208 = vadd.f32 %v1206, %v1207
  %v1209 = vrot.slane %v1208, 2
  %v1210 = vadd.f32 %v1208, %v1209
  %v1211 = vrot.slane %v1210, 1
  %v1212 = vadd.f32 %v1210, %v1211
  %v1213 = vmul.f32 %v565, %v565
  %v1214 = vmul.f32 %v567, %v567
  %v1215 = vmul.f32 %v571, %v571
  %v1216 = vmul.f32 %v573, %v573
  %v1217 = vmul.f32 %v577, %v577
  %v1218 = vmul.f32 %v579, %v579
  %v1219 = vmul.f32 %v583, %v583
  %v1220 = vmul.f32 %v585, %v585
  %v1221 = vmul.f32 %v589, %v589
  %v1222 = vmul.f32 %v591, %v591
  %v1223 = vmul.f32 %v595, %v595
  %v1224 = vmul.f32 %v597, %v597
  %v1225 = vmul.f32 %v601, %v601
  %v1226 = vmul.f32 %v603, %v603
  %v1227 = vmul.f32 %v607, %v607
  %v1228 = vmul.f32 %v609, %v609
  %v1229 = vmul.f32 %v613, %v613
  %v1230 = vmul.f32 %v615, %v615
  %v1231 = vmul.f32 %v619, %v619
  %v1232 = vmul.f32 %v621, %v621
  %v1233 = vmul.f32 %v625, %v625
  %v1234 = vmul.f32 %v627, %v627
  %v1235 = vmul.f32 %v631, %v631
  %v1236 = vmul.f32 %v633, %v633
  %v1237 = vmul.f32 %v637, %v637
  %v1238 = vmul.f32 %v639, %v639
  %v1239 = vmul.f32 %v643, %v643
  %v1240 = vmul.f32 %v645, %v645
  %v1241 = vmul.f32 %v649, %v649
  %v1242 = vmul.f32 %v651, %v651
  %v1243 = vmul.f32 %v655, %v655
  %v1244 = vmul.f32 %v657, %v657
  %v1245 = vmul.f32 %v661, %v661
  %v1246 = vmul.f32 %v663, %v663
  %v1247 = vmul.f32 %v667, %v667
  %v1248 = vmul.f32 %v669, %v669
  %v1249 = vmul.f32 %v673, %v673
  %v1250 = vmul.f32 %v675, %v675
  %v1251 = vmul.f32 %v679, %v679
  %v1252 = vmul.f32 %v681, %v681
  %v1253 = vmul.f32 %v685, %v685
  %v1254 = vmul.f32 %v687, %v687
  %v1255 = vmul.f32 %v691, %v691
  %v1256 = vmul.f32 %v693, %v693
  %v1257 = vmul.f32 %v697, %v697
  %v1258 = vmul.f32 %v699, %v699
  %v1259 = vmul.f32 %v703, %v703
  %v1260 = vmul.f32 %v705, %v705
  %v1261 = vmul.f32 %v709, %v709
  %v1262 = vmul.f32 %v711, %v711
  %v1263 = vmul.f32 %v715, %v715
  %v1264 = vmul.f32 %v717, %v717
  %v1265 = vmul.f32 %v721, %v721
  %v1266 = vmul.f32 %v723, %v723
  %v1267 = vmul.f32 %v727, %v727
  %v1268 = vmul.f32 %v729, %v729
  %v1269 = vmul.f32 %v733, %v733
  %v1270 = vmul.f32 %v735, %v735
  %v1271 = vmul.f32 %v739, %v739
  %v1272 = vmul.f32 %v741, %v741
  %v1273 = vmul.f32 %v745, %v745
  %v1274 = vmul.f32 %v747, %v747
  %v1275 = vmul.f32 %v751, %v751
  %v1276 = vmul.f32 %v753, %v753
  %v1277 = vmul.f32 %v757, %v757
  %v1278 = vmul.f32 %v759, %v759
  %v1279 = vmul.f32 %v763, %v763
  %v1280 = vmul.f32 %v765, %v765
  %v1281 = vmul.f32 %v769, %v769
  %v1282 = vmul.f32 %v771, %v771
  %v1283 = vmul.f32 %v775, %v775
  %v1284 = vmul.f32 %v777, %v777
  %v1285 = vmul.f32 %v781, %v781
  %v1286 = vmul.f32 %v783, %v783
  %v1287 = vmul.f32 %v787, %v787
  %v1288 = vmul.f32 %v789, %v789
  %v1289 = vmul.f32 %v793, %v793
  %v1290 = vmul.f32 %v795, %v795
  %v1291 = vmul.f32 %v799, %v799
  %v1292 = vmul.f32 %v801, %v801
  %v1293 = vmul.f32 %v805, %v805
  %v1294 = vmul.f32 %v807, %v807
  %v1295 = vmul.f32 %v811, %v811
  %v1296 = vmul.f32 %v813, %v813
  %v1297 = vmul.f32 %v817, %v817
  %v1298 = vmul.f32 %v819, %v819
  %v1299 = vmul.f32 %v823, %v823
  %v1300 = vmul.f32 %v825, %v825
  %v1301 = vmul.f32 %v829, %v829
  %v1302 = vmul.f32 %v831, %v831
  %v1303 = vmul.f32 %v835, %v835
  %v1304 = vmul.f32 %v837, %v837
  %v1305 = vmul.f32 %v841, %v841
  %v1306 = vmul.f32 %v843, %v843
  %v1307 = vmul.f32 %v847, %v847
  %v1308 = vmul.f32 %v849, %v849
  %v1309 = vmul.f32 %v853, %v853
  %v1310 = vmul.f32 %v855, %v855
  %v1311 = vmul.f32 %v859, %v859
  %v1312 = vmul.f32 %v861, %v861
  %v1313 = vmul.f32 %v865, %v865
  %v1314 = vmul.f32 %v867, %v867
  %v1315 = vmul.f32 %v871, %v871
  %v1316 = vmul.f32 %v873, %v873
  %v1317 = vmul.f32 %v877, %v877
  %v1318 = vmul.f32 %v879, %v879
  %v1319 = vmul.f32 %v883, %v883
  %v1320 = vmul.f32 %v885, %v885
  %v1321 = vmul.f32 %v889, %v889
  %v1322 = vmul.f32 %v891, %v891
  %v1323 = vmul.f32 %v895, %v895
  %v1324 = vmul.f32 %v897, %v897
  %v1325 = vmul.f32 %v901, %v901
  %v1326 = vmul.f32 %v903, %v903
  %v1327 = vmul.f32 %v907, %v907
  %v1328 = vmul.f32 %v909, %v909
  %v1329 = vmul.f32 %v913, %v913
  %v1330 = vmul.f32 %v915, %v915
  %v1331 = vmul.f32 %v919, %v919
  %v1332 = vmul.f32 %v921, %v921
  %v1333 = vmul.f32 %v925, %v925
  %v1334 = vmul.f32 %v927, %v927
  %v1335 = vmul.f32 %v931, %v931
  %v1336 = vmul.f32 %v933, %v933
  %v1337 = vmul.f32 %v937, %v937
  %v1338 = vmul.f32 %v939, %v939
  %v1339 = vmul.f32 %v943, %v943
  %v1340 = vmul.f32 %v945, %v945
  %v1341 = vadd.f32 %v1213, %v1215
  %v1342 = vadd.f32 %v1341, %v1217
  %v1343 = vadd.f32 %v1342, %v1219
  %v1344 = vadd.f32 %v1343, %v1221
  %v1345 = vadd.f32 %v1344, %v1223
  %v1346 = vadd.f32 %v1345, %v1225
  %v1347 = vadd.f32 %v1346, %v1227
  %v1348 = vadd.f32 %v1347, %v1229
  %v1349 = vadd.f32 %v1348, %v1231
  %v1350 = vadd.f32 %v1349, %v1233
  %v1351 = vadd.f32 %v1350, %v1235
  %v1352 = vadd.f32 %v1351, %v1237
  %v1353 = vadd.f32 %v1352, %v1239
  %v1354 = vadd.f32 %v1353, %v1241
  %v1355 = vadd.f32 %v1354, %v1243
  %v1356 = vadd.f32 %v1355, %v1245
  %v1357 = vadd.f32 %v1356, %v1247
  %v1358 = vadd.f32 %v1357, %v1249
  %v1359 = vadd.f32 %v1358, %v1251
  %v1360 = vadd.f32 %v1359, %v1253
  %v1361 = vadd.f32 %v1360, %v1255
  %v1362 = vadd.f32 %v1361, %v1257
  %v1363 = vadd.f32 %v1362, %v1259
  %v1364 = vadd.f32 %v1363, %v1261
  %v1365 = vadd.f32 %v1364, %v1263
  %v1366 = vadd.f32 %v1365, %v1265
  %v1367 = vadd.f32 %v1366, %v1267
  %v1368 = vadd.f32 %v1367, %v1269
  %v1369 = vadd.f32 %v1368, %v1271
  %v1370 = vadd.f32 %v1369, %v1273
  %v1371 = vadd.f32 %v1370, %v1275
  %v1372 = vadd.f32 %v1371, %v1277
  %v1373 = vadd.f32 %v1372, %v1279
  %v1374 = vadd.f32 %v1373, %v1281
  %v1375 = vadd.f32 %v1374, %v1283
  %v1376 = vadd.f32 %v1375, %v1285
  %v1377 = vadd.f32 %v1376, %v1287
  %v1378 = vadd.f32 %v1377, %v1289
  %v1379 = vadd.f32 %v1378, %v1291
  %v1380 = vadd.f32 %v1379, %v1293
  %v1381 = vadd.f32 %v1380, %v1295
  %v1382 = vadd.f32 %v1381, %v1297
  %v1383 = vadd.f32 %v1382, %v1299
  %v1384 = vadd.f32 %v1383, %v1301
  %v1385 = vadd.f32 %v1384, %v1303
  %v1386 = vadd.f32 %v1385, %v1305
  %v1387 = vadd.f32 %v1386, %v1307
  %v1388 = vadd.f32 %v1387, %v1309
  %v1389 = vadd.f32 %v1388, %v1311
  %v1390 = vadd.f32 %v1389, %v1313
  %v1391 = vadd.f32 %v1390, %v1315
  %v1392 = vadd.f32 %v1391, %v1317
  %v1393 = vadd.f32 %v1392, %v1319
  %v1394 = vadd.f32 %v1393, %v1321
  %v1395 = vadd.f32 %v1394, %v1323
  %v1396 = vadd.f32 %v1395, %v1325
  %v1397 = vadd.f32 %v1396, %v1327
  %v1398 = vadd.f32 %v1397, %v1329
  %v1399 = vadd.f32 %v1398, %v1331
  %v1400 = vadd.f32 %v1399, %v1333
  %v1401 = vadd.f32 %v1400, %v1335
  %v1402 = vadd.f32 %v1401, %v1337
  %v1403 = vadd.f32 %v1402, %v1339
  %v1404 = vrot.slane %v1403, 4
  %v1405 = vadd.f32 %v1403, %v1404
  %v1406 = vrot.slane %v1405, 2
  %v1407 = vadd.f32 %v1405, %v1406
  %v1408 = vrot.slane %v1407, 1
  %v1409 = vadd.f32 %v1407, %v1408
  %v1410 = vadd.f32 %v1214, %v1216
  %v1411 = vadd.f32 %v1410, %v1218
  %v1412 = vadd.f32 %v1411, %v1220
  %v1413 = vadd.f32 %v1412, %v1222
  %v1414 = vadd.f32 %v1413, %v1224
  %v1415 = vadd.f32 %v1414, %v1226
  %v1416 = vadd.f32 %v1415, %v1228
  %v1417 = vadd.f32 %v1416, %v1230
  %v1418 = vadd.f32 %v1417, %v1232
  %v1419 = vadd.f32 %v1418, %v1234
  %v1420 = vadd.f32 %v1419, %v1236
  %v1421 = vadd.f32 %v1420, %v1238
  %v1422 = vadd.f32 %v1421, %v1240
  %v1423 = vadd.f32 %v1422, %v1242
  %v1424 = vadd.f32 %v1423, %v1244
  %v1425 = vadd.f32 %v1424, %v1246
  %v1426 = vadd.f32 %v1425, %v1248
  %v1427 = vadd.f32 %v1426, %v1250
  %v1428 = vadd.f32 %v1427, %v1252
  %v1429 = vadd.f32 %v1428, %v1254
  %v1430 = vadd.f32 %v1429, %v1256
  %v1431 = vadd.f32 %v1430, %v1258
  %v1432 = vadd.f32 %v1431, %v1260
  %v1433 = vadd.f32 %v1432, %v1262
  %v1434 = vadd.f32 %v1433, %v1264
  %v1435 = vadd.f32 %v1434, %v1266
  %v1436 = vadd.f32 %v1435, %v1268
  %v1437 = vadd.f32 %v1436, %v1270
  %v1438 = vadd.f32 %v1437, %v1272
  %v1439 = vadd.f32 %v1438, %v1274
  %v1440 = vadd.f32 %v1439, %v1276
  %v1441 = vadd.f32 %v1440, %v1278
  %v1442 = vadd.f32 %v1441, %v1280
  %v1443 = vadd.f32 %v1442, %v1282
  %v1444 = vadd.f32 %v1443, %v1284
  %v1445 = vadd.f32 %v1444, %v1286
  %v1446 = vadd.f32 %v1445, %v1288
  %v1447 = vadd.f32 %v1446, %v1290
  %v1448 = vadd.f32 %v1447, %v1292
  %v1449 = vadd.f32 %v1448, %v1294
  %v1450 = vadd.f32 %v1449, %v1296
  %v1451 = vadd.f32 %v1450, %v1298
  %v1452 = vadd.f32 %v1451, %v1300
  %v1453 = vadd.f32 %v1452, %v1302
  %v1454 = vadd.f32 %v1453, %v1304
  %v1455 = vadd.f32 %v1454, %v1306
  %v1456 = vadd.f32 %v1455, %v1308
  %v1457 = vadd.f32 %v1456, %v1310
  %v1458 = vadd.f32 %v1457, %v1312
  %v1459 = vadd.f32 %v1458, %v1314
  %v1460 = vadd.f32 %v1459, %v1316
  %v1461 = vadd.f32 %v1460, %v1318
  %v1462 = vadd.f32 %v1461, %v1320
  %v1463 = vadd.f32 %v1462, %v1322
  %v1464 = vadd.f32 %v1463, %v1324
  %v1465 = vadd.f32 %v1464, %v1326
  %v1466 = vadd.f32 %v1465, %v1328
  %v1467 = vadd.f32 %v1466, %v1330
  %v1468 = vadd.f32 %v1467, %v1332
  %v1469 = vadd.f32 %v1468, %v1334
  %v1470 = vadd.f32 %v1469, %v1336
  %v1471 = vadd.f32 %v1470, %v1338
  %v1472 = vadd.f32 %v1471, %v1340
  %v1473 = vrot.slane %v1472, 4
  %v1474 = vadd.f32 %v1472, %v1473
  %v1475 = vrot.slane %v1474, 2
  %v1476 = vadd.f32 %v1474, %v1475
  %v1477 = vrot.slane %v1476, 1
  %v1478 = vadd.f32 %v1476, %v1477
  %v1483 = vcombine.low %v1143, %v1212
  %v1484 = vcombine.low %v1409, %v1478
  %v1486 = vunpack.c.l.s4 1966171168
  %v1487 = vunpack.c.0.s8 %v1486
  %v1488 = vlaneseq
  %v1489 = vshrl.u32 %v1488, 7
  %v1490 = vsub.s32 %v1487, %v1489
  %v1491 = vrot.slane %v1483, %v1490
  %v1493 = vunpack.c.l.s4 1966171168
  %v1494 = vunpack.c.0.s8 %v1493
  %v1495 = vlaneseq
  %v1496 = vshrl.u32 %v1495, 7
  %v1497 = vsub.s32 %v1494, %v1496
  %v1498 = vrot.slane %v1484, %v1497
  %v1499 = vcombine.low %v1491, %v1498
  %v1501 = vunpack.c.l.s4 1966171168
  %v1502 = vunpack.c.0.s8 %v1501
  %v1503 = vlaneseq
  %v1504 = vshrl.u32 %v1503, 7
  %v1505 = vsub.s32 %v1502, %v1504
  %v1506 = vrot.slane %v1499, %v1505
  %v1508 = vlaneseq
  %vm1509 = vcmp.ge.s32.totalorder %v1508, 0
  %vm1510 = vcmp.lt.s32.totalorder %v1508, 512
  %vm1511 = vmand %vm1509, %vm1510
  %1512 = vst.msk [vmem:[%s5] sm:$0xf] %vm1511, %v1506
  // Predicated region
  $region18: #{bottleneck_forward.6} parent=0 // pred_check
    _
  $region19: #{bottleneck_forward.6} parent=0 // pred_check_branch
    %1514 = sbr.rel (0) target = $region21
  $region20: #{bottleneck_forward.6} parent=0 // pred_region
    _
  $region21: #{bottleneck_forward.6} parent=0 // pred_fallthru
    _
  // Predicated region
  $region22: #{bottleneck_forward.6} parent=0 // pred_check
    _
  $region23: #{bottleneck_forward.6} parent=0 // pred_check_branch
    %1516 = sbr.rel (0) target = $region25
  $region24: #{bottleneck_forward.6} parent=0 // pred_region
    _
  $region25: #{bottleneck_forward.6} parent=0 // pred_fallthru
    _
  // Predicated region
  $region26: #{bottleneck_forward.6} parent=0 // pred_check
    _
  $region27: #{bottleneck_forward.6} parent=0 // pred_check_branch
    %1518 = sbr.rel (0) target = $region29
  $region28: #{bottleneck_forward.6} parent=0 // pred_region
    _
  $region29: #{bottleneck_forward.6} parent=0 // pred_fallthru
    _
  // Predicated region
  $region30: #{bottleneck_forward.6} parent=0 // pred_check
    _
  $region31: #{bottleneck_forward.6} parent=0 // pred_check_branch
    %1520 = sbr.rel (0) target = $region33
  $region32: #{bottleneck_forward.6} parent=0 // pred_region
    _
  $region33: #{bottleneck_forward.6} parent=0 // pred_fallthru
    _

// kernel: bottleneck_forward.7
$region0: #{bottleneck_forward.7}
  #allocation0 [shape = 'u32[]', space=smem, size = 0x4, offset = 0x4, fixed_abs, tag = 'smem constant byte address 0x4 - core index']
  #allocation1 [shape = 'u32[144,128]{1,0:T(1,128)}', space=vmem, size = 0x12000, scoped, tag = 'internal scratch']
  %s0 = inlined_call_operand.vmem [shape: f32[512,256], index: 0, kind: input, shape index: {}]
  %s1 = inlined_call_operand.vmem [shape: f32[512,256], index: 1, kind: input, shape index: {}]
  %s2 = inlined_call_operand.vmem [shape: f32[1,256], index: 2, kind: input, shape index: {}]
  %s3 = inlined_call_operand.vmem [shape: f32[1,256], index: 3, kind: input, shape index: {}]
  %s4 = inlined_call_operand.hbm [shape: f32[512,256], index: 4, kind: output, shape index: {}]
  %s5 = sld [smem:[#allocation0]]
  $region26: #{bottleneck_forward.7} parent=0
    _
  %s7 = ssub.s32 1, %s5
  %s8 = scalar_select 0, %s7, %s5
  $region1: #{bottleneck_forward.7} parent=0
    #allocation2 [shape = 'u8[524288]{0}', space=vmem, size = 0x80000, scoped, tag = 'output window, operand 0, single buffered']
    #allocation3 [shape = 's32[1]{0}', space=sflag, size = 0x4, scoped, tag = 'scoped memory for bottleneck_forward.7']
    %9 = vsyncpa [#allocation3], 0
    // Predicated region
    $region2: #{bottleneck_forward.7} parent=1 // pred_check
      _
    $region3: #{bottleneck_forward.7} parent=1 // pred_check_branch
      %11 = sbr.rel (0) target = $region5
    $region4: #{bottleneck_forward.7} parent=1 // pred_region
      _
    $region5: #{bottleneck_forward.7} parent=1 // pred_fallthru
      _
    // Predicated region
    $region6: #{bottleneck_forward.7} parent=1 // pred_check
      _
    $region7: #{bottleneck_forward.7} parent=1 // pred_check_branch
      %13 = sbr.rel (0) target = $region9
    $region8: #{bottleneck_forward.7} parent=1 // pred_region
      _
    $region9: #{bottleneck_forward.7} parent=1 // pred_fallthru
      _
    // Predicated region
    $region10: #{bottleneck_forward.7} parent=1 // pred_check
      _
    $region11: #{bottleneck_forward.7} parent=1 // pred_check_branch
      %15 = sbr.rel (0) target = $region13
    $region12: #{bottleneck_forward.7} parent=1 // pred_region
      _
    $region13: #{bottleneck_forward.7} parent=1 // pred_fallthru
      _
    // Predicated region
    $region14: #{bottleneck_forward.7} parent=1 // pred_check
      _
    $region15: #{bottleneck_forward.7} parent=1 // pred_check_branch
      %17 = sbr.rel (0) target = $region17
    $region16: #{bottleneck_forward.7} parent=1 // pred_region
      _
    $region17: #{bottleneck_forward.7} parent=1 // pred_fallthru
      _
    %v18 = vld [vmem:[%s0] sm:$0xff]
    %v19 = vld [vmem:[%s0 + $0x8] sm:$0xff]
    %v20 = vld [vmem:[%s0 + $0x10] sm:$0xff]
    %v21 = vld [vmem:[%s0 + $0x18] sm:$0xff]
    %v22 = vld [vmem:[%s0 + $0x20] sm:$0xff]
    %v23 = vld [vmem:[%s0 + $0x28] sm:$0xff]
    %v24 = vld [vmem:[%s0 + $0x30] sm:$0xff]
    %v25 = vld [vmem:[%s0 + $0x38] sm:$0xff]
    %v26 = vld [vmem:[%s0 + $0x40] sm:$0xff]
    %v27 = vld [vmem:[%s0 + $0x48] sm:$0xff]
    %v28 = vld [vmem:[%s0 + $0x50] sm:$0xff]
    %v29 = vld [vmem:[%s0 + $0x58] sm:$0xff]
    %v30 = vld [vmem:[%s0 + $0x60] sm:$0xff]
    %v31 = vld [vmem:[%s0 + $0x68] sm:$0xff]
    %v32 = vld [vmem:[%s0 + $0x70] sm:$0xff]
    %v33 = vld [vmem:[%s0 + $0x78] sm:$0xff]
    %v34 = vld [vmem:[%s0 + $0x80] sm:$0xff]
    %v35 = vld [vmem:[%s0 + $0x88] sm:$0xff]
    %v36 = vld [vmem:[%s0 + $0x90] sm:$0xff]
    %v37 = vld [vmem:[%s0 + $0x98] sm:$0xff]
    %v38 = vld [vmem:[%s0 + $0xa0] sm:$0xff]
    %v39 = vld [vmem:[%s0 + $0xa8] sm:$0xff]
    %v40 = vld [vmem:[%s0 + $0xb0] sm:$0xff]
    %v41 = vld [vmem:[%s0 + $0xb8] sm:$0xff]
    %v42 = vld [vmem:[%s0 + $0xc0] sm:$0xff]
    %v43 = vld [vmem:[%s0 + $0xc8] sm:$0xff]
    %v44 = vld [vmem:[%s0 + $0xd0] sm:$0xff]
    %v45 = vld [vmem:[%s0 + $0xd8] sm:$0xff]
    %v46 = vld [vmem:[%s0 + $0xe0] sm:$0xff]
    %v47 = vld [vmem:[%s0 + $0xe8] sm:$0xff]
    %v48 = vld [vmem:[%s0 + $0xf0] sm:$0xff]
    %v49 = vld [vmem:[%s0 + $0xf8] sm:$0xff]
    %v50 = vld [vmem:[%s0 + $0x100] sm:$0xff]
    %v51 = vld [vmem:[%s0 + $0x108] sm:$0xff]
    %v52 = vld [vmem:[%s0 + $0x110] sm:$0xff]
    %v53 = vld [vmem:[%s0 + $0x118] sm:$0xff]
    %v54 = vld [vmem:[%s0 + $0x120] sm:$0xff]
    %v55 = vld [vmem:[%s0 + $0x128] sm:$0xff]
    %v56 = vld [vmem:[%s0 + $0x130] sm:$0xff]
    %v57 = vld [vmem:[%s0 + $0x138] sm:$0xff]
    %v58 = vld [vmem:[%s0 + $0x140] sm:$0xff]
    %v59 = vld [vmem:[%s0 + $0x148] sm:$0xff]
    %v60 = vld [vmem:[%s0 + $0x150] sm:$0xff]
    %v61 = vld [vmem:[%s0 + $0x158] sm:$0xff]
    %v62 = vld [vmem:[%s0 + $0x160] sm:$0xff]
    %v63 = vld [vmem:[%s0 + $0x168] sm:$0xff]
    %v64 = vld [vmem:[%s0 + $0x170] sm:$0xff]
    %v65 = vld [vmem:[%s0 + $0x178] sm:$0xff]
    %v66 = vld [vmem:[%s0 + $0x180] sm:$0xff]
    %v67 = vld [vmem:[%s0 + $0x188] sm:$0xff]
    %v68 = vld [vmem:[%s0 + $0x190] sm:$0xff]
    %v69 = vld [vmem:[%s0 + $0x198] sm:$0xff]
    %v70 = vld [vmem:[%s0 + $0x1a0] sm:$0xff]
    %v71 = vld [vmem:[%s0 + $0x1a8] sm:$0xff]
    %v72 = vld [vmem:[%s0 + $0x1b0] sm:$0xff]
    %v73 = vld [vmem:[%s0 + $0x1b8] sm:$0xff]
    %v74 = vld [vmem:[%s0 + $0x1c0] sm:$0xff]
    %v75 = vld [vmem:[%s0 + $0x1c8] sm:$0xff]
    %v76 = vld [vmem:[%s0 + $0x1d0] sm:$0xff]
    %v77 = vld [vmem:[%s0 + $0x1d8] sm:$0xff]
    %v78 = vld [vmem:[%s0 + $0x1e0] sm:$0xff]
    %v79 = vld [vmem:[%s0 + $0x1e8] sm:$0xff]
    %v80 = vld [vmem:[%s0 + $0x1f0] sm:$0xff]
    %v81 = vld [vmem:[%s0 + $0x1f8] sm:$0xff]
    %v82 = vld [vmem:[%s0 + $0x200] sm:$0xff]
    %v83 = vld [vmem:[%s0 + $0x208] sm:$0xff]
    %v84 = vld [vmem:[%s0 + $0x210] sm:$0xff]
    %v85 = vld [vmem:[%s0 + $0x218] sm:$0xff]
    %v86 = vld [vmem:[%s0 + $0x220] sm:$0xff]
    %v87 = vld [vmem:[%s0 + $0x228] sm:$0xff]
    %v88 = vld [vmem:[%s0 + $0x230] sm:$0xff]
    %v89 = vld [vmem:[%s0 + $0x238] sm:$0xff]
    %v90 = vld [vmem:[%s0 + $0x240] sm:$0xff]
    %v91 = vld [vmem:[%s0 + $0x248] sm:$0xff]
    %v92 = vld [vmem:[%s0 + $0x250] sm:$0xff]
    %v93 = vld [vmem:[%s0 + $0x258] sm:$0xff]
    %v94 = vld [vmem:[%s0 + $0x260] sm:$0xff]
    %v95 = vld [vmem:[%s0 + $0x268] sm:$0xff]
    %v96 = vld [vmem:[%s0 + $0x270] sm:$0xff]
    %v97 = vld [vmem:[%s0 + $0x278] sm:$0xff]
    %v98 = vld [vmem:[%s0 + $0x280] sm:$0xff]
    %v99 = vld [vmem:[%s0 + $0x288] sm:$0xff]
    %v100 = vld [vmem:[%s0 + $0x290] sm:$0xff]
    %v101 = vld [vmem:[%s0 + $0x298] sm:$0xff]
    %v102 = vld [vmem:[%s0 + $0x2a0] sm:$0xff]
    %v103 = vld [vmem:[%s0 + $0x2a8] sm:$0xff]
    %v104 = vld [vmem:[%s0 + $0x2b0] sm:$0xff]
    %v105 = vld [vmem:[%s0 + $0x2b8] sm:$0xff]
    %v106 = vld [vmem:[%s0 + $0x2c0] sm:$0xff]
    %v107 = vld [vmem:[%s0 + $0x2c8] sm:$0xff]
    %v108 = vld [vmem:[%s0 + $0x2d0] sm:$0xff]
    %v109 = vld [vmem:[%s0 + $0x2d8] sm:$0xff]
    %v110 = vld [vmem:[%s0 + $0x2e0] sm:$0xff]
    %v111 = vld [vmem:[%s0 + $0x2e8] sm:$0xff]
    %v112 = vld [vmem:[%s0 + $0x2f0] sm:$0xff]
    %v113 = vld [vmem:[%s0 + $0x2f8] sm:$0xff]
    %v114 = vld [vmem:[%s0 + $0x300] sm:$0xff]
    %v115 = vld [vmem:[%s0 + $0x308] sm:$0xff]
    %v116 = vld [vmem:[%s0 + $0x310] sm:$0xff]
    %v117 = vld [vmem:[%s0 + $0x318] sm:$0xff]
    %v118 = vld [vmem:[%s0 + $0x320] sm:$0xff]
    %v119 = vld [vmem:[%s0 + $0x328] sm:$0xff]
    %v120 = vld [vmem:[%s0 + $0x330] sm:$0xff]
    %v121 = vld [vmem:[%s0 + $0x338] sm:$0xff]
    %v122 = vld [vmem:[%s0 + $0x340] sm:$0xff]
    %v123 = vld [vmem:[%s0 + $0x348] sm:$0xff]
    %v124 = vld [vmem:[%s0 + $0x350] sm:$0xff]
    %v125 = vld [vmem:[%s0 + $0x358] sm:$0xff]
    %v126 = vld [vmem:[%s0 + $0x360] sm:$0xff]
    %v127 = vld [vmem:[%s0 + $0x368] sm:$0xff]
    %v128 = vld [vmem:[%s0 + $0x370] sm:$0xff]
    %v129 = vld [vmem:[%s0 + $0x378] sm:$0xff]
    %v130 = vld [vmem:[%s0 + $0x380] sm:$0xff]
    %v131 = vld [vmem:[%s0 + $0x388] sm:$0xff]
    %v132 = vld [vmem:[%s0 + $0x390] sm:$0xff]
    %v133 = vld [vmem:[%s0 + $0x398] sm:$0xff]
    %v134 = vld [vmem:[%s0 + $0x3a0] sm:$0xff]
    %v135 = vld [vmem:[%s0 + $0x3a8] sm:$0xff]
    %v136 = vld [vmem:[%s0 + $0x3b0] sm:$0xff]
    %v137 = vld [vmem:[%s0 + $0x3b8] sm:$0xff]
    %v138 = vld [vmem:[%s0 + $0x3c0] sm:$0xff]
    %v139 = vld [vmem:[%s0 + $0x3c8] sm:$0xff]
    %v140 = vld [vmem:[%s0 + $0x3d0] sm:$0xff]
    %v141 = vld [vmem:[%s0 + $0x3d8] sm:$0xff]
    %v142 = vld [vmem:[%s0 + $0x3e0] sm:$0xff]
    %v143 = vld [vmem:[%s0 + $0x3e8] sm:$0xff]
    %v144 = vld [vmem:[%s0 + $0x3f0] sm:$0xff]
    %v145 = vld [vmem:[%s0 + $0x3f8] sm:$0xff]
    %v146 = vld [vmem:[%s2] sm:$0x3]
    %v148 = vlaneseq
    %v149 = vshrl.u32 %v148, 7
    %v150 = vsub.s32 0, %v149
    %v151 = vrot.slane %v146, %v150
    %v152 = vlaneseq
    %v153 = vshrl.u32 %v152, 7
    %v154 = vsub.s32 1, %v153
    %v155 = vrot.slane %v146, %v154
    %v158 = vmul.f32 %v18, %v151
    %v159 = vmul.f32 %v19, %v155
    %v160 = vmul.f32 %v20, %v151
    %v161 = vmul.f32 %v21, %v155
    %v162 = vmul.f32 %v22, %v151
    %v163 = vmul.f32 %v23, %v155
    %v164 = vmul.f32 %v24, %v151
    %v165 = vmul.f32 %v25, %v155
    %v166 = vmul.f32 %v26, %v151
    %v167 = vmul.f32 %v27, %v155
    %v168 = vmul.f32 %v28, %v151
    %v169 = vmul.f32 %v29, %v155
    %v170 = vmul.f32 %v30, %v151
    %v171 = vmul.f32 %v31, %v155
    %v172 = vmul.f32 %v32, %v151
    %v173 = vmul.f32 %v33, %v155
    %v174 = vmul.f32 %v34, %v151
    %v175 = vmul.f32 %v35, %v155
    %v176 = vmul.f32 %v36, %v151
    %v177 = vmul.f32 %v37, %v155
    %v178 = vmul.f32 %v38, %v151
    %v179 = vmul.f32 %v39, %v155
    %v180 = vmul.f32 %v40, %v151
    %v181 = vmul.f32 %v41, %v155
    %v182 = vmul.f32 %v42, %v151
    %v183 = vmul.f32 %v43, %v155
    %v184 = vmul.f32 %v44, %v151
    %v185 = vmul.f32 %v45, %v155
    %v186 = vmul.f32 %v46, %v151
    %v187 = vmul.f32 %v47, %v155
    %v188 = vmul.f32 %v48, %v151
    %v189 = vmul.f32 %v49, %v155
    %v190 = vmul.f32 %v50, %v151
    %v191 = vmul.f32 %v51, %v155
    %v192 = vmul.f32 %v52, %v151
    %v193 = vmul.f32 %v53, %v155
    %v194 = vmul.f32 %v54, %v151
    %v195 = vmul.f32 %v55, %v155
    %v196 = vmul.f32 %v56, %v151
    %v197 = vmul.f32 %v57, %v155
    %v198 = vmul.f32 %v58, %v151
    %v199 = vmul.f32 %v59, %v155
    %v200 = vmul.f32 %v60, %v151
    %v201 = vmul.f32 %v61, %v155
    %v202 = vmul.f32 %v62, %v151
    %v203 = vmul.f32 %v63, %v155
    %v204 = vmul.f32 %v64, %v151
    %v205 = vmul.f32 %v65, %v155
    %v206 = vmul.f32 %v66, %v151
    %v207 = vmul.f32 %v67, %v155
    %v208 = vmul.f32 %v68, %v151
    %v209 = vmul.f32 %v69, %v155
    %v210 = vmul.f32 %v70, %v151
    %v211 = vmul.f32 %v71, %v155
    %v212 = vmul.f32 %v72, %v151
    %v213 = vmul.f32 %v73, %v155
    %v214 = vmul.f32 %v74, %v151
    %v215 = vmul.f32 %v75, %v155
    %v216 = vmul.f32 %v76, %v151
    %v217 = vmul.f32 %v77, %v155
    %v218 = vmul.f32 %v78, %v151
    %v219 = vmul.f32 %v79, %v155
    %v220 = vmul.f32 %v80, %v151
    %v221 = vmul.f32 %v81, %v155
    %v222 = vmul.f32 %v82, %v151
    %v223 = vmul.f32 %v83, %v155
    %v224 = vmul.f32 %v84, %v151
    %v225 = vmul.f32 %v85, %v155
    %v226 = vmul.f32 %v86, %v151
    %v227 = vmul.f32 %v87, %v155
    %v228 = vmul.f32 %v88, %v151
    %v229 = vmul.f32 %v89, %v155
    %v230 = vmul.f32 %v90, %v151
    %v231 = vmul.f32 %v91, %v155
    %v232 = vmul.f32 %v92, %v151
    %v233 = vmul.f32 %v93, %v155
    %v234 = vmul.f32 %v94, %v151
    %v235 = vmul.f32 %v95, %v155
    %v236 = vmul.f32 %v96, %v151
    %v237 = vmul.f32 %v97, %v155
    %v238 = vmul.f32 %v98, %v151
    %v239 = vmul.f32 %v99, %v155
    %v240 = vmul.f32 %v100, %v151
    %v241 = vmul.f32 %v101, %v155
    %v242 = vmul.f32 %v102, %v151
    %v243 = vmul.f32 %v103, %v155
    %v244 = vmul.f32 %v104, %v151
    %v245 = vmul.f32 %v105, %v155
    %v246 = vmul.f32 %v106, %v151
    %v247 = vmul.f32 %v107, %v155
    %v248 = vmul.f32 %v108, %v151
    %v249 = vmul.f32 %v109, %v155
    %v250 = vmul.f32 %v110, %v151
    %v251 = vmul.f32 %v111, %v155
    %v252 = vmul.f32 %v112, %v151
    %v253 = vmul.f32 %v113, %v155
    %v254 = vmul.f32 %v114, %v151
    %v255 = vmul.f32 %v115, %v155
    %v256 = vmul.f32 %v116, %v151
    %v257 = vmul.f32 %v117, %v155
    %v258 = vmul.f32 %v118, %v151
    %v259 = vmul.f32 %v119, %v155
    %v260 = vmul.f32 %v120, %v151
    %v261 = vmul.f32 %v121, %v155
    %v262 = vmul.f32 %v122, %v151
    %v263 = vmul.f32 %v123, %v155
    %v264 = vmul.f32 %v124, %v151
    %v265 = vmul.f32 %v125, %v155
    %v266 = vmul.f32 %v126, %v151
    %v267 = vmul.f32 %v127, %v155
    %v268 = vmul.f32 %v128, %v151
    %v269 = vmul.f32 %v129, %v155
    %v270 = vmul.f32 %v130, %v151
    %v271 = vmul.f32 %v131, %v155
    %v272 = vmul.f32 %v132, %v151
    %v273 = vmul.f32 %v133, %v155
    %v274 = vmul.f32 %v134, %v151
    %v275 = vmul.f32 %v135, %v155
    %v276 = vmul.f32 %v136, %v151
    %v277 = vmul.f32 %v137, %v155
    %v278 = vmul.f32 %v138, %v151
    %v279 = vmul.f32 %v139, %v155
    %v280 = vmul.f32 %v140, %v151
    %v281 = vmul.f32 %v141, %v155
    %v282 = vmul.f32 %v142, %v151
    %v283 = vmul.f32 %v143, %v155
    %v284 = vmul.f32 %v144, %v151
    %v285 = vmul.f32 %v145, %v155
    %v286 = vld [vmem:[%s3] sm:$0x3]
    %v288 = vlaneseq
    %v289 = vshrl.u32 %v288, 7
    %v290 = vsub.s32 0, %v289
    %v291 = vrot.slane %v286, %v290
    %v292 = vlaneseq
    %v293 = vshrl.u32 %v292, 7
    %v294 = vsub.s32 1, %v293
    %v295 = vrot.slane %v286, %v294
    %v298 = vadd.f32 %v158, %v291
    %v299 = vadd.f32 %v159, %v295
    %v300 = vadd.f32 %v160, %v291
    %v301 = vadd.f32 %v161, %v295
    %v302 = vadd.f32 %v162, %v291
    %v303 = vadd.f32 %v163, %v295
    %v304 = vadd.f32 %v164, %v291
    %v305 = vadd.f32 %v165, %v295
    %v306 = vadd.f32 %v166, %v291
    %v307 = vadd.f32 %v167, %v295
    %v308 = vadd.f32 %v168, %v291
    %v309 = vadd.f32 %v169, %v295
    %v310 = vadd.f32 %v170, %v291
    %v311 = vadd.f32 %v171, %v295
    %v312 = vadd.f32 %v172, %v291
    %v313 = vadd.f32 %v173, %v295
    %v314 = vadd.f32 %v174, %v291
    %v315 = vadd.f32 %v175, %v295
    %v316 = vadd.f32 %v176, %v291
    %v317 = vadd.f32 %v177, %v295
    %v318 = vadd.f32 %v178, %v291
    %v319 = vadd.f32 %v179, %v295
    %v320 = vadd.f32 %v180, %v291
    %v321 = vadd.f32 %v181, %v295
    %v322 = vadd.f32 %v182, %v291
    %v323 = vadd.f32 %v183, %v295
    %v324 = vadd.f32 %v184, %v291
    %v325 = vadd.f32 %v185, %v295
    %v326 = vadd.f32 %v186, %v291
    %v327 = vadd.f32 %v187, %v295
    %v328 = vadd.f32 %v188, %v291
    %v329 = vadd.f32 %v189, %v295
    %v330 = vadd.f32 %v190, %v291
    %v331 = vadd.f32 %v191, %v295
    %v332 = vadd.f32 %v192, %v291
    %v333 = vadd.f32 %v193, %v295
    %v334 = vadd.f32 %v194, %v291
    %v335 = vadd.f32 %v195, %v295
    %v336 = vadd.f32 %v196, %v291
    %v337 = vadd.f32 %v197, %v295
    %v338 = vadd.f32 %v198, %v291
    %v339 = vadd.f32 %v199, %v295
    %v340 = vadd.f32 %v200, %v291
    %v341 = vadd.f32 %v201, %v295
    %v342 = vadd.f32 %v202, %v291
    %v343 = vadd.f32 %v203, %v295
    %v344 = vadd.f32 %v204, %v291
    %v345 = vadd.f32 %v205, %v295
    %v346 = vadd.f32 %v206, %v291
    %v347 = vadd.f32 %v207, %v295
    %v348 = vadd.f32 %v208, %v291
    %v349 = vadd.f32 %v209, %v295
    %v350 = vadd.f32 %v210, %v291
    %v351 = vadd.f32 %v211, %v295
    %v352 = vadd.f32 %v212, %v291
    %v353 = vadd.f32 %v213, %v295
    %v354 = vadd.f32 %v214, %v291
    %v355 = vadd.f32 %v215, %v295
    %v356 = vadd.f32 %v216, %v291
    %v357 = vadd.f32 %v217, %v295
    %v358 = vadd.f32 %v218, %v291
    %v359 = vadd.f32 %v219, %v295
    %v360 = vadd.f32 %v220, %v291
    %v361 = vadd.f32 %v221, %v295
    %v362 = vadd.f32 %v222, %v291
    %v363 = vadd.f32 %v223, %v295
    %v364 = vadd.f32 %v224, %v291
    %v365 = vadd.f32 %v225, %v295
    %v366 = vadd.f32 %v226, %v291
    %v367 = vadd.f32 %v227, %v295
    %v368 = vadd.f32 %v228, %v291
    %v369 = vadd.f32 %v229, %v295
    %v370 = vadd.f32 %v230, %v291
    %v371 = vadd.f32 %v231, %v295
    %v372 = vadd.f32 %v232, %v291
    %v373 = vadd.f32 %v233, %v295
    %v374 = vadd.f32 %v234, %v291
    %v375 = vadd.f32 %v235, %v295
    %v376 = vadd.f32 %v236, %v291
    %v377 = vadd.f32 %v237, %v295
    %v378 = vadd.f32 %v238, %v291
    %v379 = vadd.f32 %v239, %v295
    %v380 = vadd.f32 %v240, %v291
    %v381 = vadd.f32 %v241, %v295
    %v382 = vadd.f32 %v242, %v291
    %v383 = vadd.f32 %v243, %v295
    %v384 = vadd.f32 %v244, %v291
    %v385 = vadd.f32 %v245, %v295
    %v386 = vadd.f32 %v246, %v291
    %v387 = vadd.f32 %v247, %v295
    %v388 = vadd.f32 %v248, %v291
    %v389 = vadd.f32 %v249, %v295
    %v390 = vadd.f32 %v250, %v291
    %v391 = vadd.f32 %v251, %v295
    %v392 = vadd.f32 %v252, %v291
    %v393 = vadd.f32 %v253, %v295
    %v394 = vadd.f32 %v254, %v291
    %v395 = vadd.f32 %v255, %v295
    %v396 = vadd.f32 %v256, %v291
    %v397 = vadd.f32 %v257, %v295
    %v398 = vadd.f32 %v258, %v291
    %v399 = vadd.f32 %v259, %v295
    %v400 = vadd.f32 %v260, %v291
    %v401 = vadd.f32 %v261, %v295
    %v402 = vadd.f32 %v262, %v291
    %v403 = vadd.f32 %v263, %v295
    %v404 = vadd.f32 %v264, %v291
    %v405 = vadd.f32 %v265, %v295
    %v406 = vadd.f32 %v266, %v291
    %v407 = vadd.f32 %v267, %v295
    %v408 = vadd.f32 %v268, %v291
    %v409 = vadd.f32 %v269, %v295
    %v410 = vadd.f32 %v270, %v291
    %v411 = vadd.f32 %v271, %v295
    %v412 = vadd.f32 %v272, %v291
    %v413 = vadd.f32 %v273, %v295
    %v414 = vadd.f32 %v274, %v291
    %v415 = vadd.f32 %v275, %v295
    %v416 = vadd.f32 %v276, %v291
    %v417 = vadd.f32 %v277, %v295
    %v418 = vadd.f32 %v278, %v291
    %v419 = vadd.f32 %v279, %v295
    %v420 = vadd.f32 %v280, %v291
    %v421 = vadd.f32 %v281, %v295
    %v422 = vadd.f32 %v282, %v291
    %v423 = vadd.f32 %v283, %v295
    %v424 = vadd.f32 %v284, %v291
    %v425 = vadd.f32 %v285, %v295
    %v426 = vld [vmem:[%s1] sm:$0xff]
    %v427 = vld [vmem:[%s1 + $0x8] sm:$0xff]
    %v428 = vld [vmem:[%s1 + $0x10] sm:$0xff]
    %v429 = vld [vmem:[%s1 + $0x18] sm:$0xff]
    %v430 = vld [vmem:[%s1 + $0x20] sm:$0xff]
    %v431 = vld [vmem:[%s1 + $0x28] sm:$0xff]
    %v432 = vld [vmem:[%s1 + $0x30] sm:$0xff]
    %v433 = vld [vmem:[%s1 + $0x38] sm:$0xff]
    %v434 = vld [vmem:[%s1 + $0x40] sm:$0xff]
    %v435 = vld [vmem:[%s1 + $0x48] sm:$0xff]
    %v436 = vld [vmem:[%s1 + $0x50] sm:$0xff]
    %v437 = vld [vmem:[%s1 + $0x58] sm:$0xff]
    %v438 = vld [vmem:[%s1 + $0x60] sm:$0xff]
    %v439 = vld [vmem:[%s1 + $0x68] sm:$0xff]
    %v440 = vld [vmem:[%s1 + $0x70] sm:$0xff]
    %v441 = vld [vmem:[%s1 + $0x78] sm:$0xff]
    %v442 = vld [vmem:[%s1 + $0x80] sm:$0xff]
    %v443 = vld [vmem:[%s1 + $0x88] sm:$0xff]
    %v444 = vld [vmem:[%s1 + $0x90] sm:$0xff]
    %v445 = vld [vmem:[%s1 + $0x98] sm:$0xff]
    %v446 = vld [vmem:[%s1 + $0xa0] sm:$0xff]
    %v447 = vld [vmem:[%s1 + $0xa8] sm:$0xff]
    %v448 = vld [vmem:[%s1 + $0xb0] sm:$0xff]
    %v449 = vld [vmem:[%s1 + $0xb8] sm:$0xff]
    %v450 = vld [vmem:[%s1 + $0xc0] sm:$0xff]
    %v451 = vld [vmem:[%s1 + $0xc8] sm:$0xff]
    %v452 = vld [vmem:[%s1 + $0xd0] sm:$0xff]
    %v453 = vld [vmem:[%s1 + $0xd8] sm:$0xff]
    %v454 = vld [vmem:[%s1 + $0xe0] sm:$0xff]
    %v455 = vld [vmem:[%s1 + $0xe8] sm:$0xff]
    %v456 = vld [vmem:[%s1 + $0xf0] sm:$0xff]
    %v457 = vld [vmem:[%s1 + $0xf8] sm:$0xff]
    %v458 = vld [vmem:[%s1 + $0x100] sm:$0xff]
    %v459 = vld [vmem:[%s1 + $0x108] sm:$0xff]
    %v460 = vld [vmem:[%s1 + $0x110] sm:$0xff]
    %v461 = vld [vmem:[%s1 + $0x118] sm:$0xff]
    %v462 = vld [vmem:[%s1 + $0x120] sm:$0xff]
    %v463 = vld [vmem:[%s1 + $0x128] sm:$0xff]
    %v464 = vld [vmem:[%s1 + $0x130] sm:$0xff]
    %v465 = vld [vmem:[%s1 + $0x138] sm:$0xff]
    %v466 = vld [vmem:[%s1 + $0x140] sm:$0xff]
    %v467 = vld [vmem:[%s1 + $0x148] sm:$0xff]
    %v468 = vld [vmem:[%s1 + $0x150] sm:$0xff]
    %v469 = vld [vmem:[%s1 + $0x158] sm:$0xff]
    %v470 = vld [vmem:[%s1 + $0x160] sm:$0xff]
    %v471 = vld [vmem:[%s1 + $0x168] sm:$0xff]
    %v472 = vld [vmem:[%s1 + $0x170] sm:$0xff]
    %v473 = vld [vmem:[%s1 + $0x178] sm:$0xff]
    %v474 = vld [vmem:[%s1 + $0x180] sm:$0xff]
    %v475 = vld [vmem:[%s1 + $0x188] sm:$0xff]
    %v476 = vld [vmem:[%s1 + $0x190] sm:$0xff]
    %v477 = vld [vmem:[%s1 + $0x198] sm:$0xff]
    %v478 = vld [vmem:[%s1 + $0x1a0] sm:$0xff]
    %v479 = vld [vmem:[%s1 + $0x1a8] sm:$0xff]
    %v480 = vld [vmem:[%s1 + $0x1b0] sm:$0xff]
    %v481 = vld [vmem:[%s1 + $0x1b8] sm:$0xff]
    %v482 = vld [vmem:[%s1 + $0x1c0] sm:$0xff]
    %v483 = vld [vmem:[%s1 + $0x1c8] sm:$0xff]
    %v484 = vld [vmem:[%s1 + $0x1d0] sm:$0xff]
    %v485 = vld [vmem:[%s1 + $0x1d8] sm:$0xff]
    %v486 = vld [vmem:[%s1 + $0x1e0] sm:$0xff]
    %v487 = vld [vmem:[%s1 + $0x1e8] sm:$0xff]
    %v488 = vld [vmem:[%s1 + $0x1f0] sm:$0xff]
    %v489 = vld [vmem:[%s1 + $0x1f8] sm:$0xff]
    %v490 = vld [vmem:[%s1 + $0x200] sm:$0xff]
    %v491 = vld [vmem:[%s1 + $0x208] sm:$0xff]
    %v492 = vld [vmem:[%s1 + $0x210] sm:$0xff]
    %v493 = vld [vmem:[%s1 + $0x218] sm:$0xff]
    %v494 = vld [vmem:[%s1 + $0x220] sm:$0xff]
    %v495 = vld [vmem:[%s1 + $0x228] sm:$0xff]
    %v496 = vld [vmem:[%s1 + $0x230] sm:$0xff]
    %v497 = vld [vmem:[%s1 + $0x238] sm:$0xff]
    %v498 = vld [vmem:[%s1 + $0x240] sm:$0xff]
    %v499 = vld [vmem:[%s1 + $0x248] sm:$0xff]
    %v500 = vld [vmem:[%s1 + $0x250] sm:$0xff]
    %v501 = vld [vmem:[%s1 + $0x258] sm:$0xff]
    %v502 = vld [vmem:[%s1 + $0x260] sm:$0xff]
    %v503 = vld [vmem:[%s1 + $0x268] sm:$0xff]
    %v504 = vld [vmem:[%s1 + $0x270] sm:$0xff]
    %v505 = vld [vmem:[%s1 + $0x278] sm:$0xff]
    %v506 = vld [vmem:[%s1 + $0x280] sm:$0xff]
    %v507 = vld [vmem:[%s1 + $0x288] sm:$0xff]
    %v508 = vld [vmem:[%s1 + $0x290] sm:$0xff]
    %v509 = vld [vmem:[%s1 + $0x298] sm:$0xff]
    %v510 = vld [vmem:[%s1 + $0x2a0] sm:$0xff]
    %v511 = vld [vmem:[%s1 + $0x2a8] sm:$0xff]
    %v512 = vld [vmem:[%s1 + $0x2b0] sm:$0xff]
    %v513 = vld [vmem:[%s1 + $0x2b8] sm:$0xff]
    %v514 = vld [vmem:[%s1 + $0x2c0] sm:$0xff]
    %v515 = vld [vmem:[%s1 + $0x2c8] sm:$0xff]
    %v516 = vld [vmem:[%s1 + $0x2d0] sm:$0xff]
    %v517 = vld [vmem:[%s1 + $0x2d8] sm:$0xff]
    %v518 = vld [vmem:[%s1 + $0x2e0] sm:$0xff]
    %v519 = vld [vmem:[%s1 + $0x2e8] sm:$0xff]
    %v520 = vld [vmem:[%s1 + $0x2f0] sm:$0xff]
    %v521 = vld [vmem:[%s1 + $0x2f8] sm:$0xff]
    %v522 = vld [vmem:[%s1 + $0x300] sm:$0xff]
    %v523 = vld [vmem:[%s1 + $0x308] sm:$0xff]
    %v524 = vld [vmem:[%s1 + $0x310] sm:$0xff]
    %v525 = vld [vmem:[%s1 + $0x318] sm:$0xff]
    %v526 = vld [vmem:[%s1 + $0x320] sm:$0xff]
    %v527 = vld [vmem:[%s1 + $0x328] sm:$0xff]
    %v528 = vld [vmem:[%s1 + $0x330] sm:$0xff]
    %v529 = vld [vmem:[%s1 + $0x338] sm:$0xff]
    %v530 = vld [vmem:[%s1 + $0x340] sm:$0xff]
    %v531 = vld [vmem:[%s1 + $0x348] sm:$0xff]
    %v532 = vld [vmem:[%s1 + $0x350] sm:$0xff]
    %v533 = vld [vmem:[%s1 + $0x358] sm:$0xff]
    %v534 = vld [vmem:[%s1 + $0x360] sm:$0xff]
    %v535 = vld [vmem:[%s1 + $0x368] sm:$0xff]
    %v536 = vld [vmem:[%s1 + $0x370] sm:$0xff]
    %v537 = vld [vmem:[%s1 + $0x378] sm:$0xff]
    %v538 = vld [vmem:[%s1 + $0x380] sm:$0xff]
    %v539 = vld [vmem:[%s1 + $0x388] sm:$0xff]
    %v540 = vld [vmem:[%s1 + $0x390] sm:$0xff]
    %v541 = vld [vmem:[%s1 + $0x398] sm:$0xff]
    %v542 = vld [vmem:[%s1 + $0x3a0] sm:$0xff]
    %v543 = vld [vmem:[%s1 + $0x3a8] sm:$0xff]
    %v544 = vld [vmem:[%s1 + $0x3b0] sm:$0xff]
    %v545 = vld [vmem:[%s1 + $0x3b8] sm:$0xff]
    %v546 = vld [vmem:[%s1 + $0x3c0] sm:$0xff]
    %v547 = vld [vmem:[%s1 + $0x3c8] sm:$0xff]
    %v548 = vld [vmem:[%s1 + $0x3d0] sm:$0xff]
    %v549 = vld [vmem:[%s1 + $0x3d8] sm:$0xff]
    %v550 = vld [vmem:[%s1 + $0x3e0] sm:$0xff]
    %v551 = vld [vmem:[%s1 + $0x3e8] sm:$0xff]
    %v552 = vld [vmem:[%s1 + $0x3f0] sm:$0xff]
    %v553 = vld [vmem:[%s1 + $0x3f8] sm:$0xff]
    %v554 = vadd.f32 %v298, %v426
    %v555 = vadd.f32 %v299, %v427
    %v556 = vadd.f32 %v300, %v428
    %v557 = vadd.f32 %v301, %v429
    %v558 = vadd.f32 %v302, %v430
    %v559 = vadd.f32 %v303, %v431
    %v560 = vadd.f32 %v304, %v432
    %v561 = vadd.f32 %v305, %v433
    %v562 = vadd.f32 %v306, %v434
    %v563 = vadd.f32 %v307, %v435
    %v564 = vadd.f32 %v308, %v436
    %v565 = vadd.f32 %v309, %v437
    %v566 = vadd.f32 %v310, %v438
    %v567 = vadd.f32 %v311, %v439
    %v568 = vadd.f32 %v312, %v440
    %v569 = vadd.f32 %v313, %v441
    %v570 = vadd.f32 %v314, %v442
    %v571 = vadd.f32 %v315, %v443
    %v572 = vadd.f32 %v316, %v444
    %v573 = vadd.f32 %v317, %v445
    %v574 = vadd.f32 %v318, %v446
    %v575 = vadd.f32 %v319, %v447
    %v576 = vadd.f32 %v320, %v448
    %v577 = vadd.f32 %v321, %v449
    %v578 = vadd.f32 %v322, %v450
    %v579 = vadd.f32 %v323, %v451
    %v580 = vadd.f32 %v324, %v452
    %v581 = vadd.f32 %v325, %v453
    %v582 = vadd.f32 %v326, %v454
    %v583 = vadd.f32 %v327, %v455
    %v584 = vadd.f32 %v328, %v456
    %v585 = vadd.f32 %v329, %v457
    %v586 = vadd.f32 %v330, %v458
    %v587 = vadd.f32 %v331, %v459
    %v588 = vadd.f32 %v332, %v460
    %v589 = vadd.f32 %v333, %v461
    %v590 = vadd.f32 %v334, %v462
    %v591 = vadd.f32 %v335, %v463
    %v592 = vadd.f32 %v336, %v464
    %v593 = vadd.f32 %v337, %v465
    %v594 = vadd.f32 %v338, %v466
    %v595 = vadd.f32 %v339, %v467
    %v596 = vadd.f32 %v340, %v468
    %v597 = vadd.f32 %v341, %v469
    %v598 = vadd.f32 %v342, %v470
    %v599 = vadd.f32 %v343, %v471
    %v600 = vadd.f32 %v344, %v472
    %v601 = vadd.f32 %v345, %v473
    %v602 = vadd.f32 %v346, %v474
    %v603 = vadd.f32 %v347, %v475
    %v604 = vadd.f32 %v348, %v476
    %v605 = vadd.f32 %v349, %v477
    %v606 = vadd.f32 %v350, %v478
    %v607 = vadd.f32 %v351, %v479
    %v608 = vadd.f32 %v352, %v480
    %v609 = vadd.f32 %v353, %v481
    %v610 = vadd.f32 %v354, %v482
    %v611 = vadd.f32 %v355, %v483
    %v612 = vadd.f32 %v356, %v484
    %v613 = vadd.f32 %v357, %v485
    %v614 = vadd.f32 %v358, %v486
    %v615 = vadd.f32 %v359, %v487
    %v616 = vadd.f32 %v360, %v488
    %v617 = vadd.f32 %v361, %v489
    %v618 = vadd.f32 %v362, %v490
    %v619 = vadd.f32 %v363, %v491
    %v620 = vadd.f32 %v364, %v492
    %v621 = vadd.f32 %v365, %v493
    %v622 = vadd.f32 %v366, %v494
    %v623 = vadd.f32 %v367, %v495
    %v624 = vadd.f32 %v368, %v496
    %v625 = vadd.f32 %v369, %v497
    %v626 = vadd.f32 %v370, %v498
    %v627 = vadd.f32 %v371, %v499
    %v628 = vadd.f32 %v372, %v500
    %v629 = vadd.f32 %v373, %v501
    %v630 = vadd.f32 %v374, %v502
    %v631 = vadd.f32 %v375, %v503
    %v632 = vadd.f32 %v376, %v504
    %v633 = vadd.f32 %v377, %v505
    %v634 = vadd.f32 %v378, %v506
    %v635 = vadd.f32 %v379, %v507
    %v636 = vadd.f32 %v380, %v508
    %v637 = vadd.f32 %v381, %v509
    %v638 = vadd.f32 %v382, %v510
    %v639 = vadd.f32 %v383, %v511
    %v640 = vadd.f32 %v384, %v512
    %v641 = vadd.f32 %v385, %v513
    %v642 = vadd.f32 %v386, %v514
    %v643 = vadd.f32 %v387, %v515
    %v644 = vadd.f32 %v388, %v516
    %v645 = vadd.f32 %v389, %v517
    %v646 = vadd.f32 %v390, %v518
    %v647 = vadd.f32 %v391, %v519
    %v648 = vadd.f32 %v392, %v520
    %v649 = vadd.f32 %v393, %v521
    %v650 = vadd.f32 %v394, %v522
    %v651 = vadd.f32 %v395, %v523
    %v652 = vadd.f32 %v396, %v524
    %v653 = vadd.f32 %v397, %v525
    %v654 = vadd.f32 %v398, %v526
    %v655 = vadd.f32 %v399, %v527
    %v656 = vadd.f32 %v400, %v528
    %v657 = vadd.f32 %v401, %v529
    %v658 = vadd.f32 %v402, %v530
    %v659 = vadd.f32 %v403, %v531
    %v660 = vadd.f32 %v404, %v532
    %v661 = vadd.f32 %v405, %v533
    %v662 = vadd.f32 %v406, %v534
    %v663 = vadd.f32 %v407, %v535
    %v664 = vadd.f32 %v408, %v536
    %v665 = vadd.f32 %v409, %v537
    %v666 = vadd.f32 %v410, %v538
    %v667 = vadd.f32 %v411, %v539
    %v668 = vadd.f32 %v412, %v540
    %v669 = vadd.f32 %v413, %v541
    %v670 = vadd.f32 %v414, %v542
    %v671 = vadd.f32 %v415, %v543
    %v672 = vadd.f32 %v416, %v544
    %v673 = vadd.f32 %v417, %v545
    %v674 = vadd.f32 %v418, %v546
    %v675 = vadd.f32 %v419, %v547
    %v676 = vadd.f32 %v420, %v548
    %v677 = vadd.f32 %v421, %v549
    %v678 = vadd.f32 %v422, %v550
    %v679 = vadd.f32 %v423, %v551
    %v680 = vadd.f32 %v424, %v552
    %v681 = vadd.f32 %v425, %v553
    %v682 = vmax.f32 %v554, 0.0
    %v683 = vmax.f32 %v555, 0.0
    %v684 = vmax.f32 %v556, 0.0
    %v685 = vmax.f32 %v557, 0.0
    %v686 = vmax.f32 %v558, 0.0
    %v687 = vmax.f32 %v559, 0.0
    %v688 = vmax.f32 %v560, 0.0
    %v689 = vmax.f32 %v561, 0.0
    %v690 = vmax.f32 %v562, 0.0
    %v691 = vmax.f32 %v563, 0.0
    %v692 = vmax.f32 %v564, 0.0
    %v693 = vmax.f32 %v565, 0.0
    %v694 = vmax.f32 %v566, 0.0
    %v695 = vmax.f32 %v567, 0.0
    %v696 = vmax.f32 %v568, 0.0
    %v697 = vmax.f32 %v569, 0.0
    %v698 = vmax.f32 %v570, 0.0
    %v699 = vmax.f32 %v571, 0.0
    %v700 = vmax.f32 %v572, 0.0
    %v701 = vmax.f32 %v573, 0.0
    %v702 = vmax.f32 %v574, 0.0
    %v703 = vmax.f32 %v575, 0.0
    %v704 = vmax.f32 %v576, 0.0
    %v705 = vmax.f32 %v577, 0.0
    %v706 = vmax.f32 %v578, 0.0
    %v707 = vmax.f32 %v579, 0.0
    %v708 = vmax.f32 %v580, 0.0
    %v709 = vmax.f32 %v581, 0.0
    %v710 = vmax.f32 %v582, 0.0
    %v711 = vmax.f32 %v583, 0.0
    %v712 = vmax.f32 %v584, 0.0
    %v713 = vmax.f32 %v585, 0.0
    %v714 = vmax.f32 %v586, 0.0
    %v715 = vmax.f32 %v587, 0.0
    %v716 = vmax.f32 %v588, 0.0
    %v717 = vmax.f32 %v589, 0.0
    %v718 = vmax.f32 %v590, 0.0
    %v719 = vmax.f32 %v591, 0.0
    %v720 = vmax.f32 %v592, 0.0
    %v721 = vmax.f32 %v593, 0.0
    %v722 = vmax.f32 %v594, 0.0
    %v723 = vmax.f32 %v595, 0.0
    %v724 = vmax.f32 %v596, 0.0
    %v725 = vmax.f32 %v597, 0.0
    %v726 = vmax.f32 %v598, 0.0
    %v727 = vmax.f32 %v599, 0.0
    %v728 = vmax.f32 %v600, 0.0
    %v729 = vmax.f32 %v601, 0.0
    %v730 = vmax.f32 %v602, 0.0
    %v731 = vmax.f32 %v603, 0.0
    %v732 = vmax.f32 %v604, 0.0
    %v733 = vmax.f32 %v605, 0.0
    %v734 = vmax.f32 %v606, 0.0
    %v735 = vmax.f32 %v607, 0.0
    %v736 = vmax.f32 %v608, 0.0
    %v737 = vmax.f32 %v609, 0.0
    %v738 = vmax.f32 %v610, 0.0
    %v739 = vmax.f32 %v611, 0.0
    %v740 = vmax.f32 %v612, 0.0
    %v741 = vmax.f32 %v613, 0.0
    %v742 = vmax.f32 %v614, 0.0
    %v743 = vmax.f32 %v615, 0.0
    %v744 = vmax.f32 %v616, 0.0
    %v745 = vmax.f32 %v617, 0.0
    %v746 = vmax.f32 %v618, 0.0
    %v747 = vmax.f32 %v619, 0.0
    %v748 = vmax.f32 %v620, 0.0
    %v749 = vmax.f32 %v621, 0.0
    %v750 = vmax.f32 %v622, 0.0
    %v751 = vmax.f32 %v623, 0.0
    %v752 = vmax.f32 %v624, 0.0
    %v753 = vmax.f32 %v625, 0.0
    %v754 = vmax.f32 %v626, 0.0
    %v755 = vmax.f32 %v627, 0.0
    %v756 = vmax.f32 %v628, 0.0
    %v757 = vmax.f32 %v629, 0.0
    %v758 = vmax.f32 %v630, 0.0
    %v759 = vmax.f32 %v631, 0.0
    %v760 = vmax.f32 %v632, 0.0
    %v761 = vmax.f32 %v633, 0.0
    %v762 = vmax.f32 %v634, 0.0
    %v763 = vmax.f32 %v635, 0.0
    %v764 = vmax.f32 %v636, 0.0
    %v765 = vmax.f32 %v637, 0.0
    %v766 = vmax.f32 %v638, 0.0
    %v767 = vmax.f32 %v639, 0.0
    %v768 = vmax.f32 %v640, 0.0
    %v769 = vmax.f32 %v641, 0.0
    %v770 = vmax.f32 %v642, 0.0
    %v771 = vmax.f32 %v643, 0.0
    %v772 = vmax.f32 %v644, 0.0
    %v773 = vmax.f32 %v645, 0.0
    %v774 = vmax.f32 %v646, 0.0
    %v775 = vmax.f32 %v647, 0.0
    %v776 = vmax.f32 %v648, 0.0
    %v777 = vmax.f32 %v649, 0.0
    %v778 = vmax.f32 %v650, 0.0
    %v779 = vmax.f32 %v651, 0.0
    %v780 = vmax.f32 %v652, 0.0
    %v781 = vmax.f32 %v653, 0.0
    %v782 = vmax.f32 %v654, 0.0
    %v783 = vmax.f32 %v655, 0.0
    %v784 = vmax.f32 %v656, 0.0
    %v785 = vmax.f32 %v657, 0.0
    %v786 = vmax.f32 %v658, 0.0
    %v787 = vmax.f32 %v659, 0.0
    %v788 = vmax.f32 %v660, 0.0
    %v789 = vmax.f32 %v661, 0.0
    %v790 = vmax.f32 %v662, 0.0
    %v791 = vmax.f32 %v663, 0.0
    %v792 = vmax.f32 %v664, 0.0
    %v793 = vmax.f32 %v665, 0.0
    %v794 = vmax.f32 %v666, 0.0
    %v795 = vmax.f32 %v667, 0.0
    %v796 = vmax.f32 %v668, 0.0
    %v797 = vmax.f32 %v669, 0.0
    %v798 = vmax.f32 %v670, 0.0
    %v799 = vmax.f32 %v671, 0.0
    %v800 = vmax.f32 %v672, 0.0
    %v801 = vmax.f32 %v673, 0.0
    %v802 = vmax.f32 %v674, 0.0
    %v803 = vmax.f32 %v675, 0.0
    %v804 = vmax.f32 %v676, 0.0
    %v805 = vmax.f32 %v677, 0.0
    %v806 = vmax.f32 %v678, 0.0
    %v807 = vmax.f32 %v679, 0.0
    %v808 = vmax.f32 %v680, 0.0
    %v809 = vmax.f32 %v681, 0.0
    %810 = vst [vmem:[#allocation2] sm:$0xff] %v682
    %811 = vst [vmem:[#allocation2 + $0x8] sm:$0xff] %v683
    %812 = vst [vmem:[#allocation2 + $0x10] sm:$0xff] %v684
    %813 = vst [vmem:[#allocation2 + $0x18] sm:$0xff] %v685
    %814 = vst [vmem:[#allocation2 + $0x20] sm:$0xff] %v686
    %815 = vst [vmem:[#allocation2 + $0x28] sm:$0xff] %v687
    %816 = vst [vmem:[#allocation2 + $0x30] sm:$0xff] %v688
    %817 = vst [vmem:[#allocation2 + $0x38] sm:$0xff] %v689
    %818 = vst [vmem:[#allocation2 + $0x40] sm:$0xff] %v690
    %819 = vst [vmem:[#allocation2 + $0x48] sm:$0xff] %v691
    %820 = vst [vmem:[#allocation2 + $0x50] sm:$0xff] %v692
    %821 = vst [vmem:[#allocation2 + $0x58] sm:$0xff] %v693
    %822 = vst [vmem:[#allocation2 + $0x60] sm:$0xff] %v694
    %823 = vst [vmem:[#allocation2 + $0x68] sm:$0xff] %v695
    %824 = vst [vmem:[#allocation2 + $0x70] sm:$0xff] %v696
    %825 = vst [vmem:[#allocation2 + $0x78] sm:$0xff] %v697
    %826 = vst [vmem:[#allocation2 + $0x80] sm:$0xff] %v698
    %827 = vst [vmem:[#allocation2 + $0x88] sm:$0xff] %v699
    %828 = vst [vmem:[#allocation2 + $0x90] sm:$0xff] %v700
    %829 = vst [vmem:[#allocation2 + $0x98] sm:$0xff] %v701
    %830 = vst [vmem:[#allocation2 + $0xa0] sm:$0xff] %v702
    %831 = vst [vmem:[#allocation2 + $0xa8] sm:$0xff] %v703
    %832 = vst [vmem:[#allocation2 + $0xb0] sm:$0xff] %v704
    %833 = vst [vmem:[#allocation2 + $0xb8] sm:$0xff] %v705
    %834 = vst [vmem:[#allocation2 + $0xc0] sm:$0xff] %v706
    %835 = vst [vmem:[#allocation2 + $0xc8] sm:$0xff] %v707
    %836 = vst [vmem:[#allocation2 + $0xd0] sm:$0xff] %v708
    %837 = vst [vmem:[#allocation2 + $0xd8] sm:$0xff] %v709
    %838 = vst [vmem:[#allocation2 + $0xe0] sm:$0xff] %v710
    %839 = vst [vmem:[#allocation2 + $0xe8] sm:$0xff] %v711
    %840 = vst [vmem:[#allocation2 + $0xf0] sm:$0xff] %v712
    %841 = vst [vmem:[#allocation2 + $0xf8] sm:$0xff] %v713
    %842 = vst [vmem:[#allocation2 + $0x100] sm:$0xff] %v714
    %843 = vst [vmem:[#allocation2 + $0x108] sm:$0xff] %v715
    %844 = vst [vmem:[#allocation2 + $0x110] sm:$0xff] %v716
    %845 = vst [vmem:[#allocation2 + $0x118] sm:$0xff] %v717
    %846 = vst [vmem:[#allocation2 + $0x120] sm:$0xff] %v718
    %847 = vst [vmem:[#allocation2 + $0x128] sm:$0xff] %v719
    %848 = vst [vmem:[#allocation2 + $0x130] sm:$0xff] %v720
    %849 = vst [vmem:[#allocation2 + $0x138] sm:$0xff] %v721
    %850 = vst [vmem:[#allocation2 + $0x140] sm:$0xff] %v722
    %851 = vst [vmem:[#allocation2 + $0x148] sm:$0xff] %v723
    %852 = vst [vmem:[#allocation2 + $0x150] sm:$0xff] %v724
    %853 = vst [vmem:[#allocation2 + $0x158] sm:$0xff] %v725
    %854 = vst [vmem:[#allocation2 + $0x160] sm:$0xff] %v726
    %855 = vst [vmem:[#allocation2 + $0x168] sm:$0xff] %v727
    %856 = vst [vmem:[#allocation2 + $0x170] sm:$0xff] %v728
    %857 = vst [vmem:[#allocation2 + $0x178] sm:$0xff] %v729
    %858 = vst [vmem:[#allocation2 + $0x180] sm:$0xff] %v730
    %859 = vst [vmem:[#allocation2 + $0x188] sm:$0xff] %v731
    %860 = vst [vmem:[#allocation2 + $0x190] sm:$0xff] %v732
    %861 = vst [vmem:[#allocation2 + $0x198] sm:$0xff] %v733
    %862 = vst [vmem:[#allocation2 + $0x1a0] sm:$0xff] %v734
    %863 = vst [vmem:[#allocation2 + $0x1a8] sm:$0xff] %v735
    %864 = vst [vmem:[#allocation2 + $0x1b0] sm:$0xff] %v736
    %865 = vst [vmem:[#allocation2 + $0x1b8] sm:$0xff] %v737
    %866 = vst [vmem:[#allocation2 + $0x1c0] sm:$0xff] %v738
    %867 = vst [vmem:[#allocation2 + $0x1c8] sm:$0xff] %v739
    %868 = vst [vmem:[#allocation2 + $0x1d0] sm:$0xff] %v740
    %869 = vst [vmem:[#allocation2 + $0x1d8] sm:$0xff] %v741
    %870 = vst [vmem:[#allocation2 + $0x1e0] sm:$0xff] %v742
    %871 = vst [vmem:[#allocation2 + $0x1e8] sm:$0xff] %v743
    %872 = vst [vmem:[#allocation2 + $0x1f0] sm:$0xff] %v744
    %873 = vst [vmem:[#allocation2 + $0x1f8] sm:$0xff] %v745
    %874 = vst [vmem:[#allocation2 + $0x200] sm:$0xff] %v746
    %875 = vst [vmem:[#allocation2 + $0x208] sm:$0xff] %v747
    %876 = vst [vmem:[#allocation2 + $0x210] sm:$0xff] %v748
    %877 = vst [vmem:[#allocation2 + $0x218] sm:$0xff] %v749
    %878 = vst [vmem:[#allocation2 + $0x220] sm:$0xff] %v750
    %879 = vst [vmem:[#allocation2 + $0x228] sm:$0xff] %v751
    %880 = vst [vmem:[#allocation2 + $0x230] sm:$0xff] %v752
    %881 = vst [vmem:[#allocation2 + $0x238] sm:$0xff] %v753
    %882 = vst [vmem:[#allocation2 + $0x240] sm:$0xff] %v754
    %883 = vst [vmem:[#allocation2 + $0x248] sm:$0xff] %v755
    %884 = vst [vmem:[#allocation2 + $0x250] sm:$0xff] %v756
    %885 = vst [vmem:[#allocation2 + $0x258] sm:$0xff] %v757
    %886 = vst [vmem:[#allocation2 + $0x260] sm:$0xff] %v758
    %887 = vst [vmem:[#allocation2 + $0x268] sm:$0xff] %v759
    %888 = vst [vmem:[#allocation2 + $0x270] sm:$0xff] %v760
    %889 = vst [vmem:[#allocation2 + $0x278] sm:$0xff] %v761
    %890 = vst [vmem:[#allocation2 + $0x280] sm:$0xff] %v762
    %891 = vst [vmem:[#allocation2 + $0x288] sm:$0xff] %v763
    %892 = vst [vmem:[#allocation2 + $0x290] sm:$0xff] %v764
    %893 = vst [vmem:[#allocation2 + $0x298] sm:$0xff] %v765
    %894 = vst [vmem:[#allocation2 + $0x2a0] sm:$0xff] %v766
    %895 = vst [vmem:[#allocation2 + $0x2a8] sm:$0xff] %v767
    %896 = vst [vmem:[#allocation2 + $0x2b0] sm:$0xff] %v768
    %897 = vst [vmem:[#allocation2 + $0x2b8] sm:$0xff] %v769
    %898 = vst [vmem:[#allocation2 + $0x2c0] sm:$0xff] %v770
    %899 = vst [vmem:[#allocation2 + $0x2c8] sm:$0xff] %v771
    %900 = vst [vmem:[#allocation2 + $0x2d0] sm:$0xff] %v772
    %901 = vst [vmem:[#allocation2 + $0x2d8] sm:$0xff] %v773
    %902 = vst [vmem:[#allocation2 + $0x2e0] sm:$0xff] %v774
    %903 = vst [vmem:[#allocation2 + $0x2e8] sm:$0xff] %v775
    %904 = vst [vmem:[#allocation2 + $0x2f0] sm:$0xff] %v776
    %905 = vst [vmem:[#allocation2 + $0x2f8] sm:$0xff] %v777
    %906 = vst [vmem:[#allocation2 + $0x300] sm:$0xff] %v778
    %907 = vst [vmem:[#allocation2 + $0x308] sm:$0xff] %v779
    %908 = vst [vmem:[#allocation2 + $0x310] sm:$0xff] %v780
    %909 = vst [vmem:[#allocation2 + $0x318] sm:$0xff] %v781
    %910 = vst [vmem:[#allocation2 + $0x320] sm:$0xff] %v782
    %911 = vst [vmem:[#allocation2 + $0x328] sm:$0xff] %v783
    %912 = vst [vmem:[#allocation2 + $0x330] sm:$0xff] %v784
    %913 = vst [vmem:[#allocation2 + $0x338] sm:$0xff] %v785
    %914 = vst [vmem:[#allocation2 + $0x340] sm:$0xff] %v786
    %915 = vst [vmem:[#allocation2 + $0x348] sm:$0xff] %v787
    %916 = vst [vmem:[#allocation2 + $0x350] sm:$0xff] %v788
    %917 = vst [vmem:[#allocation2 + $0x358] sm:$0xff] %v789
    %918 = vst [vmem:[#allocation2 + $0x360] sm:$0xff] %v790
    %919 = vst [vmem:[#allocation2 + $0x368] sm:$0xff] %v791
    %920 = vst [vmem:[#allocation2 + $0x370] sm:$0xff] %v792
    %921 = vst [vmem:[#allocation2 + $0x378] sm:$0xff] %v793
    %922 = vst [vmem:[#allocation2 + $0x380] sm:$0xff] %v794
    %923 = vst [vmem:[#allocation2 + $0x388] sm:$0xff] %v795
    %924 = vst [vmem:[#allocation2 + $0x390] sm:$0xff] %v796
    %925 = vst [vmem:[#allocation2 + $0x398] sm:$0xff] %v797
    %926 = vst [vmem:[#allocation2 + $0x3a0] sm:$0xff] %v798
    %927 = vst [vmem:[#allocation2 + $0x3a8] sm:$0xff] %v799
    %928 = vst [vmem:[#allocation2 + $0x3b0] sm:$0xff] %v800
    %929 = vst [vmem:[#allocation2 + $0x3b8] sm:$0xff] %v801
    %930 = vst [vmem:[#allocation2 + $0x3c0] sm:$0xff] %v802
    %931 = vst [vmem:[#allocation2 + $0x3c8] sm:$0xff] %v803
    %932 = vst [vmem:[#allocation2 + $0x3d0] sm:$0xff] %v804
    %933 = vst [vmem:[#allocation2 + $0x3d8] sm:$0xff] %v805
    %934 = vst [vmem:[#allocation2 + $0x3e0] sm:$0xff] %v806
    %935 = vst [vmem:[#allocation2 + $0x3e8] sm:$0xff] %v807
    %936 = vst [vmem:[#allocation2 + $0x3f0] sm:$0xff] %v808
    %937 = vst [vmem:[#allocation2 + $0x3f8] sm:$0xff] %v809
    // Predicated region
    $region18: #{bottleneck_forward.7} parent=1 // pred_check
      _
    $region19: #{bottleneck_forward.7} parent=1 // pred_check_branch
      %939 = sbr.rel (0) target = $region21
    $region20: #{bottleneck_forward.7} parent=1 // pred_region
      %s941 = ssub.s32 16384, 16384
      %942 = vsyncadd [#allocation3], %s941
      %s943 = sshll.u32 [#allocation2], 4
      %s944 = int_to_ptr.vmem [resolvable:$true] %s943
      %949 = dma.vmem_to_hbm [thread:$0]  %s944, 16384, %s4, [#allocation3], 256, 256, 16
    $region21: #{bottleneck_forward.7} parent=1 // pred_fallthru
      _
    // Predicated region
    $region22: #{bottleneck_forward.7} parent=1 // pred_check
      _
    $region23: #{bottleneck_forward.7} parent=1 // pred_check_branch
      %951 = sbr.rel (0) target = $region25
    $region24: #{bottleneck_forward.7} parent=1 // pred_region
      %952 = dma.done [#allocation3], 16384
    $region25: #{bottleneck_forward.7} parent=1 // pred_fallthru
      _
    %953 = vsyncpa [#allocation3], 1

// kernel: bottleneck_forward.5
$region0: #{bottleneck_forward.5}
  #allocation0 [shape = 'u32[]', space=smem, size = 0x4, offset = 0x4, fixed_abs, tag = 'smem constant byte address 0x4 - core index']
  #allocation1 [shape = 'u32[144,128]{1,0:T(1,128)}', space=vmem, size = 0x12000, scoped, tag = 'internal scratch']
  #allocation2 [shape = 'f32[160,192]{1,0:T(8,128)}', space=vmem, size = 0x28000, scoped, tag = 'scratch operand']
  %s0 = inlined_call_operand.vmem [shape: f32[512,64], index: 0, kind: input, shape index: {}]
  %s1 = inlined_call_operand.vmem [shape: f32[3,192,64], index: 1, kind: input, shape index: {}]
  %s2 = inlined_call_operand.vmem [shape: f32[1,64], index: 2, kind: input, shape index: {}]
  %s3 = inlined_call_operand.vmem [shape: f32[1,64], index: 3, kind: input, shape index: {}]
  %s4 = inlined_call_operand.vmem [shape: f32[128,1], index: 4, kind: input, shape index: {}]
  %s5 = inlined_call_operand.vmem [shape: f32[128,1], index: 5, kind: input, shape index: {}]
  %s6 = inlined_call_operand.vmem [shape: f32[512,64], index: 6, kind: output, shape index: {0}]
  %s7 = inlined_call_operand.vmem [shape: f32[4,1,128], index: 7, kind: output, shape index: {1}]
  %8 = xla_tuple %s6, %s7
  %s9 = sld [smem:[#allocation0]]
  $region81: #{bottleneck_forward.5} parent=0
    _
  %s11 = ssub.s32 1, %s9
  %s12 = scalar_select 0, %s11, %s9
  loop: start=0, step=1, limit=6
  $region2: #{bottleneck_forward.5} parent=0 // loop_pre_header
    _
  $region3: #{bottleneck_forward.5} parent=0 // loop_header
    %s14 = sphi 0, %s18
    %p15 = scmp.ge.s32.totalorder %s14, 6
    %s21 = sphi 0, %s33
    %s22 = sphi 0, %s29
    %s23 = sphi 0, %s21
    %s24 = sphi 0, %s22
    %s25 = sphi 0, %s23
    %s26 = sphi 0, %s24
    %s36 = sphi 0, %s38
    %s39 = sphi 0, %s36
    %s40 = sphi 0, %s39
    %s56 = sphi 0, %s40
    %s60 = sphi 0, %s60
    %s62 = sphi 0, %s60
    %s63 = sphi 0, %s62
    %s77 = sphi 0, %s63
    %s81 = sphi 0, %s81
    %s83 = sphi 0, %s81
    %s84 = sphi 0, %s83
    %s98 = sphi 0, %s84
    %s102 = sphi 0, %s102
    %s104 = sphi 0, %s102
    %s105 = sphi 0, %s104
    %s119 = sphi 0, %s105
    %s123 = sphi 0, %s123
    %s125 = sphi 0, %s123
    %s126 = sphi 0, %s125
    %s140 = sphi 0, %s126
    %s144 = sphi 0, %s144
    %s146 = sphi 0, %s144
    %s147 = sphi 0, %s146
    %s161 = sphi 0, %s147
    %s171 = sphi 0, %s173
    %s174 = sphi 0, %s171
    %s175 = sphi 0, %s174
    %s191 = sphi 0, %s175
    %s201 = sphi 0, %s203
    %s204 = sphi 0, %s201
    %s205 = sphi 0, %s204
    %s221 = sphi 0, %s205
  $region4: #{bottleneck_forward.5} parent=0 // loop_header_branch
    %17 = sbr.rel (%p15) target = $region8
  $region5: #{bottleneck_forward.5} parent=0 // loop_body
    %s19 = ssub.s32 %s14, 1
    %s20 = ssub.s32 %s14, 2
    %s27 = sadd.s32 1, %s22
    %p28 = scmp.ge.s32.totalorder %s27, 2
    %s29 = scalar_select %p28, 0, %s27
    %s30 = sadd.s32 1, %s21
    %s31 = scalar_select %p28, %s30, %s21
    %p32 = scmp.ge.s32.totalorder %s31, 2
    %s33 = scalar_select %p32, 0, %s31
    %s34 = ssub.s32 %s21, %s33
    %p35 = scmp.eq.s32.totalorder %s34, 0
    %s37 = sadd.s32 %s36, 1
    %s38 = scalar_select %p35, %s36, %s37
    %p41 = pneg %p35
    %p42 = scmp.eq.s32.totalorder %s14, 3
    %p43 = por %p41, %p42
    %p44 = scmp.ne.s32.totalorder %s36, %s39
    %p45 = scmp.eq.s32.totalorder %s14, 0
    %p46 = por %p44, %p45
    %p47 = scmp.ne.s32.totalorder %s36, %s39
    %p48 = scmp.eq.s32.totalorder %s19, 3
    %p49 = por %p47, %p48
    %p50 = scmp.ne.s32.totalorder %s39, %s40
    %p51 = scmp.eq.s32.totalorder %s19, 0
    %p52 = por %p50, %p51
    %p53 = scmp.ne.s32.totalorder %s39, %s40
    %p54 = scmp.eq.s32.totalorder %s20, 3
    %p55 = por %p53, %p54
    %p57 = scmp.ne.s32.totalorder %s40, %s56
    %p58 = scmp.eq.s32.totalorder %s20, 0
    %p59 = por %p57, %p58
    %s61 = sadd.s32 %s60, 1
    %p64 = scmp.eq.s32.totalorder %s14, 3
    %p65 = scmp.ne.s32.totalorder %s60, %s62
    %p66 = scmp.eq.s32.totalorder %s14, 0
    %p67 = por %p65, %p66
    %p68 = scmp.ne.s32.totalorder %s60, %s62
    %p69 = scmp.eq.s32.totalorder %s19, 3
    %p70 = por %p68, %p69
    %p71 = scmp.ne.s32.totalorder %s62, %s63
    %p72 = scmp.eq.s32.totalorder %s19, 0
    %p73 = por %p71, %p72
    %p74 = scmp.ne.s32.totalorder %s62, %s63
    %p75 = scmp.eq.s32.totalorder %s20, 3
    %p76 = por %p74, %p75
    %p78 = scmp.ne.s32.totalorder %s63, %s77
    %p79 = scmp.eq.s32.totalorder %s20, 0
    %p80 = por %p78, %p79
    %s82 = sadd.s32 %s81, 1
    %p85 = scmp.eq.s32.totalorder %s14, 3
    %p86 = scmp.ne.s32.totalorder %s81, %s83
    %p87 = scmp.eq.s32.totalorder %s14, 0
    %p88 = por %p86, %p87
    %p89 = scmp.ne.s32.totalorder %s81, %s83
    %p90 = scmp.eq.s32.totalorder %s19, 3
    %p91 = por %p89, %p90
    %p92 = scmp.ne.s32.totalorder %s83, %s84
    %p93 = scmp.eq.s32.totalorder %s19, 0
    %p94 = por %p92, %p93
    %p95 = scmp.ne.s32.totalorder %s83, %s84
    %p96 = scmp.eq.s32.totalorder %s20, 3
    %p97 = por %p95, %p96
    %p99 = scmp.ne.s32.totalorder %s84, %s98
    %p100 = scmp.eq.s32.totalorder %s20, 0
    %p101 = por %p99, %p100
    %s103 = sadd.s32 %s102, 1
    %p106 = scmp.eq.s32.totalorder %s14, 3
    %p107 = scmp.ne.s32.totalorder %s102, %s104
    %p108 = scmp.eq.s32.totalorder %s14, 0
    %p109 = por %p107, %p108
    %p110 = scmp.ne.s32.totalorder %s102, %s104
    %p111 = scmp.eq.s32.totalorder %s19, 3
    %p112 = por %p110, %p111
    %p113 = scmp.ne.s32.totalorder %s104, %s105
    %p114 = scmp.eq.s32.totalorder %s19, 0
    %p115 = por %p113, %p114
    %p116 = scmp.ne.s32.totalorder %s104, %s105
    %p117 = scmp.eq.s32.totalorder %s20, 3
    %p118 = por %p116, %p117
    %p120 = scmp.ne.s32.totalorder %s105, %s119
    %p121 = scmp.eq.s32.totalorder %s20, 0
    %p122 = por %p120, %p121
    %s124 = sadd.s32 %s123, 1
    %p127 = scmp.eq.s32.totalorder %s14, 3
    %p128 = scmp.ne.s32.totalorder %s123, %s125
    %p129 = scmp.eq.s32.totalorder %s14, 0
    %p130 = por %p128, %p129
    %p131 = scmp.ne.s32.totalorder %s123, %s125
    %p132 = scmp.eq.s32.totalorder %s19, 3
    %p133 = por %p131, %p132
    %p134 = scmp.ne.s32.totalorder %s125, %s126
    %p135 = scmp.eq.s32.totalorder %s19, 0
    %p136 = por %p134, %p135
    %p137 = scmp.ne.s32.totalorder %s125, %s126
    %p138 = scmp.eq.s32.totalorder %s20, 3
    %p139 = por %p137, %p138
    %p141 = scmp.ne.s32.totalorder %s126, %s140
    %p142 = scmp.eq.s32.totalorder %s20, 0
    %p143 = por %p141, %p142
    %s145 = sadd.s32 %s144, 1
    %p148 = scmp.eq.s32.totalorder %s14, 3
    %p149 = scmp.ne.s32.totalorder %s144, %s146
    %p150 = scmp.eq.s32.totalorder %s14, 0
    %p151 = por %p149, %p150
    %p152 = scmp.ne.s32.totalorder %s144, %s146
    %p153 = scmp.eq.s32.totalorder %s19, 3
    %p154 = por %p152, %p153
    %p155 = scmp.ne.s32.totalorder %s146, %s147
    %p156 = scmp.eq.s32.totalorder %s19, 0
    %p157 = por %p155, %p156
    %p158 = scmp.ne.s32.totalorder %s146, %s147
    %p159 = scmp.eq.s32.totalorder %s20, 3
    %p160 = por %p158, %p159
    %p162 = scmp.ne.s32.totalorder %s147, %s161
    %p163 = scmp.eq.s32.totalorder %s20, 0
    %p164 = por %p162, %p163
    %s165 = smul.u32 %s21, 2
    %s166 = sadd.s32 %s165, %s22
    %s167 = smul.u32 %s33, 2
    %s168 = sadd.s32 %s167, %s29
    %s169 = ssub.s32 %s166, %s168
    %p170 = scmp.eq.s32.totalorder %s169, 0
    %s172 = sadd.s32 %s171, 1
    %s173 = scalar_select %p170, %s171, %s172
    %p176 = pneg %p170
    %p177 = scmp.eq.s32.totalorder %s14, 3
    %p178 = por %p176, %p177
    %p179 = scmp.ne.s32.totalorder %s171, %s174
    %p180 = scmp.eq.s32.totalorder %s14, 0
    %p181 = por %p179, %p180
    %p182 = scmp.ne.s32.totalorder %s171, %s174
    %p183 = scmp.eq.s32.totalorder %s19, 3
    %p184 = por %p182, %p183
    %p185 = scmp.ne.s32.totalorder %s174, %s175
    %p186 = scmp.eq.s32.totalorder %s19, 0
    %p187 = por %p185, %p186
    %p188 = scmp.ne.s32.totalorder %s174, %s175
    %p189 = scmp.eq.s32.totalorder %s20, 3
    %p190 = por %p188, %p189
    %p192 = scmp.ne.s32.totalorder %s175, %s191
    %p193 = scmp.eq.s32.totalorder %s20, 0
    %p194 = por %p192, %p193
    %s195 = smul.u32 %s21, 2
    %s196 = sadd.s32 %s195, %s22
    %s197 = smul.u32 %s33, 2
    %s198 = sadd.s32 %s197, %s29
    %s199 = ssub.s32 %s196, %s198
    %p200 = scmp.eq.s32.totalorder %s199, 0
    %s202 = sadd.s32 %s201, 1
    %s203 = scalar_select %p200, %s201, %s202
    %p206 = pneg %p200
    %p207 = scmp.eq.s32.totalorder %s14, 3
    %p208 = por %p206, %p207
    %p209 = scmp.ne.s32.totalorder %s201, %s204
    %p210 = scmp.eq.s32.totalorder %s14, 0
    %p211 = por %p209, %p210
    %p212 = scmp.ne.s32.totalorder %s201, %s204
    %p213 = scmp.eq.s32.totalorder %s19, 3
    %p214 = por %p212, %p213
    %p215 = scmp.ne.s32.totalorder %s204, %s205
    %p216 = scmp.eq.s32.totalorder %s19, 0
    %p217 = por %p215, %p216
    %p218 = scmp.ne.s32.totalorder %s204, %s205
    %p219 = scmp.eq.s32.totalorder %s20, 3
    %p220 = por %p218, %p219
    %p222 = scmp.ne.s32.totalorder %s205, %s221
    %p223 = scmp.eq.s32.totalorder %s20, 0
    %p224 = por %p222, %p223
    %p225 = scmp.le.s32.totalorder 1, %s14
    %p226 = scmp.lt.s32.totalorder %s14, 5
    %p227 = pnand %p225, %p226
    %p228 = pneg %p227
    // Predicated region
    $region9: #{bottleneck_forward.5} parent=5 // pred_check
      _
    $region10: #{bottleneck_forward.5} parent=5 // pred_check_branch
      %230 = sbr.rel (%p227) target = $region12
    $region11: #{bottleneck_forward.5} parent=5 // pred_region
      %s231 = ssub.s32 %s14, 1
      // Predicated region
      $region13: #{bottleneck_forward.5} parent=11 // pred_check
        %p232 = pneg %p73
      $region14: #{bottleneck_forward.5} parent=11 // pred_check_branch
        %234 = sbr.rel (%p232) target = $region16
      $region15: #{bottleneck_forward.5} parent=11 // pred_region
        _
      $region16: #{bottleneck_forward.5} parent=11 // pred_fallthru
        _
      // Predicated region
      $region17: #{bottleneck_forward.5} parent=11 // pred_check
        %p235 = pneg %p94
      $region18: #{bottleneck_forward.5} parent=11 // pred_check_branch
        %237 = sbr.rel (%p235) target = $region20
      $region19: #{bottleneck_forward.5} parent=11 // pred_region
        _
      $region20: #{bottleneck_forward.5} parent=11 // pred_fallthru
        _
      // Predicated region
      $region21: #{bottleneck_forward.5} parent=11 // pred_check
        %p238 = pneg %p115
      $region22: #{bottleneck_forward.5} parent=11 // pred_check_branch
        %240 = sbr.rel (%p238) target = $region24
      $region23: #{bottleneck_forward.5} parent=11 // pred_region
        _
      $region24: #{bottleneck_forward.5} parent=11 // pred_fallthru
        _
      // Predicated region
      $region25: #{bottleneck_forward.5} parent=11 // pred_check
        %p241 = pneg %p136
      $region26: #{bottleneck_forward.5} parent=11 // pred_check_branch
        %243 = sbr.rel (%p241) target = $region28
      $region27: #{bottleneck_forward.5} parent=11 // pred_region
        _
      $region28: #{bottleneck_forward.5} parent=11 // pred_fallthru
        _
      // Predicated region
      $region29: #{bottleneck_forward.5} parent=11 // pred_check
        %p244 = pneg %p157
      $region30: #{bottleneck_forward.5} parent=11 // pred_check_branch
        %246 = sbr.rel (%p244) target = $region32
      $region31: #{bottleneck_forward.5} parent=11 // pred_region
        _
      $region32: #{bottleneck_forward.5} parent=11 // pred_fallthru
        _
    $region12: #{bottleneck_forward.5} parent=5 // pred_fallthru
      _
    %p247 = scmp.lt.s32.totalorder %s14, 4
    // Predicated region
    $region33: #{bottleneck_forward.5} parent=5 // pred_check
      %p248 = pneg %p247
    $region34: #{bottleneck_forward.5} parent=5 // pred_check_branch
      %250 = sbr.rel (%p248) target = $region36
    $region35: #{bottleneck_forward.5} parent=5 // pred_region
      // Predicated region
      $region37: #{bottleneck_forward.5} parent=35 // pred_check
        %p251 = pneg %p46
      $region38: #{bottleneck_forward.5} parent=35 // pred_check_branch
        %253 = sbr.rel (%p251) target = $region40
      $region39: #{bottleneck_forward.5} parent=35 // pred_region
        %s254 = smul.u32 32, %s21
        %p255 = scmp.lt.s32.totalorder %s254, 63
        %s256 = scalar_select %p255, %s254, 63
        %s257 = smul.addr %s256, 8
        %s258 = scalar_lea.vmem %s0, %s257
        %s259 = smul.u32 32, %s21
      $region40: #{bottleneck_forward.5} parent=35 // pred_fallthru
        _
    $region36: #{bottleneck_forward.5} parent=5 // pred_fallthru
      _
    %p260 = scmp.le.s32.totalorder 1, %s14
    %p261 = scmp.lt.s32.totalorder %s14, 5
    %p262 = pnand %p260, %p261
    %p263 = pneg %p262
    // Predicated region
    $region41: #{bottleneck_forward.5} parent=5 // pred_check
      _
    $region42: #{bottleneck_forward.5} parent=5 // pred_check_branch
      %265 = sbr.rel (%p262) target = $region44
    $region43: #{bottleneck_forward.5} parent=5 // pred_region
      %s266 = ssub.s32 %s14, 1
      %s267 = smul.u32 32, %s23
      %p268 = scmp.lt.s32.totalorder %s267, 63
      %s269 = scalar_select %p268, %s267, 63
      %s270 = smul.addr %s269, 8
      %s271 = scalar_lea.vmem %s0, %s270
      %p272 = pneg %p52
      %p273 = pneg %p49
      %p274 = pneg %p73
      %p275 = pneg %p70
      %p276 = pneg %p94
      %p277 = pneg %p91
      %p278 = pneg %p115
      %p279 = pneg %p112
      %p280 = pneg %p136
      %p281 = pneg %p133
      %p282 = pneg %p157
      %p283 = pneg %p154
      %p284 = pneg %p187
      %p285 = pneg %p184
      %s286 = smul.u32 %s23, 2
      %s287 = sadd.s32 %s286, %s24
      %s288 = smul.u32 16, %s287
      %p289 = scmp.lt.s32.totalorder %s288, 63
      %s290 = scalar_select %p289, %s288, 63
      %s291 = smul.addr %s290, 8
      %s292 = scalar_lea.vmem %s6, %s291
      %p293 = pneg %p217
      %p294 = pneg %p214
      %s295 = smul.u32 %s23, 2
      %s296 = sadd.s32 %s295, %s24
      %p297 = scmp.lt.s32.totalorder %s296, 3
      %s298 = scalar_select %p297, %s296, 3
      %s299 = scalar_lea.vmem %s7, %s298
      %s300 = smul.u32 32, %s23
      %p301 = scmp.lt.s32.totalorder %s300, 63
      %s302 = scalar_select %p301, %s300, 63
      %s303 = smul.addr %s302, 8
      %s304 = scalar_lea.vmem %s0, %s303
      %s305 = smul.u32 32, %s23
      %s306 = smul.u32 %s23, 2
      %s307 = sadd.s32 %s306, %s24
      %s308 = smul.u32 16, %s307
      %p309 = scmp.lt.s32.totalorder %s308, 63
      %s310 = scalar_select %p309, %s308, 63
      %s311 = smul.addr %s310, 8
      %s312 = scalar_lea.vmem %s6, %s311
      %s313 = smul.u32 %s23, 2
      %s314 = sadd.s32 %s313, %s24
      %s315 = smul.u32 16, %s314
      %s316 = smul.u32 %s23, 2
      %s317 = sadd.s32 %s316, %s24
      %p318 = scmp.lt.s32.totalorder %s317, 3
      %s319 = scalar_select %p318, %s317, 3
      %s320 = scalar_lea.vmem %s7, %s319
      %s321 = smul.u32 %s23, 2
      %s322 = sadd.s32 %s321, %s24
      %s323 = smul.u32 %s24, 128
      %s324 = scalar_lea.vmem %s304, %s323
      %v325 = vld [vmem:[%s324] sm:$0xff]
      %v326 = vld [vmem:[%s324 + $0x8] sm:$0xff]
      %v327 = vld [vmem:[%s324 + $0x10] sm:$0xff]
      %v328 = vld [vmem:[%s324 + $0x18] sm:$0xff]
      %v329 = vld [vmem:[%s324 + $0x20] sm:$0xff]
      %v330 = vld [vmem:[%s324 + $0x28] sm:$0xff]
      %v331 = vld [vmem:[%s324 + $0x30] sm:$0xff]
      %v332 = vld [vmem:[%s324 + $0x38] sm:$0xff]
      %v333 = vld [vmem:[%s324 + $0x40] sm:$0xff]
      %v334 = vld [vmem:[%s324 + $0x48] sm:$0xff]
      %v335 = vld [vmem:[%s324 + $0x50] sm:$0xff]
      %v336 = vld [vmem:[%s324 + $0x58] sm:$0xff]
      %v337 = vld [vmem:[%s324 + $0x60] sm:$0xff]
      %v338 = vld [vmem:[%s324 + $0x68] sm:$0xff]
      %v339 = vld [vmem:[%s324 + $0x70] sm:$0xff]
      %v340 = vld [vmem:[%s324 + $0x78] sm:$0xff]
      %v341 = vld [vmem:[%s2] sm:$0x1]
      %v343 = vlaneseq
      %v344 = vshrl.u32 %v343, 7
      %v345 = vsub.s32 0, %v344
      %v346 = vrot.slane %v341, %v345
      %v348 = vmul.f32 %v325, %v346
      %v349 = vmul.f32 %v326, %v346
      %v350 = vmul.f32 %v327, %v346
      %v351 = vmul.f32 %v328, %v346
      %v352 = vmul.f32 %v329, %v346
      %v353 = vmul.f32 %v330, %v346
      %v354 = vmul.f32 %v331, %v346
      %v355 = vmul.f32 %v332, %v346
      %v356 = vmul.f32 %v333, %v346
      %v357 = vmul.f32 %v334, %v346
      %v358 = vmul.f32 %v335, %v346
      %v359 = vmul.f32 %v336, %v346
      %v360 = vmul.f32 %v337, %v346
      %v361 = vmul.f32 %v338, %v346
      %v362 = vmul.f32 %v339, %v346
      %v363 = vmul.f32 %v340, %v346
      %v364 = vld [vmem:[%s3] sm:$0x1]
      %v366 = vlaneseq
      %v367 = vshrl.u32 %v366, 7
      %v368 = vsub.s32 0, %v367
      %v369 = vrot.slane %v364, %v368
      %v371 = vadd.f32 %v348, %v369
      %v372 = vadd.f32 %v349, %v369
      %v373 = vadd.f32 %v350, %v369
      %v374 = vadd.f32 %v351, %v369
      %v375 = vadd.f32 %v352, %v369
      %v376 = vadd.f32 %v353, %v369
      %v377 = vadd.f32 %v354, %v369
      %v378 = vadd.f32 %v355, %v369
      %v379 = vadd.f32 %v356, %v369
      %v380 = vadd.f32 %v357, %v369
      %v381 = vadd.f32 %v358, %v369
      %v382 = vadd.f32 %v359, %v369
      %v383 = vadd.f32 %v360, %v369
      %v384 = vadd.f32 %v361, %v369
      %v385 = vadd.f32 %v362, %v369
      %v386 = vadd.f32 %v363, %v369
      %v387 = vmax.f32 %v371, 0.0
      %v388 = vmax.f32 %v372, 0.0
      %v389 = vmax.f32 %v373, 0.0
      %v390 = vmax.f32 %v374, 0.0
      %v391 = vmax.f32 %v375, 0.0
      %v392 = vmax.f32 %v376, 0.0
      %v393 = vmax.f32 %v377, 0.0
      %v394 = vmax.f32 %v378, 0.0
      %v395 = vmax.f32 %v379, 0.0
      %v396 = vmax.f32 %v380, 0.0
      %v397 = vmax.f32 %v381, 0.0
      %v398 = vmax.f32 %v382, 0.0
      %v399 = vmax.f32 %v383, 0.0
      %v400 = vmax.f32 %v384, 0.0
      %v401 = vmax.f32 %v385, 0.0
      %v402 = vmax.f32 %v386, 0.0
      %v403 = vld [vmem:[%s4] sm:$0xff]
      %v404 = vld [vmem:[%s4 + $0x8] sm:$0xff]
      %v405 = vld [vmem:[%s4 + $0x10] sm:$0xff]
      %v406 = vld [vmem:[%s4 + $0x18] sm:$0xff]
      %v407 = vld [vmem:[%s4 + $0x20] sm:$0xff]
      %v408 = vld [vmem:[%s4 + $0x28] sm:$0xff]
      %v409 = vld [vmem:[%s4 + $0x30] sm:$0xff]
      %v410 = vld [vmem:[%s4 + $0x38] sm:$0xff]
      %v411 = vld [vmem:[%s4 + $0x40] sm:$0xff]
      %v412 = vld [vmem:[%s4 + $0x48] sm:$0xff]
      %v413 = vld [vmem:[%s4 + $0x50] sm:$0xff]
      %v414 = vld [vmem:[%s4 + $0x58] sm:$0xff]
      %v415 = vld [vmem:[%s4 + $0x60] sm:$0xff]
      %v416 = vld [vmem:[%s4 + $0x68] sm:$0xff]
      %v417 = vld [vmem:[%s4 + $0x70] sm:$0xff]
      %v418 = vld [vmem:[%s4 + $0x78] sm:$0xff]
      %v419 = vld [vmem:[%s5] sm:$0xff]
      %v420 = vld [vmem:[%s5 + $0x8] sm:$0xff]
      %v421 = vld [vmem:[%s5 + $0x10] sm:$0xff]
      %v422 = vld [vmem:[%s5 + $0x18] sm:$0xff]
      %v423 = vld [vmem:[%s5 + $0x20] sm:$0xff]
      %v424 = vld [vmem:[%s5 + $0x28] sm:$0xff]
      %v425 = vld [vmem:[%s5 + $0x30] sm:$0xff]
      %v426 = vld [vmem:[%s5 + $0x38] sm:$0xff]
      %v427 = vld [vmem:[%s5 + $0x40] sm:$0xff]
      %v428 = vld [vmem:[%s5 + $0x48] sm:$0xff]
      %v429 = vld [vmem:[%s5 + $0x50] sm:$0xff]
      %v430 = vld [vmem:[%s5 + $0x58] sm:$0xff]
      %v431 = vld [vmem:[%s5 + $0x60] sm:$0xff]
      %v432 = vld [vmem:[%s5 + $0x68] sm:$0xff]
      %v433 = vld [vmem:[%s5 + $0x70] sm:$0xff]
      %v434 = vld [vmem:[%s5 + $0x78] sm:$0xff]
      %v436 = vrot.slane %v402, 7
      %vm453 = vcmask 1040384
      %v454 = vrot.slane %v387, 7
      %v455 = vrot.slane %v388, 7
      %v456 = vsel %vm453, %v454, %v455
      %v457 = vrot.slane %v389, 7
      %v458 = vsel %vm453, %v455, %v457
      %v459 = vrot.slane %v390, 7
      %v460 = vsel %vm453, %v457, %v459
      %v461 = vrot.slane %v391, 7
      %v462 = vsel %vm453, %v459, %v461
      %v463 = vrot.slane %v392, 7
      %v464 = vsel %vm453, %v461, %v463
      %v465 = vrot.slane %v393, 7
      %v466 = vsel %vm453, %v463, %v465
      %v467 = vrot.slane %v394, 7
      %v468 = vsel %vm453, %v465, %v467
      %v469 = vrot.slane %v395, 7
      %v470 = vsel %vm453, %v467, %v469
      %v471 = vrot.slane %v396, 7
      %v472 = vsel %vm453, %v469, %v471
      %v473 = vrot.slane %v397, 7
      %v474 = vsel %vm453, %v471, %v473
      %v475 = vrot.slane %v398, 7
      %v476 = vsel %vm453, %v473, %v475
      %v477 = vrot.slane %v399, 7
      %v478 = vsel %vm453, %v475, %v477
      %v479 = vrot.slane %v400, 7
      %v480 = vsel %vm453, %v477, %v479
      %v481 = vrot.slane %v401, 7
      %v482 = vsel %vm453, %v479, %v481
      %v483 = vsel %vm453, %v481, %v436
      %v500 = vsel %vm453, %v436, %v454
      %502 = vset.pattern.permute.xlu0 0
      %503 = vperm.xlu0 %502, %v403
      %v504 = vpop.permute.xlu0 %503
      %507 = vset.pattern.permute.xlu0 0
      %508 = vperm.xlu0 %507, %v404
      %v509 = vpop.permute.xlu0 %508
      %512 = vset.pattern.permute.xlu0 0
      %513 = vperm.xlu0 %512, %v405
      %v514 = vpop.permute.xlu0 %513
      %517 = vset.pattern.permute.xlu0 0
      %518 = vperm.xlu0 %517, %v406
      %v519 = vpop.permute.xlu0 %518
      %522 = vset.pattern.permute.xlu0 0
      %523 = vperm.xlu0 %522, %v407
      %v524 = vpop.permute.xlu0 %523
      %527 = vset.pattern.permute.xlu0 0
      %528 = vperm.xlu0 %527, %v408
      %v529 = vpop.permute.xlu0 %528
      %532 = vset.pattern.permute.xlu0 0
      %533 = vperm.xlu0 %532, %v409
      %v534 = vpop.permute.xlu0 %533
      %537 = vset.pattern.permute.xlu0 0
      %538 = vperm.xlu0 %537, %v410
      %v539 = vpop.permute.xlu0 %538
      %542 = vset.pattern.permute.xlu0 0
      %543 = vperm.xlu0 %542, %v411
      %v544 = vpop.permute.xlu0 %543
      %547 = vset.pattern.permute.xlu0 0
      %548 = vperm.xlu0 %547, %v412
      %v549 = vpop.permute.xlu0 %548
      %552 = vset.pattern.permute.xlu0 0
      %553 = vperm.xlu0 %552, %v413
      %v554 = vpop.permute.xlu0 %553
      %557 = vset.pattern.permute.xlu0 0
      %558 = vperm.xlu0 %557, %v414
      %v559 = vpop.permute.xlu0 %558
      %562 = vset.pattern.permute.xlu0 0
      %563 = vperm.xlu0 %562, %v415
      %v564 = vpop.permute.xlu0 %563
      %567 = vset.pattern.permute.xlu0 0
      %568 = vperm.xlu0 %567, %v416
      %v569 = vpop.permute.xlu0 %568
      %572 = vset.pattern.permute.xlu0 0
      %573 = vperm.xlu0 %572, %v417
      %v574 = vpop.permute.xlu0 %573
      %577 = vset.pattern.permute.xlu0 0
      %578 = vperm.xlu0 %577, %v418
      %v579 = vpop.permute.xlu0 %578
      %v581 = vmul.f32 %v500, %v504
      %v582 = vmul.f32 %v456, %v509
      %v583 = vmul.f32 %v458, %v514
      %v584 = vmul.f32 %v460, %v519
      %v585 = vmul.f32 %v462, %v524
      %v586 = vmul.f32 %v464, %v529
      %v587 = vmul.f32 %v466, %v534
      %v588 = vmul.f32 %v468, %v539
      %v589 = vmul.f32 %v470, %v544
      %v590 = vmul.f32 %v472, %v549
      %v591 = vmul.f32 %v474, %v554
      %v592 = vmul.f32 %v476, %v559
      %v593 = vmul.f32 %v478, %v564
      %v594 = vmul.f32 %v480, %v569
      %v595 = vmul.f32 %v482, %v574
      %v596 = vmul.f32 %v483, %v579
      %vm597 = vcmask 1046528
      %v598 = vrot.slane %v387, 1
      %v599 = vrot.slane %v388, 1
      %v600 = vsel %vm597, %v598, %v599
      %v601 = vrot.slane %v389, 1
      %v602 = vsel %vm597, %v599, %v601
      %v603 = vrot.slane %v390, 1
      %v604 = vsel %vm597, %v601, %v603
      %v605 = vrot.slane %v391, 1
      %v606 = vsel %vm597, %v603, %v605
      %v607 = vrot.slane %v392, 1
      %v608 = vsel %vm597, %v605, %v607
      %v609 = vrot.slane %v393, 1
      %v610 = vsel %vm597, %v607, %v609
      %v611 = vrot.slane %v394, 1
      %v612 = vsel %vm597, %v609, %v611
      %v613 = vrot.slane %v395, 1
      %v614 = vsel %vm597, %v611, %v613
      %v615 = vrot.slane %v396, 1
      %v616 = vsel %vm597, %v613, %v615
      %v617 = vrot.slane %v397, 1
      %v618 = vsel %vm597, %v615, %v617
      %v619 = vrot.slane %v398, 1
      %v620 = vsel %vm597, %v617, %v619
      %v621 = vrot.slane %v399, 1
      %v622 = vsel %vm597, %v619, %v621
      %v623 = vrot.slane %v400, 1
      %v624 = vsel %vm597, %v621, %v623
      %v625 = vrot.slane %v401, 1
      %v626 = vsel %vm597, %v623, %v625
      %v627 = vrot.slane %v402, 1
      %v628 = vsel %vm597, %v625, %v627
      %v646 = vsel %vm597, %v627, %v598
      %648 = vset.pattern.permute.xlu0 0
      %649 = vperm.xlu0 %648, %v419
      %v650 = vpop.permute.xlu0 %649
      %653 = vset.pattern.permute.xlu0 0
      %654 = vperm.xlu0 %653, %v420
      %v655 = vpop.permute.xlu0 %654
      %658 = vset.pattern.permute.xlu0 0
      %659 = vperm.xlu0 %658, %v421
      %v660 = vpop.permute.xlu0 %659
      %663 = vset.pattern.permute.xlu0 0
      %664 = vperm.xlu0 %663, %v422
      %v665 = vpop.permute.xlu0 %664
      %668 = vset.pattern.permute.xlu0 0
      %669 = vperm.xlu0 %668, %v423
      %v670 = vpop.permute.xlu0 %669
      %673 = vset.pattern.permute.xlu0 0
      %674 = vperm.xlu0 %673, %v424
      %v675 = vpop.permute.xlu0 %674
      %678 = vset.pattern.permute.xlu0 0
      %679 = vperm.xlu0 %678, %v425
      %v680 = vpop.permute.xlu0 %679
      %683 = vset.pattern.permute.xlu0 0
      %684 = vperm.xlu0 %683, %v426
      %v685 = vpop.permute.xlu0 %684
      %688 = vset.pattern.permute.xlu0 0
      %689 = vperm.xlu0 %688, %v427
      %v690 = vpop.permute.xlu0 %689
      %693 = vset.pattern.permute.xlu0 0
      %694 = vperm.xlu0 %693, %v428
      %v695 = vpop.permute.xlu0 %694
      %698 = vset.pattern.permute.xlu0 0
      %699 = vperm.xlu0 %698, %v429
      %v700 = vpop.permute.xlu0 %699
      %703 = vset.pattern.permute.xlu0 0
      %704 = vperm.xlu0 %703, %v430
      %v705 = vpop.permute.xlu0 %704
      %708 = vset.pattern.permute.xlu0 0
      %709 = vperm.xlu0 %708, %v431
      %v710 = vpop.permute.xlu0 %709
      %713 = vset.pattern.permute.xlu0 0
      %714 = vperm.xlu0 %713, %v432
      %v715 = vpop.permute.xlu0 %714
      %718 = vset.pattern.permute.xlu0 0
      %719 = vperm.xlu0 %718, %v433
      %v720 = vpop.permute.xlu0 %719
      %723 = vset.pattern.permute.xlu0 0
      %724 = vperm.xlu0 %723, %v434
      %v725 = vpop.permute.xlu0 %724
      %v727 = vmul.f32 %v600, %v650
      %v728 = vmul.f32 %v602, %v655
      %v729 = vmul.f32 %v604, %v660
      %v730 = vmul.f32 %v606, %v665
      %v731 = vmul.f32 %v608, %v670
      %v732 = vmul.f32 %v610, %v675
      %v733 = vmul.f32 %v612, %v680
      %v734 = vmul.f32 %v614, %v685
      %v735 = vmul.f32 %v616, %v690
      %v736 = vmul.f32 %v618, %v695
      %v737 = vmul.f32 %v620, %v700
      %v738 = vmul.f32 %v622, %v705
      %v739 = vmul.f32 %v624, %v710
      %v740 = vmul.f32 %v626, %v715
      %v741 = vmul.f32 %v628, %v720
      %v742 = vmul.f32 %v646, %v725
      %743 = vrot.lane.b32.xlu0 %v387, 64
      %v744 = vpop.permute.xlu0 %743
      %745 = vrot.lane.b32.xlu0 %v388, 64
      %v746 = vpop.permute.xlu0 %745
      %747 = vrot.lane.b32.xlu0 %v389, 64
      %v748 = vpop.permute.xlu0 %747
      %749 = vrot.lane.b32.xlu0 %v390, 64
      %v750 = vpop.permute.xlu0 %749
      %751 = vrot.lane.b32.xlu0 %v391, 64
      %v752 = vpop.permute.xlu0 %751
      %753 = vrot.lane.b32.xlu0 %v392, 64
      %v754 = vpop.permute.xlu0 %753
      %755 = vrot.lane.b32.xlu0 %v393, 64
      %v756 = vpop.permute.xlu0 %755
      %757 = vrot.lane.b32.xlu0 %v394, 64
      %v758 = vpop.permute.xlu0 %757
      %759 = vrot.lane.b32.xlu0 %v395, 64
      %v760 = vpop.permute.xlu0 %759
      %761 = vrot.lane.b32.xlu0 %v396, 64
      %v762 = vpop.permute.xlu0 %761
      %763 = vrot.lane.b32.xlu0 %v397, 64
      %v764 = vpop.permute.xlu0 %763
      %765 = vrot.lane.b32.xlu0 %v398, 64
      %v766 = vpop.permute.xlu0 %765
      %767 = vrot.lane.b32.xlu0 %v399, 64
      %v768 = vpop.permute.xlu0 %767
      %769 = vrot.lane.b32.xlu0 %v400, 64
      %v770 = vpop.permute.xlu0 %769
      %771 = vrot.lane.b32.xlu0 %v401, 64
      %v772 = vpop.permute.xlu0 %771
      %773 = vrot.lane.b32.xlu0 %v402, 64
      %v774 = vpop.permute.xlu0 %773
      %vm791 = vcmask 523264
      %v792 = vsel %vm791, %v581, %v744
      %v793 = vsel %vm791, %v582, %v746
      %v794 = vsel %vm791, %v583, %v748
      %v795 = vsel %vm791, %v584, %v750
      %v796 = vsel %vm791, %v585, %v752
      %v797 = vsel %vm791, %v586, %v754
      %v798 = vsel %vm791, %v587, %v756
      %v799 = vsel %vm791, %v588, %v758
      %v800 = vsel %vm791, %v589, %v760
      %v801 = vsel %vm791, %v590, %v762
      %v802 = vsel %vm791, %v591, %v764
      %v803 = vsel %vm791, %v592, %v766
      %v804 = vsel %vm791, %v593, %v768
      %v805 = vsel %vm791, %v594, %v770
      %v806 = vsel %vm791, %v595, %v772
      %v807 = vsel %vm791, %v596, %v774
      %808 = vst [vmem:[#allocation2 + $0x20] sm:$0xff] %v792
      %809 = vst.msk [vmem:[#allocation2 + $0x28] sm:$0xff] %vm791, %v727
      %810 = vst [vmem:[#allocation2 + $0x30] sm:$0xff] %v793
      %811 = vst.msk [vmem:[#allocation2 + $0x38] sm:$0xff] %vm791, %v728
      %812 = vst [vmem:[#allocation2 + $0x40] sm:$0xff] %v794
      %813 = vst.msk [vmem:[#allocation2 + $0x48] sm:$0xff] %vm791, %v729
      %814 = vst [vmem:[#allocation2 + $0x50] sm:$0xff] %v795
      %815 = vst.msk [vmem:[#allocation2 + $0x58] sm:$0xff] %vm791, %v730
      %816 = vst [vmem:[#allocation2 + $0x60] sm:$0xff] %v796
      %817 = vst.msk [vmem:[#allocation2 + $0x68] sm:$0xff] %vm791, %v731
      %818 = vst [vmem:[#allocation2 + $0x70] sm:$0xff] %v797
      %819 = vst.msk [vmem:[#allocation2 + $0x78] sm:$0xff] %vm791, %v732
      %820 = vst [vmem:[#allocation2 + $0x80] sm:$0xff] %v798
      %821 = vst.msk [vmem:[#allocation2 + $0x88] sm:$0xff] %vm791, %v733
      %822 = vst [vmem:[#allocation2 + $0x90] sm:$0xff] %v799
      %823 = vst.msk [vmem:[#allocation2 + $0x98] sm:$0xff] %vm791, %v734
      %824 = vst [vmem:[#allocation2 + $0xa0] sm:$0xff] %v800
      %825 = vst.msk [vmem:[#allocation2 + $0xa8] sm:$0xff] %vm791, %v735
      %826 = vst [vmem:[#allocation2 + $0xb0] sm:$0xff] %v801
      %827 = vst.msk [vmem:[#allocation2 + $0xb8] sm:$0xff] %vm791, %v736
      %828 = vst [vmem:[#allocation2 + $0xc0] sm:$0xff] %v802
      %829 = vst.msk [vmem:[#allocation2 + $0xc8] sm:$0xff] %vm791, %v737
      %830 = vst [vmem:[#allocation2 + $0xd0] sm:$0xff] %v803
      %831 = vst.msk [vmem:[#allocation2 + $0xd8] sm:$0xff] %vm791, %v738
      %832 = vst [vmem:[#allocation2 + $0xe0] sm:$0xff] %v804
      %833 = vst.msk [vmem:[#allocation2 + $0xe8] sm:$0xff] %vm791, %v739
      %834 = vst [vmem:[#allocation2 + $0xf0] sm:$0xff] %v805
      %835 = vst.msk [vmem:[#allocation2 + $0xf8] sm:$0xff] %vm791, %v740
      %836 = vst [vmem:[#allocation2 + $0x100] sm:$0xff] %v806
      %837 = vst.msk [vmem:[#allocation2 + $0x108] sm:$0xff] %vm791, %v741
      %838 = vst [vmem:[#allocation2 + $0x110] sm:$0xff] %v807
      %839 = vst.msk [vmem:[#allocation2 + $0x118] sm:$0xff] %vm791, %v742
      %p840 = scmp.eq.s32.totalorder %s24, 0
      // Predicated region
      $region45: #{bottleneck_forward.5} parent=43 // pred_check
        %p841 = pneg %p840
      $region46: #{bottleneck_forward.5} parent=43 // pred_check_branch
        %843 = sbr.rel (%p841) target = $region48
      $region47: #{bottleneck_forward.5} parent=43 // pred_region
        %844 = vst [vmem:[#allocation2] sm:$0xff] 0.0
        %845 = vst.msk [vmem:[#allocation2 + $0x8] sm:$0xff] %vm791, 0.0
        %846 = vst [vmem:[#allocation2 + $0x10] sm:$0xff] 0.0
        %847 = vst.msk [vmem:[#allocation2 + $0x18] sm:$0xff] %vm791, 0.0
      $region48: #{bottleneck_forward.5} parent=43 // pred_fallthru
        _
      %p848 = scmp.gt.s32.totalorder %s24, 0
      // Predicated region
      $region49: #{bottleneck_forward.5} parent=43 // pred_check
        %p849 = pneg %p848
      $region50: #{bottleneck_forward.5} parent=43 // pred_check_branch
        %851 = sbr.rel (%p849) target = $region52
      $region51: #{bottleneck_forward.5} parent=43 // pred_region
        %s852 = ssub.s32 %s323, 16
        %s853 = scalar_lea.vmem %s304, %s852
        %v854 = vld [vmem:[%s853] sm:$0xff]
        %v855 = vld [vmem:[%s853 + $0x8] sm:$0xff]
        %v856 = vld [vmem:[%s2] sm:$0x1]
        %v858 = vlaneseq
        %v859 = vshrl.u32 %v858, 7
        %v860 = vsub.s32 0, %v859
        %v861 = vrot.slane %v856, %v860
        %v863 = vmul.f32 %v854, %v861
        %v864 = vmul.f32 %v855, %v861
        %v865 = vld [vmem:[%s3] sm:$0x1]
        %v867 = vlaneseq
        %v868 = vshrl.u32 %v867, 7
        %v869 = vsub.s32 0, %v868
        %v870 = vrot.slane %v865, %v869
        %v872 = vadd.f32 %v863, %v870
        %v873 = vadd.f32 %v864, %v870
        %v874 = vmax.f32 %v872, 0.0
        %v875 = vmax.f32 %v873, 0.0
        %v876 = vld [vmem:[%s4] sm:$0xff]
        %v877 = vld [vmem:[%s4 + $0x8] sm:$0xff]
        %v878 = vld [vmem:[%s5] sm:$0xff]
        %v879 = vld [vmem:[%s5 + $0x8] sm:$0xff]
        %v881 = vrot.slane %v875, 7
        %v884 = vrot.slane %v874, 7
        %v885 = vsel %vm453, %v884, %v881
        %v888 = vsel %vm453, %v881, %v884
        %890 = vset.pattern.permute.xlu0 0
        %891 = vperm.xlu0 %890, %v876
        %v892 = vpop.permute.xlu0 %891
        %895 = vset.pattern.permute.xlu0 0
        %896 = vperm.xlu0 %895, %v877
        %v897 = vpop.permute.xlu0 %896
        %v899 = vmul.f32 %v888, %v892
        %v900 = vmul.f32 %v885, %v897
        %v901 = vrot.slane %v874, 1
        %v902 = vrot.slane %v875, 1
        %v903 = vsel %vm597, %v901, %v902
        %v907 = vsel %vm597, %v902, %v901
        %909 = vset.pattern.permute.xlu0 0
        %910 = vperm.xlu0 %909, %v878
        %v911 = vpop.permute.xlu0 %910
        %914 = vset.pattern.permute.xlu0 0
        %915 = vperm.xlu0 %914, %v879
        %v916 = vpop.permute.xlu0 %915
        %v918 = vmul.f32 %v903, %v911
        %v919 = vmul.f32 %v907, %v916
        %920 = vrot.lane.b32.xlu0 %v874, 64
        %v921 = vpop.permute.xlu0 %920
        %922 = vrot.lane.b32.xlu0 %v875, 64
        %v923 = vpop.permute.xlu0 %922
        %v926 = vsel %vm791, %v899, %v921
        %v927 = vsel %vm791, %v900, %v923
        %928 = vst [vmem:[#allocation2] sm:$0xff] %v926
        %929 = vst.msk [vmem:[#allocation2 + $0x8] sm:$0xff] %vm791, %v918
        %930 = vst [vmem:[#allocation2 + $0x10] sm:$0xff] %v927
        %931 = vst.msk [vmem:[#allocation2 + $0x18] sm:$0xff] %vm791, %v919
      $region52: #{bottleneck_forward.5} parent=43 // pred_fallthru
        _
      %p932 = scmp.eq.s32.totalorder %s24, 1
      // Predicated region
      $region53: #{bottleneck_forward.5} parent=43 // pred_check
        %p933 = pneg %p932
      $region54: #{bottleneck_forward.5} parent=43 // pred_check_branch
        %935 = sbr.rel (%p933) target = $region56
      $region55: #{bottleneck_forward.5} parent=43 // pred_region
        %936 = vst [vmem:[#allocation2 + $0x120] sm:$0xff] 0.0
        %937 = vst.msk [vmem:[#allocation2 + $0x128] sm:$0xff] %vm791, 0.0
        %938 = vst [vmem:[#allocation2 + $0x130] sm:$0xff] 0.0
        %939 = vst.msk [vmem:[#allocation2 + $0x138] sm:$0xff] %vm791, 0.0
      $region56: #{bottleneck_forward.5} parent=43 // pred_fallthru
        _
      %p940 = scmp.lt.s32.totalorder %s24, 1
      // Predicated region
      $region57: #{bottleneck_forward.5} parent=43 // pred_check
        %p941 = pneg %p940
      $region58: #{bottleneck_forward.5} parent=43 // pred_check_branch
        %943 = sbr.rel (%p941) target = $region60
      $region59: #{bottleneck_forward.5} parent=43 // pred_region
        %s944 = sadd.s32 %s323, 128
        %s945 = scalar_lea.vmem %s304, %s944
        %v946 = vld [vmem:[%s945] sm:$0xff]
        %v947 = vld [vmem:[%s945 + $0x8] sm:$0xff]
        %v948 = vld [vmem:[%s2] sm:$0x1]
        %v950 = vlaneseq
        %v951 = vshrl.u32 %v950, 7
        %v952 = vsub.s32 0, %v951
        %v953 = vrot.slane %v948, %v952
        %v955 = vmul.f32 %v946, %v953
        %v956 = vmul.f32 %v947, %v953
        %v957 = vld [vmem:[%s3] sm:$0x1]
        %v959 = vlaneseq
        %v960 = vshrl.u32 %v959, 7
        %v961 = vsub.s32 0, %v960
        %v962 = vrot.slane %v957, %v961
        %v964 = vadd.f32 %v955, %v962
        %v965 = vadd.f32 %v956, %v962
        %v966 = vmax.f32 %v964, 0.0
        %v967 = vmax.f32 %v965, 0.0
        %v968 = vld [vmem:[%s4] sm:$0xff]
        %v969 = vld [vmem:[%s4 + $0x8] sm:$0xff]
        %v970 = vld [vmem:[%s5] sm:$0xff]
        %v971 = vld [vmem:[%s5 + $0x8] sm:$0xff]
        %v973 = vrot.slane %v967, 7
        %v976 = vrot.slane %v966, 7
        %v977 = vsel %vm453, %v976, %v973
        %v980 = vsel %vm453, %v973, %v976
        %982 = vset.pattern.permute.xlu0 0
        %983 = vperm.xlu0 %982, %v968
        %v984 = vpop.permute.xlu0 %983
        %987 = vset.pattern.permute.xlu0 0
        %988 = vperm.xlu0 %987, %v969
        %v989 = vpop.permute.xlu0 %988
        %v991 = vmul.f32 %v980, %v984
        %v992 = vmul.f32 %v977, %v989
        %v993 = vrot.slane %v966, 1
        %v994 = vrot.slane %v967, 1
        %v995 = vsel %vm597, %v993, %v994
        %v999 = vsel %vm597, %v994, %v993
        %1001 = vset.pattern.permute.xlu0 0
        %1002 = vperm.xlu0 %1001, %v970
        %v1003 = vpop.permute.xlu0 %1002
        %1006 = vset.pattern.permute.xlu0 0
        %1007 = vperm.xlu0 %1006, %v971
        %v1008 = vpop.permute.xlu0 %1007
        %v1010 = vmul.f32 %v995, %v1003
        %v1011 = vmul.f32 %v999, %v1008
        %1012 = vrot.lane.b32.xlu0 %v966, 64
        %v1013 = vpop.permute.xlu0 %1012
        %1014 = vrot.lane.b32.xlu0 %v967, 64
        %v1015 = vpop.permute.xlu0 %1014
        %v1018 = vsel %vm791, %v991, %v1013
        %v1019 = vsel %vm791, %v992, %v1015
        %1020 = vst [vmem:[#allocation2 + $0x120] sm:$0xff] %v1018
        %1021 = vst.msk [vmem:[#allocation2 + $0x128] sm:$0xff] %vm791, %v1010
        %1022 = vst [vmem:[#allocation2 + $0x130] sm:$0xff] %v1019
        %1023 = vst.msk [vmem:[#allocation2 + $0x138] sm:$0xff] %vm791, %v1011
      $region60: #{bottleneck_forward.5} parent=43 // pred_fallthru
        _
      %v1024 = vld [vmem:[#allocation2] sm:$0xff]
      %v1025 = vld [vmem:[#allocation2 + $0x8] sm:$0xff]
      %v1026 = vld [vmem:[#allocation2 + $0x10] sm:$0xff]
      %v1027 = vld [vmem:[#allocation2 + $0x18] sm:$0xff]
      %v1028 = vld [vmem:[#allocation2 + $0x20] sm:$0xff]
      %v1029 = vld [vmem:[#allocation2 + $0x28] sm:$0xff]
      %v1030 = vld [vmem:[#allocation2 + $0x30] sm:$0xff]
      %v1031 = vld [vmem:[#allocation2 + $0x38] sm:$0xff]
      %v1032 = vld [vmem:[#allocation2 + $0x40] sm:$0xff]
      %v1033 = vld [vmem:[#allocation2 + $0x48] sm:$0xff]
      %v1034 = vld [vmem:[#allocation2 + $0x50] sm:$0xff]
      %v1035 = vld [vmem:[#allocation2 + $0x58] sm:$0xff]
      %v1036 = vld [vmem:[#allocation2 + $0x60] sm:$0xff]
      %v1037 = vld [vmem:[#allocation2 + $0x68] sm:$0xff]
      %v1038 = vld [vmem:[#allocation2 + $0x70] sm:$0xff]
      %v1039 = vld [vmem:[#allocation2 + $0x78] sm:$0xff]
      %v1040 = vld [vmem:[#allocation2 + $0x80] sm:$0xff]
      %v1041 = vld [vmem:[#allocation2 + $0x88] sm:$0xff]
      %v1042 = vld [vmem:[#allocation2 + $0x90] sm:$0xff]
      %v1043 = vld [vmem:[#allocation2 + $0x98] sm:$0xff]
      %v1044 = vld [vmem:[#allocation2 + $0xa0] sm:$0xff]
      %v1045 = vld [vmem:[#allocation2 + $0xa8] sm:$0xff]
      %v1046 = vld [vmem:[#allocation2 + $0xb0] sm:$0xff]
      %v1047 = vld [vmem:[#allocation2 + $0xb8] sm:$0xff]
      %v1048 = vld [vmem:[#allocation2 + $0xc0] sm:$0xff]
      %v1049 = vld [vmem:[#allocation2 + $0xc8] sm:$0xff]
      %v1050 = vld [vmem:[#allocation2 + $0xd0] sm:$0xff]
      %v1051 = vld [vmem:[#allocation2 + $0xd8] sm:$0xff]
      %v1052 = vld [vmem:[#allocation2 + $0xe0] sm:$0xff]
      %v1053 = vld [vmem:[#allocation2 + $0xe8] sm:$0xff]
      %v1054 = vld [vmem:[#allocation2 + $0xf0] sm:$0xff]
      %v1055 = vld [vmem:[#allocation2 + $0xf8] sm:$0xff]
      %v1056 = vld [vmem:[%s1] sm:$0xff]
      %v1057 = vld [vmem:[%s1 + $0x8] sm:$0xff]
      %v1058 = vld [vmem:[%s1 + $0x10] sm:$0xff]
      %v1059 = vld [vmem:[%s1 + $0x18] sm:$0xff]
      %v1060 = vld [vmem:[%s1 + $0x20] sm:$0xff]
      %v1061 = vld [vmem:[%s1 + $0x28] sm:$0xff]
      %v1062 = vld [vmem:[%s1 + $0x30] sm:$0xff]
      %v1063 = vld [vmem:[%s1 + $0x38] sm:$0xff]
      %v1064 = vld [vmem:[%s1 + $0x40] sm:$0xff]
      %v1065 = vld [vmem:[%s1 + $0x48] sm:$0xff]
      %v1066 = vld [vmem:[%s1 + $0x50] sm:$0xff]
      %v1067 = vld [vmem:[%s1 + $0x58] sm:$0xff]
      %v1068 = vld [vmem:[%s1 + $0x60] sm:$0xff]
      %v1069 = vld [vmem:[%s1 + $0x68] sm:$0xff]
      %v1070 = vld [vmem:[%s1 + $0x70] sm:$0xff]
      %v1071 = vld [vmem:[%s1 + $0x78] sm:$0xff]
      %v1072 = vld [vmem:[%s1 + $0x80] sm:$0xff]
      %v1073 = vld [vmem:[%s1 + $0x88] sm:$0xff]
      %v1074 = vld [vmem:[%s1 + $0x90] sm:$0xff]
      %v1075 = vld [vmem:[%s1 + $0x98] sm:$0xff]
      %v1076 = vld [vmem:[%s1 + $0xa0] sm:$0xff]
      %v1077 = vld [vmem:[%s1 + $0xa8] sm:$0xff]
      %v1078 = vld [vmem:[%s1 + $0xb0] sm:$0xff]
      %v1079 = vld [vmem:[%s1 + $0xb8] sm:$0xff]
      %v1080 = vld [vmem:[#allocation2 + $0x100] sm:$0xff]
      %v1081 = vld [vmem:[#allocation2 + $0x108] sm:$0xff]
      %v1082 = vld [vmem:[#allocation2 + $0x110] sm:$0xff]
      %v1083 = vld [vmem:[#allocation2 + $0x118] sm:$0xff]
      %s1084 = scalar_lea.vmem %s1, 192
      %v1085 = vld [vmem:[%s1084] sm:$0xff]
      %v1086 = vld [vmem:[%s1084 + $0x8] sm:$0xff]
      %v1087 = vld [vmem:[%s1084 + $0x10] sm:$0xff]
      %v1088 = vld [vmem:[%s1084 + $0x18] sm:$0xff]
      %v1089 = vld [vmem:[%s1084 + $0x20] sm:$0xff]
      %v1090 = vld [vmem:[%s1084 + $0x28] sm:$0xff]
      %v1091 = vld [vmem:[%s1084 + $0x30] sm:$0xff]
      %v1092 = vld [vmem:[%s1084 + $0x38] sm:$0xff]
      %v1093 = vld [vmem:[%s1084 + $0x40] sm:$0xff]
      %v1094 = vld [vmem:[%s1084 + $0x48] sm:$0xff]
      %v1095 = vld [vmem:[%s1084 + $0x50] sm:$0xff]
      %v1096 = vld [vmem:[%s1084 + $0x58] sm:$0xff]
      %v1097 = vld [vmem:[%s1084 + $0x60] sm:$0xff]
      %v1098 = vld [vmem:[%s1084 + $0x68] sm:$0xff]
      %v1099 = vld [vmem:[%s1084 + $0x70] sm:$0xff]
      %v1100 = vld [vmem:[%s1084 + $0x78] sm:$0xff]
      %v1101 = vld [vmem:[%s1084 + $0x80] sm:$0xff]
      %v1102 = vld [vmem:[%s1084 + $0x88] sm:$0xff]
      %v1103 = vld [vmem:[%s1084 + $0x90] sm:$0xff]
      %v1104 = vld [vmem:[%s1084 + $0x98] sm:$0xff]
      %v1105 = vld [vmem:[%s1084 + $0xa0] sm:$0xff]
      %v1106 = vld [vmem:[%s1084 + $0xa8] sm:$0xff]
      %v1107 = vld [vmem:[%s1084 + $0xb0] sm:$0xff]
      %v1108 = vld [vmem:[%s1084 + $0xb8] sm:$0xff]
      %v1110 = vsel %vm791, %v1029, 0
      %v1113 = vsel %vm791, %v1031, 0
      %v1116 = vsel %vm791, %v1033, 0
      %v1119 = vsel %vm791, %v1035, 0
      %v1122 = vsel %vm791, %v1037, 0
      %v1125 = vsel %vm791, %v1039, 0
      %v1128 = vsel %vm791, %v1041, 0
      %v1131 = vsel %vm791, %v1043, 0
      %v1134 = vsel %vm791, %v1045, 0
      %v1137 = vsel %vm791, %v1047, 0
      %v1140 = vsel %vm791, %v1049, 0
      %v1143 = vsel %vm791, %v1051, 0
      %v1146 = vsel %vm791, %v1053, 0
      %v1149 = vsel %vm791, %v1055, 0
      %v1152 = vsel %vm791, %v1081, 0
      %v1155 = vsel %vm791, %v1083, 0
      %1157 = vmatprep.subr.mxu0 0.0
      %1158 = vmatpush1.msra.mxu0 %v1085
      %1159 = vmatprep.subr.mxu0 0.0
      %1160 = vmatpush1.msra.mxu0 %v1086
      %1161 = vmatprep.subr.mxu0 0.0
      %1162 = vmatpush1.msra.mxu0 %v1087
      %1163 = vmatprep.subr.mxu0 0.0
      %1164 = vmatpush1.msra.mxu0 %v1088
      %1165 = vmatprep.subr.mxu0 0.0
      %1166 = vmatpush1.msra.mxu0 %v1089
      %1167 = vmatprep.subr.mxu0 0.0
      %1168 = vmatpush1.msra.mxu0 %v1090
      %1169 = vmatprep.subr.mxu0 0.0
      %1170 = vmatpush1.msra.mxu0 %v1091
      %1171 = vmatprep.subr.mxu0 0.0
      %1172 = vmatpush1.msra.mxu0 %v1092
      %1173 = vmatprep.subr.mxu0 0.0
      %1174 = vmatpush1.msra.mxu0 %v1093
      %1175 = vmatprep.subr.mxu0 0.0
      %1176 = vmatpush1.msra.mxu0 %v1094
      %1177 = vmatprep.subr.mxu0 0.0
      %1178 = vmatpush1.msra.mxu0 %v1095
      %1179 = vmatprep.subr.mxu0 0.0
      %1180 = vmatpush1.msra.mxu0 %v1096
      %1181 = vmatprep.subr.mxu0 0.0
      %1182 = vmatpush1.msra.mxu0 %v1097
      %1183 = vmatprep.subr.mxu0 0.0
      %1184 = vmatpush1.msra.mxu0 %v1098
      %1185 = vmatprep.subr.mxu0 0.0
      %1186 = vmatpush1.msra.mxu0 %v1099
      %1187 = vmatprep.subr.mxu0 0.0
      %1188 = vmatpush1.msra.mxu0 %v1100
      %1189 = vmatprep.subr.mxu0 0.0
      %1190 = vmatpush1.msra.mxu0 %v1101
      %1191 = vmatprep.subr.mxu0 0.0
      %1192 = vmatpush1.msra.mxu0 %v1102
      %1193 = vmatprep.subr.mxu0 0.0
      %1194 = vmatpush1.msra.mxu0 %v1103
      %1195 = vmatprep.subr.mxu0 0.0
      %1196 = vmatpush1.msra.mxu0 %v1104
      %1197 = vmatprep.subr.mxu0 0.0
      %1198 = vmatpush1.msra.mxu0 %v1105
      %1199 = vmatprep.subr.mxu0 0.0
      %1200 = vmatpush1.msra.mxu0 %v1106
      %1201 = vmatprep.subr.mxu0 0.0
      %1202 = vmatpush1.msra.mxu0 %v1107
      %1203 = vmatprep.subr.mxu0 0.0
      %1204 = vmatpush1.msra.mxu0 %v1108
      %1205 = vmatprep.subr.mxu0 0.0
      %1206 = vmatpush1.msra.mxu0 0.0
      %1207 = vmatprep.subr.mxu0 0.0
      %1208 = vmatpush1.msra.mxu0 0.0
      %1209 = vmatprep.subr.mxu0 0.0
      %1210 = vmatpush1.msra.mxu0 0.0
      %1211 = vmatprep.subr.mxu0 0.0
      %1212 = vmatpush1.msra.mxu0 0.0
      %1213 = vmatprep.subr.mxu0 0.0
      %1214 = vmatpush1.msra.mxu0 0.0
      %1215 = vmatprep.subr.mxu0 0.0
      %1216 = vmatpush1.msra.mxu0 0.0
      %1217 = vmatprep.subr.mxu0 0.0
      %1218 = vmatpush1.msra.mxu0 0.0
      %1219 = vmatprep.subr.mxu0 0.0
      %1220 = vmatpush1.msra.mxu0 0.0
      %1221 = vmatprep.mubr.f32.mxu0 %v1110
      %1222 = vmatmul.mubr.f32.gmra.mrb[0].mxu0 %v1028
      %v1223 = vpop.f32.mrb[0].mxu0
      %v1224 = vadd.f32 0.0, %v1223
      %v1225 = vpop.f32.mrb[0].mxu0
      %1226 = vmatprep.mubr.f32.mxu0 %v1113
      %1227 = vmatmul.mubr.f32.gmra.mrb[0].mxu0 %v1030
      %v1228 = vpop.f32.mrb[0].mxu0
      %v1229 = vadd.f32 0.0, %v1228
      %v1230 = vpop.f32.mrb[0].mxu0
      %1231 = vmatprep.mubr.f32.mxu0 %v1116
      %1232 = vmatmul.mubr.f32.gmra.mrb[0].mxu0 %v1032
      %v1233 = vpop.f32.mrb[0].mxu0
      %v1234 = vadd.f32 0.0, %v1233
      %v1235 = vpop.f32.mrb[0].mxu0
      %1236 = vmatprep.mubr.f32.mxu0 %v1119
      %1237 = vmatmul.mubr.f32.gmra.mrb[0].mxu0 %v1034
      %v1238 = vpop.f32.mrb[0].mxu0
      %v1239 = vadd.f32 0.0, %v1238
      %v1240 = vpop.f32.mrb[0].mxu0
      %1241 = vmatprep.mubr.f32.mxu0 %v1122
      %1242 = vmatmul.mubr.f32.gmra.mrb[0].mxu0 %v1036
      %v1243 = vpop.f32.mrb[0].mxu0
      %v1244 = vadd.f32 0.0, %v1243
      %v1245 = vpop.f32.mrb[0].mxu0
      %1246 = vmatprep.mubr.f32.mxu0 %v1125
      %1247 = vmatmul.mubr.f32.gmra.mrb[0].mxu0 %v1038
      %v1248 = vpop.f32.mrb[0].mxu0
      %v1249 = vadd.f32 0.0, %v1248
      %v1250 = vpop.f32.mrb[0].mxu0
      %1251 = vmatprep.mubr.f32.mxu0 %v1128
      %1252 = vmatmul.mubr.f32.gmra.mrb[0].mxu0 %v1040
      %v1253 = vpop.f32.mrb[0].mxu0
      %v1254 = vadd.f32 0.0, %v1253
      %v1255 = vpop.f32.mrb[0].mxu0
      %1256 = vmatprep.mubr.f32.mxu0 %v1131
      %1257 = vmatmul.mubr.f32.gmra.mrb[0].mxu0 %v1042
      %v1258 = vpop.f32.mrb[0].mxu0
      %v1259 = vadd.f32 0.0, %v1258
      %v1260 = vpop.f32.mrb[0].mxu0
      %1261 = vmatprep.mubr.f32.mxu0 %v1134
      %1262 = vmatmul.mubr.f32.gmra.mrb[0].mxu0 %v1044
      %v1263 = vpop.f32.mrb[0].mxu0
      %v1264 = vadd.f32 0.0, %v1263
      %v1265 = vpop.f32.mrb[0].mxu0
      %1266 = vmatprep.mubr.f32.mxu0 %v1137
      %1267 = vmatmul.mubr.f32.gmra.mrb[0].mxu0 %v1046
      %v1268 = vpop.f32.mrb[0].mxu0
      %v1269 = vadd.f32 0.0, %v1268
      %v1270 = vpop.f32.mrb[0].mxu0
      %1271 = vmatprep.mubr.f32.mxu0 %v1140
      %1272 = vmatmul.mubr.f32.gmra.mrb[0].mxu0 %v1048
      %v1273 = vpop.f32.mrb[0].mxu0
      %v1274 = vadd.f32 0.0, %v1273
      %v1275 = vpop.f32.mrb[0].mxu0
      %1276 = vmatprep.mubr.f32.mxu0 %v1143
      %1277 = vmatmul.mubr.f32.gmra.mrb[0].mxu0 %v1050
      %v1278 = vpop.f32.mrb[0].mxu0
      %v1279 = vadd.f32 0.0, %v1278
      %v1280 = vpop.f32.mrb[0].mxu0
      %1281 = vmatprep.mubr.f32.mxu0 %v1146
      %1282 = vmatmul.mubr.f32.gmra.mrb[0].mxu0 %v1052
      %v1283 = vpop.f32.mrb[0].mxu0
      %v1284 = vadd.f32 0.0, %v1283
      %v1285 = vpop.f32.mrb[0].mxu0
      %1286 = vmatprep.mubr.f32.mxu0 %v1149
      %1287 = vmatmul.mubr.f32.gmra.mrb[0].mxu0 %v1054
      %v1288 = vpop.f32.mrb[0].mxu0
      %v1289 = vadd.f32 0.0, %v1288
      %v1290 = vpop.f32.mrb[0].mxu0
      %1291 = vmatprep.mubr.f32.mxu0 %v1152
      %1292 = vmatmul.mubr.f32.gmra.mrb[0].mxu0 %v1080
      %v1293 = vpop.f32.mrb[0].mxu0
      %v1294 = vadd.f32 0.0, %v1293
      %v1295 = vpop.f32.mrb[0].mxu0
      %1296 = vmatprep.mubr.f32.mxu0 %v1155
      %1297 = vmatmul.mubr.f32.gmra.mrb[0].mxu0 %v1082
      %v1298 = vpop.f32.mrb[0].mxu0
      %v1299 = vadd.f32 0.0, %v1298
      %v1300 = vpop.f32.mrb[0].mxu0
      %1301 = vdwg.mxu0
      %v1303 = vsel %vm791, %v1025, 0
      %v1306 = vsel %vm791, %v1027, 0
      %1308 = vmatprep.subr.mxu0 0.0
      %1309 = vmatpush1.msra.mxu0 %v1056
      %1310 = vmatprep.subr.mxu0 0.0
      %1311 = vmatpush1.msra.mxu0 %v1057
      %1312 = vmatprep.subr.mxu0 0.0
      %1313 = vmatpush1.msra.mxu0 %v1058
      %1314 = vmatprep.subr.mxu0 0.0
      %1315 = vmatpush1.msra.mxu0 %v1059
      %1316 = vmatprep.subr.mxu0 0.0
      %1317 = vmatpush1.msra.mxu0 %v1060
      %1318 = vmatprep.subr.mxu0 0.0
      %1319 = vmatpush1.msra.mxu0 %v1061
      %1320 = vmatprep.subr.mxu0 0.0
      %1321 = vmatpush1.msra.mxu0 %v1062
      %1322 = vmatprep.subr.mxu0 0.0
      %1323 = vmatpush1.msra.mxu0 %v1063
      %1324 = vmatprep.subr.mxu0 0.0
      %1325 = vmatpush1.msra.mxu0 %v1064
      %1326 = vmatprep.subr.mxu0 0.0
      %1327 = vmatpush1.msra.mxu0 %v1065
      %1328 = vmatprep.subr.mxu0 0.0
      %1329 = vmatpush1.msra.mxu0 %v1066
      %1330 = vmatprep.subr.mxu0 0.0
      %1331 = vmatpush1.msra.mxu0 %v1067
      %1332 = vmatprep.subr.mxu0 0.0
      %1333 = vmatpush1.msra.mxu0 %v1068
      %1334 = vmatprep.subr.mxu0 0.0
      %1335 = vmatpush1.msra.mxu0 %v1069
      %1336 = vmatprep.subr.mxu0 0.0
      %1337 = vmatpush1.msra.mxu0 %v1070
      %1338 = vmatprep.subr.mxu0 0.0
      %1339 = vmatpush1.msra.mxu0 %v1071
      %1340 = vmatprep.subr.mxu0 0.0
      %1341 = vmatpush1.msra.mxu0 %v1072
      %1342 = vmatprep.subr.mxu0 0.0
      %1343 = vmatpush1.msra.mxu0 %v1073
      %1344 = vmatprep.subr.mxu0 0.0
      %1345 = vmatpush1.msra.mxu0 %v1074
      %1346 = vmatprep.subr.mxu0 0.0
      %1347 = vmatpush1.msra.mxu0 %v1075
      %1348 = vmatprep.subr.mxu0 0.0
      %1349 = vmatpush1.msra.mxu0 %v1076
      %1350 = vmatprep.subr.mxu0 0.0
      %1351 = vmatpush1.msra.mxu0 %v1077
      %1352 = vmatprep.subr.mxu0 0.0
      %1353 = vmatpush1.msra.mxu0 %v1078
      %1354 = vmatprep.subr.mxu0 0.0
      %1355 = vmatpush1.msra.mxu0 %v1079
      %1356 = vmatprep.subr.mxu0 0.0
      %1357 = vmatpush1.msra.mxu0 0.0
      %1358 = vmatprep.subr.mxu0 0.0
      %1359 = vmatpush1.msra.mxu0 0.0
      %1360 = vmatprep.subr.mxu0 0.0
      %1361 = vmatpush1.msra.mxu0 0.0
      %1362 = vmatprep.subr.mxu0 0.0
      %1363 = vmatpush1.msra.mxu0 0.0
      %1364 = vmatprep.subr.mxu0 0.0
      %1365 = vmatpush1.msra.mxu0 0.0
      %1366 = vmatprep.subr.mxu0 0.0
      %1367 = vmatpush1.msra.mxu0 0.0
      %1368 = vmatprep.subr.mxu0 0.0
      %1369 = vmatpush1.msra.mxu0 0.0
      %1370 = vmatprep.subr.mxu0 0.0
      %1371 = vmatpush1.msra.mxu0 0.0
      %1372 = vmatprep.mubr.f32.mxu0 %v1303
      %1373 = vmatmul.mubr.f32.gmra.mrb[0].mxu0 %v1024
      %v1374 = vpop.f32.mrb[0].mxu0
      %v1375 = vadd.f32 %v1224, %v1374
      %v1376 = vpop.f32.mrb[0].mxu0
      %1377 = vmatprep.mubr.f32.mxu0 %v1306
      %1378 = vmatmul.mubr.f32.gmra.mrb[0].mxu0 %v1026
      %v1379 = vpop.f32.mrb[0].mxu0
      %v1380 = vadd.f32 %v1229, %v1379
      %v1381 = vpop.f32.mrb[0].mxu0
      %1382 = vmatprep.mubr.f32.mxu0 %v1110
      %1383 = vmatmul.mubr.f32.gmra.mrb[0].mxu0 %v1028
      %v1384 = vpop.f32.mrb[0].mxu0
      %v1385 = vadd.f32 %v1234, %v1384
      %v1386 = vpop.f32.mrb[0].mxu0
      %1387 = vmatprep.mubr.f32.mxu0 %v1113
      %1388 = vmatmul.mubr.f32.gmra.mrb[0].mxu0 %v1030
      %v1389 = vpop.f32.mrb[0].mxu0
      %v1390 = vadd.f32 %v1239, %v1389
      %v1391 = vpop.f32.mrb[0].mxu0
      %1392 = vmatprep.mubr.f32.mxu0 %v1116
      %1393 = vmatmul.mubr.f32.gmra.mrb[0].mxu0 %v1032
      %v1394 = vpop.f32.mrb[0].mxu0
      %v1395 = vadd.f32 %v1244, %v1394
      %v1396 = vpop.f32.mrb[0].mxu0
      %1397 = vmatprep.mubr.f32.mxu0 %v1119
      %1398 = vmatmul.mubr.f32.gmra.mrb[0].mxu0 %v1034
      %v1399 = vpop.f32.mrb[0].mxu0
      %v1400 = vadd.f32 %v1249, %v1399
      %v1401 = vpop.f32.mrb[0].mxu0
      %1402 = vmatprep.mubr.f32.mxu0 %v1122
      %1403 = vmatmul.mubr.f32.gmra.mrb[0].mxu0 %v1036
      %v1404 = vpop.f32.mrb[0].mxu0
      %v1405 = vadd.f32 %v1254, %v1404
      %v1406 = vpop.f32.mrb[0].mxu0
      %1407 = vmatprep.mubr.f32.mxu0 %v1125
      %1408 = vmatmul.mubr.f32.gmra.mrb[0].mxu0 %v1038
      %v1409 = vpop.f32.mrb[0].mxu0
      %v1410 = vadd.f32 %v1259, %v1409
      %v1411 = vpop.f32.mrb[0].mxu0
      %1412 = vmatprep.mubr.f32.mxu0 %v1128
      %1413 = vmatmul.mubr.f32.gmra.mrb[0].mxu0 %v1040
      %v1414 = vpop.f32.mrb[0].mxu0
      %v1415 = vadd.f32 %v1264, %v1414
      %v1416 = vpop.f32.mrb[0].mxu0
      %1417 = vmatprep.mubr.f32.mxu0 %v1131
      %1418 = vmatmul.mubr.f32.gmra.mrb[0].mxu0 %v1042
      %v1419 = vpop.f32.mrb[0].mxu0
      %v1420 = vadd.f32 %v1269, %v1419
      %v1421 = vpop.f32.mrb[0].mxu0
      %1422 = vmatprep.mubr.f32.mxu0 %v1134
      %1423 = vmatmul.mubr.f32.gmra.mrb[0].mxu0 %v1044
      %v1424 = vpop.f32.mrb[0].mxu0
      %v1425 = vadd.f32 %v1274, %v1424
      %v1426 = vpop.f32.mrb[0].mxu0
      %1427 = vmatprep.mubr.f32.mxu0 %v1137
      %1428 = vmatmul.mubr.f32.gmra.mrb[0].mxu0 %v1046
      %v1429 = vpop.f32.mrb[0].mxu0
      %v1430 = vadd.f32 %v1279, %v1429
      %v1431 = vpop.f32.mrb[0].mxu0
      %1432 = vmatprep.mubr.f32.mxu0 %v1140
      %1433 = vmatmul.mubr.f32.gmra.mrb[0].mxu0 %v1048
      %v1434 = vpop.f32.mrb[0].mxu0
      %v1435 = vadd.f32 %v1284, %v1434
      %v1436 = vpop.f32.mrb[0].mxu0
      %1437 = vmatprep.mubr.f32.mxu0 %v1143
      %1438 = vmatmul.mubr.f32.gmra.mrb[0].mxu0 %v1050
      %v1439 = vpop.f32.mrb[0].mxu0
      %v1440 = vadd.f32 %v1289, %v1439
      %v1441 = vpop.f32.mrb[0].mxu0
      %1442 = vmatprep.mubr.f32.mxu0 %v1146
      %1443 = vmatmul.mubr.f32.gmra.mrb[0].mxu0 %v1052
      %v1444 = vpop.f32.mrb[0].mxu0
      %v1445 = vadd.f32 %v1294, %v1444
      %v1446 = vpop.f32.mrb[0].mxu0
      %1447 = vmatprep.mubr.f32.mxu0 %v1149
      %1448 = vmatmul.mubr.f32.gmra.mrb[0].mxu0 %v1054
      %v1449 = vpop.f32.mrb[0].mxu0
      %v1450 = vadd.f32 %v1299, %v1449
      %v1451 = vpop.f32.mrb[0].mxu0
      %1452 = vdwg.mxu0
      %v1453 = vld [vmem:[#allocation2 + $0x40] sm:$0xff]
      %v1454 = vld [vmem:[#allocation2 + $0x48] sm:$0xff]
      %v1455 = vld [vmem:[#allocation2 + $0x50] sm:$0xff]
      %v1456 = vld [vmem:[#allocation2 + $0x58] sm:$0xff]
      %v1457 = vld [vmem:[#allocation2 + $0x60] sm:$0xff]
      %v1458 = vld [vmem:[#allocation2 + $0x68] sm:$0xff]
      %v1459 = vld [vmem:[#allocation2 + $0x70] sm:$0xff]
      %v1460 = vld [vmem:[#allocation2 + $0x78] sm:$0xff]
      %v1461 = vld [vmem:[#allocation2 + $0x80] sm:$0xff]
      %v1462 = vld [vmem:[#allocation2 + $0x88] sm:$0xff]
      %v1463 = vld [vmem:[#allocation2 + $0x90] sm:$0xff]
      %v1464 = vld [vmem:[#allocation2 + $0x98] sm:$0xff]
      %v1465 = vld [vmem:[#allocation2 + $0xa0] sm:$0xff]
      %v1466 = vld [vmem:[#allocation2 + $0xa8] sm:$0xff]
      %v1467 = vld [vmem:[#allocation2 + $0xb0] sm:$0xff]
      %v1468 = vld [vmem:[#allocation2 + $0xb8] sm:$0xff]
      %v1469 = vld [vmem:[#allocation2 + $0xc0] sm:$0xff]
      %v1470 = vld [vmem:[#allocation2 + $0xc8] sm:$0xff]
      %v1471 = vld [vmem:[#allocation2 + $0xd0] sm:$0xff]
      %v1472 = vld [vmem:[#allocation2 + $0xd8] sm:$0xff]
      %v1473 = vld [vmem:[#allocation2 + $0xe0] sm:$0xff]
      %v1474 = vld [vmem:[#allocation2 + $0xe8] sm:$0xff]
      %v1475 = vld [vmem:[#allocation2 + $0xf0] sm:$0xff]
      %v1476 = vld [vmem:[#allocation2 + $0xf8] sm:$0xff]
      %v1477 = vld [vmem:[#allocation2 + $0x100] sm:$0xff]
      %v1478 = vld [vmem:[#allocation2 + $0x108] sm:$0xff]
      %v1479 = vld [vmem:[#allocation2 + $0x110] sm:$0xff]
      %v1480 = vld [vmem:[#allocation2 + $0x118] sm:$0xff]
      %v1481 = vld [vmem:[#allocation2 + $0x120] sm:$0xff]
      %v1482 = vld [vmem:[#allocation2 + $0x128] sm:$0xff]
      %v1483 = vld [vmem:[#allocation2 + $0x130] sm:$0xff]
      %v1484 = vld [vmem:[#allocation2 + $0x138] sm:$0xff]
      %s1485 = scalar_lea.vmem %s1, 384
      %v1486 = vld [vmem:[%s1485] sm:$0xff]
      %v1487 = vld [vmem:[%s1485 + $0x8] sm:$0xff]
      %v1488 = vld [vmem:[%s1485 + $0x10] sm:$0xff]
      %v1489 = vld [vmem:[%s1485 + $0x18] sm:$0xff]
      %v1490 = vld [vmem:[%s1485 + $0x20] sm:$0xff]
      %v1491 = vld [vmem:[%s1485 + $0x28] sm:$0xff]
      %v1492 = vld [vmem:[%s1485 + $0x30] sm:$0xff]
      %v1493 = vld [vmem:[%s1485 + $0x38] sm:$0xff]
      %v1494 = vld [vmem:[%s1485 + $0x40] sm:$0xff]
      %v1495 = vld [vmem:[%s1485 + $0x48] sm:$0xff]
      %v1496 = vld [vmem:[%s1485 + $0x50] sm:$0xff]
      %v1497 = vld [vmem:[%s1485 + $0x58] sm:$0xff]
      %v1498 = vld [vmem:[%s1485 + $0x60] sm:$0xff]
      %v1499 = vld [vmem:[%s1485 + $0x68] sm:$0xff]
      %v1500 = vld [vmem:[%s1485 + $0x70] sm:$0xff]
      %v1501 = vld [vmem:[%s1485 + $0x78] sm:$0xff]
      %v1502 = vld [vmem:[%s1485 + $0x80] sm:$0xff]
      %v1503 = vld [vmem:[%s1485 + $0x88] sm:$0xff]
      %v1504 = vld [vmem:[%s1485 + $0x90] sm:$0xff]
      %v1505 = vld [vmem:[%s1485 + $0x98] sm:$0xff]
      %v1506 = vld [vmem:[%s1485 + $0xa0] sm:$0xff]
      %v1507 = vld [vmem:[%s1485 + $0xa8] sm:$0xff]
      %v1508 = vld [vmem:[%s1485 + $0xb0] sm:$0xff]
      %v1509 = vld [vmem:[%s1485 + $0xb8] sm:$0xff]
      %v1511 = vsel %vm791, %v1454, 0
      %v1514 = vsel %vm791, %v1456, 0
      %v1517 = vsel %vm791, %v1458, 0
      %v1520 = vsel %vm791, %v1460, 0
      %v1523 = vsel %vm791, %v1462, 0
      %v1526 = vsel %vm791, %v1464, 0
      %v1529 = vsel %vm791, %v1466, 0
      %v1532 = vsel %vm791, %v1468, 0
      %v1535 = vsel %vm791, %v1470, 0
      %v1538 = vsel %vm791, %v1472, 0
      %v1541 = vsel %vm791, %v1474, 0
      %v1544 = vsel %vm791, %v1476, 0
      %v1547 = vsel %vm791, %v1478, 0
      %v1550 = vsel %vm791, %v1480, 0
      %v1553 = vsel %vm791, %v1482, 0
      %v1556 = vsel %vm791, %v1484, 0
      %1558 = vmatprep.subr.mxu0 0.0
      %1559 = vmatpush1.msra.mxu0 %v1486
      %1560 = vmatprep.subr.mxu0 0.0
      %1561 = vmatpush1.msra.mxu0 %v1487
      %1562 = vmatprep.subr.mxu0 0.0
      %1563 = vmatpush1.msra.mxu0 %v1488
      %1564 = vmatprep.subr.mxu0 0.0
      %1565 = vmatpush1.msra.mxu0 %v1489
      %1566 = vmatprep.subr.mxu0 0.0
      %1567 = vmatpush1.msra.mxu0 %v1490
      %1568 = vmatprep.subr.mxu0 0.0
      %1569 = vmatpush1.msra.mxu0 %v1491
      %1570 = vmatprep.subr.mxu0 0.0
      %1571 = vmatpush1.msra.mxu0 %v1492
      %1572 = vmatprep.subr.mxu0 0.0
      %1573 = vmatpush1.msra.mxu0 %v1493
      %1574 = vmatprep.subr.mxu0 0.0
      %1575 = vmatpush1.msra.mxu0 %v1494
      %1576 = vmatprep.subr.mxu0 0.0
      %1577 = vmatpush1.msra.mxu0 %v1495
      %1578 = vmatprep.subr.mxu0 0.0
      %1579 = vmatpush1.msra.mxu0 %v1496
      %1580 = vmatprep.subr.mxu0 0.0
      %1581 = vmatpush1.msra.mxu0 %v1497
      %1582 = vmatprep.subr.mxu0 0.0
      %1583 = vmatpush1.msra.mxu0 %v1498
      %1584 = vmatprep.subr.mxu0 0.0
      %1585 = vmatpush1.msra.mxu0 %v1499
      %1586 = vmatprep.subr.mxu0 0.0
      %1587 = vmatpush1.msra.mxu0 %v1500
      %1588 = vmatprep.subr.mxu0 0.0
      %1589 = vmatpush1.msra.mxu0 %v1501
      %1590 = vmatprep.subr.mxu0 0.0
      %1591 = vmatpush1.msra.mxu0 %v1502
      %1592 = vmatprep.subr.mxu0 0.0
      %1593 = vmatpush1.msra.mxu0 %v1503
      %1594 = vmatprep.subr.mxu0 0.0
      %1595 = vmatpush1.msra.mxu0 %v1504
      %1596 = vmatprep.subr.mxu0 0.0
      %1597 = vmatpush1.msra.mxu0 %v1505
      %1598 = vmatprep.subr.mxu0 0.0
      %1599 = vmatpush1.msra.mxu0 %v1506
      %1600 = vmatprep.subr.mxu0 0.0
      %1601 = vmatpush1.msra.mxu0 %v1507
      %1602 = vmatprep.subr.mxu0 0.0
      %1603 = vmatpush1.msra.mxu0 %v1508
      %1604 = vmatprep.subr.mxu0 0.0
      %1605 = vmatpush1.msra.mxu0 %v1509
      %1606 = vmatprep.subr.mxu0 0.0
      %1607 = vmatpush1.msra.mxu0 0.0
      %1608 = vmatprep.subr.mxu0 0.0
      %1609 = vmatpush1.msra.mxu0 0.0
      %1610 = vmatprep.subr.mxu0 0.0
      %1611 = vmatpush1.msra.mxu0 0.0
      %1612 = vmatprep.subr.mxu0 0.0
      %1613 = vmatpush1.msra.mxu0 0.0
      %1614 = vmatprep.subr.mxu0 0.0
      %1615 = vmatpush1.msra.mxu0 0.0
      %1616 = vmatprep.subr.mxu0 0.0
      %1617 = vmatpush1.msra.mxu0 0.0
      %1618 = vmatprep.subr.mxu0 0.0
      %1619 = vmatpush1.msra.mxu0 0.0
      %1620 = vmatprep.subr.mxu0 0.0
      %1621 = vmatpush1.msra.mxu0 0.0
      %1622 = vmatprep.mubr.f32.mxu0 %v1511
      %1623 = vmatmul.mubr.f32.gmra.mrb[0].mxu0 %v1453
      %v1624 = vpop.f32.mrb[0].mxu0
      %v1625 = vadd.f32 0.0, %v1624
      %v1626 = vpop.f32.mrb[0].mxu0
      %1627 = vmatprep.mubr.f32.mxu0 %v1514
      %1628 = vmatmul.mubr.f32.gmra.mrb[0].mxu0 %v1455
      %v1629 = vpop.f32.mrb[0].mxu0
      %v1630 = vadd.f32 0.0, %v1629
      %v1631 = vpop.f32.mrb[0].mxu0
      %1632 = vmatprep.mubr.f32.mxu0 %v1517
      %1633 = vmatmul.mubr.f32.gmra.mrb[0].mxu0 %v1457
      %v1634 = vpop.f32.mrb[0].mxu0
      %v1635 = vadd.f32 0.0, %v1634
      %v1636 = vpop.f32.mrb[0].mxu0
      %1637 = vmatprep.mubr.f32.mxu0 %v1520
      %1638 = vmatmul.mubr.f32.gmra.mrb[0].mxu0 %v1459
      %v1639 = vpop.f32.mrb[0].mxu0
      %v1640 = vadd.f32 0.0, %v1639
      %v1641 = vpop.f32.mrb[0].mxu0
      %1642 = vmatprep.mubr.f32.mxu0 %v1523
      %1643 = vmatmul.mubr.f32.gmra.mrb[0].mxu0 %v1461
      %v1644 = vpop.f32.mrb[0].mxu0
      %v1645 = vadd.f32 0.0, %v1644
      %v1646 = vpop.f32.mrb[0].mxu0
      %1647 = vmatprep.mubr.f32.mxu0 %v1526
      %1648 = vmatmul.mubr.f32.gmra.mrb[0].mxu0 %v1463
      %v1649 = vpop.f32.mrb[0].mxu0
      %v1650 = vadd.f32 0.0, %v1649
      %v1651 = vpop.f32.mrb[0].mxu0
      %1652 = vmatprep.mubr.f32.mxu0 %v1529
      %1653 = vmatmul.mubr.f32.gmra.mrb[0].mxu0 %v1465
      %v1654 = vpop.f32.mrb[0].mxu0
      %v1655 = vadd.f32 0.0, %v1654
      %v1656 = vpop.f32.mrb[0].mxu0
      %1657 = vmatprep.mubr.f32.mxu0 %v1532
      %1658 = vmatmul.mubr.f32.gmra.mrb[0].mxu0 %v1467
      %v1659 = vpop.f32.mrb[0].mxu0
      %v1660 = vadd.f32 0.0, %v1659
      %v1661 = vpop.f32.mrb[0].mxu0
      %1662 = vmatprep.mubr.f32.mxu0 %v1535
      %1663 = vmatmul.mubr.f32.gmra.mrb[0].mxu0 %v1469
      %v1664 = vpop.f32.mrb[0].mxu0
      %v1665 = vadd.f32 0.0, %v1664
      %v1666 = vpop.f32.mrb[0].mxu0
      %1667 = vmatprep.mubr.f32.mxu0 %v1538
      %1668 = vmatmul.mubr.f32.gmra.mrb[0].mxu0 %v1471
      %v1669 = vpop.f32.mrb[0].mxu0
      %v1670 = vadd.f32 0.0, %v1669
      %v1671 = vpop.f32.mrb[0].mxu0
      %1672 = vmatprep.mubr.f32.mxu0 %v1541
      %1673 = vmatmul.mubr.f32.gmra.mrb[0].mxu0 %v1473
      %v1674 = vpop.f32.mrb[0].mxu0
      %v1675 = vadd.f32 0.0, %v1674
      %v1676 = vpop.f32.mrb[0].mxu0
      %1677 = vmatprep.mubr.f32.mxu0 %v1544
      %1678 = vmatmul.mubr.f32.gmra.mrb[0].mxu0 %v1475
      %v1679 = vpop.f32.mrb[0].mxu0
      %v1680 = vadd.f32 0.0, %v1679
      %v1681 = vpop.f32.mrb[0].mxu0
      %1682 = vmatprep.mubr.f32.mxu0 %v1547
      %1683 = vmatmul.mubr.f32.gmra.mrb[0].mxu0 %v1477
      %v1684 = vpop.f32.mrb[0].mxu0
      %v1685 = vadd.f32 0.0, %v1684
      %v1686 = vpop.f32.mrb[0].mxu0
      %1687 = vmatprep.mubr.f32.mxu0 %v1550
      %1688 = vmatmul.mubr.f32.gmra.mrb[0].mxu0 %v1479
      %v1689 = vpop.f32.mrb[0].mxu0
      %v1690 = vadd.f32 0.0, %v1689
      %v1691 = vpop.f32.mrb[0].mxu0
      %1692 = vmatprep.mubr.f32.mxu0 %v1553
      %1693 = vmatmul.mubr.f32.gmra.mrb[0].mxu0 %v1481
      %v1694 = vpop.f32.mrb[0].mxu0
      %v1695 = vadd.f32 0.0, %v1694
      %v1696 = vpop.f32.mrb[0].mxu0
      %1697 = vmatprep.mubr.f32.mxu0 %v1556
      %1698 = vmatmul.mubr.f32.gmra.mrb[0].mxu0 %v1483
      %v1699 = vpop.f32.mrb[0].mxu0
      %v1700 = vadd.f32 0.0, %v1699
      %v1701 = vpop.f32.mrb[0].mxu0
      %1702 = vdwg.mxu0
      %v1703 = vadd.f32 %v1375, %v1625
      %v1704 = vadd.f32 %v1380, %v1630
      %v1705 = vadd.f32 %v1385, %v1635
      %v1706 = vadd.f32 %v1390, %v1640
      %v1707 = vadd.f32 %v1395, %v1645
      %v1708 = vadd.f32 %v1400, %v1650
      %v1709 = vadd.f32 %v1405, %v1655
      %v1710 = vadd.f32 %v1410, %v1660
      %v1711 = vadd.f32 %v1415, %v1665
      %v1712 = vadd.f32 %v1420, %v1670
      %v1713 = vadd.f32 %v1425, %v1675
      %v1714 = vadd.f32 %v1430, %v1680
      %v1715 = vadd.f32 %v1435, %v1685
      %v1716 = vadd.f32 %v1440, %v1690
      %v1717 = vadd.f32 %v1445, %v1695
      %v1718 = vadd.f32 %v1450, %v1700
      %1719 = vst.msk [vmem:[%s312] sm:$0xff] %vm791, %v1703
      %1720 = vst.msk [vmem:[%s312 + $0x8] sm:$0xff] %vm791, %v1704
      %1721 = vst.msk [vmem:[%s312 + $0x10] sm:$0xff] %vm791, %v1705
      %1722 = vst.msk [vmem:[%s312 + $0x18] sm:$0xff] %vm791, %v1706
      %1723 = vst.msk [vmem:[%s312 + $0x20] sm:$0xff] %vm791, %v1707
      %1724 = vst.msk [vmem:[%s312 + $0x28] sm:$0xff] %vm791, %v1708
      %1725 = vst.msk [vmem:[%s312 + $0x30] sm:$0xff] %vm791, %v1709
      %1726 = vst.msk [vmem:[%s312 + $0x38] sm:$0xff] %vm791, %v1710
      %1727 = vst.msk [vmem:[%s312 + $0x40] sm:$0xff] %vm791, %v1711
      %1728 = vst.msk [vmem:[%s312 + $0x48] sm:$0xff] %vm791, %v1712
      %1729 = vst.msk [vmem:[%s312 + $0x50] sm:$0xff] %vm791, %v1713
      %1730 = vst.msk [vmem:[%s312 + $0x58] sm:$0xff] %vm791, %v1714
      %1731 = vst.msk [vmem:[%s312 + $0x60] sm:$0xff] %vm791, %v1715
      %1732 = vst.msk [vmem:[%s312 + $0x68] sm:$0xff] %vm791, %v1716
      %1733 = vst.msk [vmem:[%s312 + $0x70] sm:$0xff] %vm791, %v1717
      %1734 = vst.msk [vmem:[%s312 + $0x78] sm:$0xff] %vm791, %v1718
      %v1735 = vsel %vm791, %v1703, 0.0
      %v1736 = vsel %vm791, %v1704, 0.0
      %v1737 = vadd.f32 %v1735, %v1736
      %v1738 = vsel %vm791, %v1705, 0.0
      %v1739 = vadd.f32 %v1737, %v1738
      %v1740 = vsel %vm791, %v1706, 0.0
      %v1741 = vadd.f32 %v1739, %v1740
      %v1742 = vsel %vm791, %v1707, 0.0
      %v1743 = vadd.f32 %v1741, %v1742
      %v1744 = vsel %vm791, %v1708, 0.0
      %v1745 = vadd.f32 %v1743, %v1744
      %v1746 = vsel %vm791, %v1709, 0.0
      %v1747 = vadd.f32 %v1745, %v1746
      %v1748 = vsel %vm791, %v1710, 0.0
      %v1749 = vadd.f32 %v1747, %v1748
      %v1750 = vsel %vm791, %v1711, 0.0
      %v1751 = vadd.f32 %v1749, %v1750
      %v1752 = vsel %vm791, %v1712, 0.0
      %v1753 = vadd.f32 %v1751, %v1752
      %v1754 = vsel %vm791, %v1713, 0.0
      %v1755 = vadd.f32 %v1753, %v1754
      %v1756 = vsel %vm791, %v1714, 0.0
      %v1757 = vadd.f32 %v1755, %v1756
      %v1758 = vsel %vm791, %v1715, 0.0
      %v1759 = vadd.f32 %v1757, %v1758
      %v1760 = vsel %vm791, %v1716, 0.0
      %v1761 = vadd.f32 %v1759, %v1760
      %v1762 = vsel %vm791, %v1717, 0.0
      %v1763 = vadd.f32 %v1761, %v1762
      %v1764 = vsel %vm791, %v1718, 0.0
      %v1765 = vadd.f32 %v1763, %v1764
      %v1766 = vrot.slane %v1765, 4
      %v1767 = vadd.f32 %v1765, %v1766
      %v1768 = vrot.slane %v1767, 2
      %v1769 = vadd.f32 %v1767, %v1768
      %v1770 = vrot.slane %v1769, 1
      %v1771 = vadd.f32 %v1769, %v1770
      %v1772 = vmul.f32 %v1703, %v1703
      %v1773 = vmul.f32 %v1704, %v1704
      %v1774 = vmul.f32 %v1705, %v1705
      %v1775 = vmul.f32 %v1706, %v1706
      %v1776 = vmul.f32 %v1707, %v1707
      %v1777 = vmul.f32 %v1708, %v1708
      %v1778 = vmul.f32 %v1709, %v1709
      %v1779 = vmul.f32 %v1710, %v1710
      %v1780 = vmul.f32 %v1711, %v1711
      %v1781 = vmul.f32 %v1712, %v1712
      %v1782 = vmul.f32 %v1713, %v1713
      %v1783 = vmul.f32 %v1714, %v1714
      %v1784 = vmul.f32 %v1715, %v1715
      %v1785 = vmul.f32 %v1716, %v1716
      %v1786 = vmul.f32 %v1717, %v1717
      %v1787 = vmul.f32 %v1718, %v1718
      %v1788 = vsel %vm791, %v1772, 0.0
      %v1789 = vsel %vm791, %v1773, 0.0
      %v1790 = vadd.f32 %v1788, %v1789
      %v1791 = vsel %vm791, %v1774, 0.0
      %v1792 = vadd.f32 %v1790, %v1791
      %v1793 = vsel %vm791, %v1775, 0.0
      %v1794 = vadd.f32 %v1792, %v1793
      %v1795 = vsel %vm791, %v1776, 0.0
      %v1796 = vadd.f32 %v1794, %v1795
      %v1797 = vsel %vm791, %v1777, 0.0
      %v1798 = vadd.f32 %v1796, %v1797
      %v1799 = vsel %vm791, %v1778, 0.0
      %v1800 = vadd.f32 %v1798, %v1799
      %v1801 = vsel %vm791, %v1779, 0.0
      %v1802 = vadd.f32 %v1800, %v1801
      %v1803 = vsel %vm791, %v1780, 0.0
      %v1804 = vadd.f32 %v1802, %v1803
      %v1805 = vsel %vm791, %v1781, 0.0
      %v1806 = vadd.f32 %v1804, %v1805
      %v1807 = vsel %vm791, %v1782, 0.0
      %v1808 = vadd.f32 %v1806, %v1807
      %v1809 = vsel %vm791, %v1783, 0.0
      %v1810 = vadd.f32 %v1808, %v1809
      %v1811 = vsel %vm791, %v1784, 0.0
      %v1812 = vadd.f32 %v1810, %v1811
      %v1813 = vsel %vm791, %v1785, 0.0
      %v1814 = vadd.f32 %v1812, %v1813
      %v1815 = vsel %vm791, %v1786, 0.0
      %v1816 = vadd.f32 %v1814, %v1815
      %v1817 = vsel %vm791, %v1787, 0.0
      %v1818 = vadd.f32 %v1816, %v1817
      %v1819 = vrot.slane %v1818, 4
      %v1820 = vadd.f32 %v1818, %v1819
      %v1821 = vrot.slane %v1820, 2
      %v1822 = vadd.f32 %v1820, %v1821
      %v1823 = vrot.slane %v1822, 1
      %v1824 = vadd.f32 %v1822, %v1823
      %1826 = vrot.lane.b32.xlu0 %v1824, 64
      %v1827 = vpop.permute.xlu0 %1826
      %v1829 = vsel %vm791, %v1771, %v1827
      %1830 = vst [vmem:[%s320] sm:$0x1] %v1829
      %s1831 = smul.u32 %s23, 2
      %s1832 = sadd.s32 %s1831, %s24
      %s1833 = smul.u32 16, %s1832
      %p1834 = scmp.lt.s32.totalorder %s1833, 63
      %s1835 = scalar_select %p1834, %s1833, 63
      %s1836 = smul.addr %s1835, 8
      %s1837 = scalar_lea.vmem %s6, %s1836
      %s1838 = smul.u32 %s23, 2
      %s1839 = sadd.s32 %s1838, %s24
      %p1840 = scmp.lt.s32.totalorder %s1839, 3
      %s1841 = scalar_select %p1840, %s1839, 3
      %s1842 = scalar_lea.vmem %s7, %s1841
      // Predicated region
      $region61: #{bottleneck_forward.5} parent=43 // pred_check
        %p1843 = pneg %p184
      $region62: #{bottleneck_forward.5} parent=43 // pred_check_branch
        %1845 = sbr.rel (%p1843) target = $region64
      $region63: #{bottleneck_forward.5} parent=43 // pred_region
        %s1846 = smul.u32 %s23, 2
        %s1847 = sadd.s32 %s1846, %s24
        %s1848 = smul.u32 16, %s1847
      $region64: #{bottleneck_forward.5} parent=43 // pred_fallthru
        _
      // Predicated region
      $region65: #{bottleneck_forward.5} parent=43 // pred_check
        %p1849 = pneg %p214
      $region66: #{bottleneck_forward.5} parent=43 // pred_check_branch
        %1851 = sbr.rel (%p1849) target = $region68
      $region67: #{bottleneck_forward.5} parent=43 // pred_region
        %s1852 = smul.u32 %s23, 2
        %s1853 = sadd.s32 %s1852, %s24
      $region68: #{bottleneck_forward.5} parent=43 // pred_fallthru
        _
    $region44: #{bottleneck_forward.5} parent=5 // pred_fallthru
      _
    %p1854 = scmp.le.s32.totalorder 2, %s14
    // Predicated region
    $region69: #{bottleneck_forward.5} parent=5 // pred_check
      %p1855 = pneg %p1854
    $region70: #{bottleneck_forward.5} parent=5 // pred_check_branch
      %1857 = sbr.rel (%p1855) target = $region72
    $region71: #{bottleneck_forward.5} parent=5 // pred_region
      %s1858 = ssub.s32 %s14, 2
      // Predicated region
      $region73: #{bottleneck_forward.5} parent=71 // pred_check
        %p1859 = pneg %p190
      $region74: #{bottleneck_forward.5} parent=71 // pred_check_branch
        %1861 = sbr.rel (%p1859) target = $region76
      $region75: #{bottleneck_forward.5} parent=71 // pred_region
        %s1862 = smul.u32 %s25, 2
        %s1863 = sadd.s32 %s1862, %s26
        %s1864 = smul.u32 16, %s1863
        %p1865 = scmp.lt.s32.totalorder %s1864, 63
        %s1866 = scalar_select %p1865, %s1864, 63
        %s1867 = smul.addr %s1866, 8
        %s1868 = scalar_lea.vmem %s6, %s1867
      $region76: #{bottleneck_forward.5} parent=71 // pred_fallthru
        _
      // Predicated region
      $region77: #{bottleneck_forward.5} parent=71 // pred_check
        %p1869 = pneg %p220
      $region78: #{bottleneck_forward.5} parent=71 // pred_check_branch
        %1871 = sbr.rel (%p1869) target = $region80
      $region79: #{bottleneck_forward.5} parent=71 // pred_region
        %s1872 = smul.u32 %s25, 2
        %s1873 = sadd.s32 %s1872, %s26
        %p1874 = scmp.lt.s32.totalorder %s1873, 3
        %s1875 = scalar_select %p1874, %s1873, 3
        %s1876 = scalar_lea.vmem %s7, %s1875
      $region80: #{bottleneck_forward.5} parent=71 // pred_fallthru
        _
    $region72: #{bottleneck_forward.5} parent=5 // pred_fallthru
      _
  $region6: #{bottleneck_forward.5} parent=0 // loop_footer
    %s18 = sadd.s32 1, %s14
  $region7: #{bottleneck_forward.5} parent=0 // loop_footer_branch
    %13 = sbr.rel target = $region3
  $region8: #{bottleneck_forward.5} parent=0 // loop_exit
    _

</llo_original>
